<compile_context>
chip_gen: v7x
topology: tpu7x:2x2x1
jax: 0.10.0
libtpu: 0.0.40
codegen_flags: <defaults>
</compile_context>

<pallas_src>
import jax
import jax.numpy as jnp
from jax import lax
from jax.experimental import pallas as pl
from jax.experimental.pallas import tpu as pltpu


def _dense_layer2_kernel(x_ref, w1_ref, s1_ref, b1_ref, w2_ref, s2_ref, b2_ref,
                         out_ref, hp_ref, im_ref):
    H, W, Cin = x_ref.shape
    Cmid = w1_ref.shape[1]
    G = w2_ref.shape[1]
    cdt = w1_ref.dtype                       # matmul compute dtype (bf16 / f32)

    # ---- norm1 (folded inference BN: x*scale + bias) + relu1 ---------------
    x = x_ref[...]                                          # (H, W, Cin)
    y = jnp.maximum(
        x.astype(jnp.float32).reshape(H * W, Cin) * s1_ref[...] + b1_ref[...],
        0.0)

    # ---- conv1: 1x1 conv (bias=False) == channel matmul on the MXU ---------
    h = jnp.dot(y.astype(cdt), w1_ref[...],
                preferred_element_type=jnp.float32)          # (H*W, Cmid) f32

    # ---- norm2 + relu2 ------------------------------------------------------
    h = jnp.maximum(h * s2_ref[...] + b2_ref[...], 0.0)

    # ---- conv2: 3x3, padding=1, bias=False, via im2col + one matmul ---------
    # Re-zero only the 1-pixel halo strips; the interior is fully overwritten
    # each step.  Doing it per step keeps correctness independent of how the
    # "parallel" grid axis is scheduled across TensorCores.
    zrow = jnp.zeros((1, W + 2, Cmid), jnp.float32)
    zcol = jnp.zeros((H + 2, 1, Cmid), jnp.float32)
    hp_ref[0:1, :, :] = zrow
    hp_ref[H + 1:H + 2, :, :] = zrow
    hp_ref[:, 0:1, :] = zcol
    hp_ref[:, W + 1:W + 2, :] = zcol
    hp_ref[1:H + 1, 1:W + 1, :] = h.reshape(H, W, Cmid)

    # im2col build: im[i, j, t*Cmid:(t+1)*Cmid] = h_padded[i+dy, j+dx, :]
    # with tap index t = 3*dy + dx (matches the host-side w2 reshape).
    t = 0
    for dy in range(3):
        for dx in range(3):
            im_ref[:, :, t * Cmid:(t + 1) * Cmid] = hp_ref[dy:dy + H, dx:dx + W, :]
            t += 1

    patches = im_ref[...].reshape(H * W, 9 * Cmid).astype(cdt)
    nf = jnp.dot(patches, w2_ref[...],
                 preferred_element_type=jnp.float32)         # (H*W, G) f32

    # ---- fused concat([x, new_features], channel axis) ----------------------
    out_ref[:, :, :Cin] = x.astype(out_ref.dtype)
    out_ref[:, :, Cin:] = nf.reshape(H, W, G).astype(out_ref.dtype)


def dense_layer2_forward_nhwc(x_nhwc, params, *, compute_dtype=jnp.bfloat16):
    """NHWC-native entry point: (N, H, W, Cin) -> (N, H, W, Cin + growth_rate)."""
    w1, s1, b1, w2, s2, b2 = params
    N, H, W, Cin = x_nhwc.shape
    Cmid = w1.shape[1]
    G = w2.shape[1]

    w1c = w1.astype(compute_dtype)
    w2c = w2.astype(compute_dtype)

    return pl.pallas_call(
        _dense_layer2_kernel,
        out_shape=jax.ShapeDtypeStruct((N, H, W, Cin + G), x_nhwc.dtype),
        grid_spec=pltpu.PrefetchScalarGridSpec(
            num_scalar_prefetch=0,
            grid=(N,),
            in_specs=[
                pl.BlockSpec((pl.Squeezed(), H, W, Cin), lambda n: (n, 0, 0, 0)),
                pl.BlockSpec((Cin, Cmid), lambda n: (0, 0)),
                pl.BlockSpec((1, Cin), lambda n: (0, 0)),
                pl.BlockSpec((1, Cin), lambda n: (0, 0)),
                pl.BlockSpec((9 * Cmid, G), lambda n: (0, 0)),
                pl.BlockSpec((1, Cmid), lambda n: (0, 0)),
                pl.BlockSpec((1, Cmid), lambda n: (0, 0)),
            ],
            out_specs=pl.BlockSpec((pl.Squeezed(), H, W, Cin + G),
                                   lambda n: (n, 0, 0, 0)),
            scratch_shapes=[
                pltpu.VMEM((H + 2, W + 2, Cmid), jnp.float32),   # padded h
                pltpu.VMEM((H, W, 9 * Cmid), jnp.float32),       # im2col patches
            ],
        ),
        compiler_params=pltpu.CompilerParams(
            dimension_semantics=("parallel",)),
    )(x_nhwc, w1c, s1, b1, w2c, s2, b2)


def dense_layer2_forward(x_nchw, params, *, compute_dtype=jnp.bfloat16):
    """PyTorch-interface wrapper: (N, Cin, H, W) -> (N, Cin + growth_rate, H, W).

    In a full network, keep everything NHWC and call dense_layer2_forward_nhwc
    directly; these transposes exist only to match the NCHW reference here.
    """
    x = jnp.transpose(x_nchw, (0, 2, 3, 1))
    out = dense_layer2_forward_nhwc(x, params, compute_dtype=compute_dtype)
    return jnp.transpose(out, (0, 3, 1, 2))


def make_params(key, in_channels, growth_rate, bn_size, eps=1e-5):
    """Deterministic synthetic parameters (PyTorch layouts) + folded/NHWC forms."""
    cmid = bn_size * growth_rate
    ks = jax.random.split(key, 10)
    # conv weights in PyTorch OIHW layout
    w1_oihw = jax.random.normal(ks[0], (cmid, in_channels, 1, 1), jnp.float32) * 0.1
    w2_oihw = jax.random.normal(ks[1], (growth_rate, cmid, 3, 3), jnp.float32) * 0.1
    # BatchNorm params (inference / running stats)
    g1 = jax.random.normal(ks[2], (in_channels,), jnp.float32) * 0.1 + 1.0
    be1 = jax.random.normal(ks[3], (in_channels,), jnp.float32) * 0.1
    m1 = jax.random.normal(ks[4], (in_channels,), jnp.float32) * 0.1
    v1 = jax.random.uniform(ks[5], (in_channels,), jnp.float32) + 0.5
    g2 = jax.random.normal(ks[6], (cmid,), jnp.float32) * 0.1 + 1.0
    be2 = jax.random.normal(ks[7], (cmid,), jnp.float32) * 0.1
    m2 = jax.random.normal(ks[8], (cmid,), jnp.float32) * 0.1
    v2 = jax.random.uniform(ks[9], (cmid,), jnp.float32) + 0.5

    # fold BN into scale/bias (inference), reshape weights for the NHWC kernel
    s1 = g1 / jnp.sqrt(v1 + eps)
    b1 = be1 - m1 * s1
    s2 = g2 / jnp.sqrt(v2 + eps)
    b2 = be2 - m2 * s2
    w1 = jnp.transpose(w1_oihw[:, :, 0, 0], (1, 0))                     # (Cin, Cmid)
    # (G, Cmid, 3, 3) -> (3, 3, Cmid, G) -> (9*Cmid, G); row = (3*dy+dx)*Cmid + c
    w2f = jnp.transpose(w2_oihw, (2, 3, 1, 0)).reshape(9 * cmid, growth_rate)

    kernel_params = (w1, s1.reshape(1, -1), b1.reshape(1, -1),
                     w2f, s2.reshape(1, -1), b2.reshape(1, -1))
    torch_params = (w1_oihw, w2_oihw, g1, be1, m1, v1, g2, be2, m2, v2)
    return kernel_params, torch_params


def reference_forward(x_nchw, torch_params, eps=1e-5, compute_dtype=None):
    """Pure-JAX NCHW reference of the PyTorch module (eval-mode BN).

    If compute_dtype is given, conv operands are rounded to that dtype with
    f32 accumulation (matching the kernel's MXU path)."""
    (w1_oihw, w2_oihw, g1, be1, m1, v1, g2, be2, m2, v2) = torch_params

    def bn(x, g, b, m, v):
        return (x - m[None, :, None, None]) / jnp.sqrt(v[None, :, None, None] + eps) \
            * g[None, :, None, None] + b[None, :, None, None]

    def cast(a):
        return a if compute_dtype is None else a.astype(compute_dtype)

    y = jnp.maximum(bn(x_nchw, g1, be1, m1, v1), 0.0)
    h = lax.conv_general_dilated(cast(y), cast(w1_oihw), (1, 1), 'VALID',
                                 dimension_numbers=('NCHW', 'OIHW', 'NCHW'),
                                 preferred_element_type=jnp.float32)
    h = jnp.maximum(bn(h, g2, be2, m2, v2), 0.0)
    nf = lax.conv_general_dilated(cast(h), cast(w2_oihw), (1, 1), ((1, 1), (1, 1)),
                                  dimension_numbers=('NCHW', 'OIHW', 'NCHW'),
                                  preferred_element_type=jnp.float32)
    return jnp.concatenate([x_nchw, nf], axis=1)


if __name__ == "__main__":
    # Small shapes consistent with the module: 2D, batch=2, in_channels=4,
    # spatial 16x16, growth_rate=8, bn_size=4, dropout_prob=0.
    N, Cin, H, W = 2, 4, 16, 16
    growth_rate, bn_size = 8, 4

    key = jax.random.PRNGKey(0)
    kx, kp = jax.random.split(key)
    x = jax.random.normal(kx, (N, Cin, H, W), jnp.float32)

    kernel_params, torch_params = make_params(kp, Cin, growth_rate, bn_size)

    # (1) f32 compute path -- tight structural check against the f32 reference.
    out_f32 = jax.block_until_ready(
        dense_layer2_forward(x, kernel_params, compute_dtype=jnp.float32))
    ref_f32 = jax.block_until_ready(reference_forward(x, torch_params))
    assert out_f32.shape == (N, Cin + growth_rate, H, W), out_f32.shape
    assert jnp.allclose(out_f32, ref_f32, rtol=1e-3, atol=1e-3), \
        f"f32 max abs err = {jnp.max(jnp.abs(out_f32 - ref_f32))}"

    # (2) default bf16 MXU path -- checked against a reference with matching
    #     bf16 operand rounding (f32 accumulation in both).
    out_bf16 = jax.block_until_ready(dense_layer2_forward(x, kernel_params))
    ref_bf16 = jax.block_until_ready(
        reference_forward(x, torch_params, compute_dtype=jnp.bfloat16))
    assert out_bf16.shape == (N, Cin + growth_rate, H, W), out_bf16.shape
    assert jnp.allclose(out_bf16, ref_bf16, rtol=1e-2, atol=1e-2), \
        f"bf16 max abs err = {jnp.max(jnp.abs(out_bf16 - ref_bf16))}"

    print("KERNEL_OK")
</pallas_src>

<mosaic_0001>
module attributes {stable_mosaic.version = 11 : i64} {
  func.func @_dense_layer2_kernel(%arg0: i32, %arg1: memref<1x16x16x4xf32, #tpu.memory_space<vmem>>, %arg2: memref<4x32xf32, #tpu.memory_space<vmem>>, %arg3: memref<1x4xf32, #tpu.memory_space<vmem>>, %arg4: memref<1x4xf32, #tpu.memory_space<vmem>>, %arg5: memref<288x8xf32, #tpu.memory_space<vmem>>, %arg6: memref<1x32xf32, #tpu.memory_space<vmem>>, %arg7: memref<1x32xf32, #tpu.memory_space<vmem>>, %arg8: memref<1x16x16x12xf32, #tpu.memory_space<vmem>>, %arg9: memref<18x18x32xf32, #tpu.memory_space<vmem>>, %arg10: memref<16x16x288xf32, #tpu.memory_space<vmem>>) attributes {dimension_semantics = [#tpu.dimension_semantics<parallel>], iteration_bounds = array<i64: 2>, scalar_prefetch = 0 : i64, scratch_operands = 2 : i64, tpu.core_type = #tpu.core_type<tc>, window_params = [{transform_indices = @transform_0, window_bounds = array<i64: 1, 16, 16, 4>}, {pipeline_mode = #tpu.pipeline_mode<synchronous>, transform_indices = @transform_1, window_bounds = array<i64: 4, 32>}, {pipeline_mode = #tpu.pipeline_mode<synchronous>, transform_indices = @transform_2, window_bounds = array<i64: 1, 4>}, {pipeline_mode = #tpu.pipeline_mode<synchronous>, transform_indices = @transform_3, window_bounds = array<i64: 1, 4>}, {pipeline_mode = #tpu.pipeline_mode<synchronous>, transform_indices = @transform_4, window_bounds = array<i64: 288, 8>}, {pipeline_mode = #tpu.pipeline_mode<synchronous>, transform_indices = @transform_5, window_bounds = array<i64: 1, 32>}, {pipeline_mode = #tpu.pipeline_mode<synchronous>, transform_indices = @transform_6, window_bounds = array<i64: 1, 32>}, {transform_indices = @transform_7, window_bounds = array<i64: 1, 16, 16, 12>}]} {
    %c0 = arith.constant 0 : index
    %c0_0 = arith.constant 0 : index
    %c0_1 = arith.constant 0 : index
    %c0_2 = arith.constant 0 : index
    %0 = vector.load %arg1[%c0, %c0_0, %c0_1, %c0_2] : memref<1x16x16x4xf32, #tpu.memory_space<vmem>>, vector<1x16x16x4xf32>
    %1 = vector.shape_cast %0 : vector<1x16x16x4xf32> to vector<16x16x4xf32>
    %2 = vector.shape_cast %1 : vector<16x16x4xf32> to vector<256x4xf32>
    %c0_3 = arith.constant 0 : index
    %c0_4 = arith.constant 0 : index
    %3 = vector.load %arg3[%c0_3, %c0_4] : memref<1x4xf32, #tpu.memory_space<vmem>>, vector<1x4xf32>
    %4 = vector.broadcast %3 : vector<1x4xf32> to vector<256x4xf32>
    %5 = arith.mulf %2, %4 : vector<256x4xf32>
    %c0_5 = arith.constant 0 : index
    %c0_6 = arith.constant 0 : index
    %6 = vector.load %arg4[%c0_5, %c0_6] : memref<1x4xf32, #tpu.memory_space<vmem>>, vector<1x4xf32>
    %7 = vector.broadcast %6 : vector<1x4xf32> to vector<256x4xf32>
    %8 = arith.addf %5, %7 : vector<256x4xf32>
    %cst = arith.constant 0.000000e+00 : f32
    %9 = vector.broadcast %cst : f32 to vector<256x4xf32>
    %10 = arith.maximumf %8, %9 : vector<256x4xf32>
    %c0_7 = arith.constant 0 : index
    %c0_8 = arith.constant 0 : index
    %11 = vector.load %arg2[%c0_7, %c0_8] : memref<4x32xf32, #tpu.memory_space<vmem>>, vector<4x32xf32>
    %cst_9 = arith.constant dense<0.000000e+00> : vector<256x32xf32>
    %12 = tpu.matmul %10, %11, %cst_9 {dimension_numbers = #tpu.dot_dimension_numbers<[1], [0], [0], [1], [0, 0, 1, 1], [], []>} : vector<256x4xf32>, vector<4x32xf32>, vector<256x32xf32> -> vector<256x32xf32>
    %c0_10 = arith.constant 0 : index
    %c0_11 = arith.constant 0 : index
    %13 = vector.load %arg6[%c0_10, %c0_11] : memref<1x32xf32, #tpu.memory_space<vmem>>, vector<1x32xf32>
    %14 = vector.broadcast %13 : vector<1x32xf32> to vector<256x32xf32>
    %15 = arith.mulf %12, %14 : vector<256x32xf32>
    %c0_12 = arith.constant 0 : index
    %c0_13 = arith.constant 0 : index
    %16 = vector.load %arg7[%c0_12, %c0_13] : memref<1x32xf32, #tpu.memory_space<vmem>>, vector<1x32xf32>
    %17 = vector.broadcast %16 : vector<1x32xf32> to vector<256x32xf32>
    %18 = arith.addf %15, %17 : vector<256x32xf32>
    %cst_14 = arith.constant 0.000000e+00 : f32
    %19 = vector.broadcast %cst_14 : f32 to vector<256x32xf32>
    %20 = arith.maximumf %18, %19 : vector<256x32xf32>
    %cst_15 = arith.constant 0.000000e+00 : f32
    %21 = vector.broadcast %cst_15 : f32 to vector<1x18x32xf32>
    %cst_16 = arith.constant 0.000000e+00 : f32
    %22 = vector.broadcast %cst_16 : f32 to vector<18x1x32xf32>
    %c0_17 = arith.constant 0 : index
    %c0_18 = arith.constant 0 : index
    %c0_19 = arith.constant 0 : index
    %23 = vector.load %arg9[%c0_17, %c0_18, %c0_19] : memref<18x18x32xf32, #tpu.memory_space<vmem>>, vector<1x18x32xf32>
    tpu.vector_store %arg9[%c0_17, %c0_18, %c0_19], %21 {strides = array<i32>} : memref<18x18x32xf32, #tpu.memory_space<vmem>>, vector<1x18x32xf32>,
    %c17 = arith.constant 17 : index
    %c0_20 = arith.constant 0 : index
    %c0_21 = arith.constant 0 : index
    %24 = vector.load %arg9[%c17, %c0_20, %c0_21] : memref<18x18x32xf32, #tpu.memory_space<vmem>>, vector<1x18x32xf32>
    tpu.vector_store %arg9[%c17, %c0_20, %c0_21], %21 {strides = array<i32>} : memref<18x18x32xf32, #tpu.memory_space<vmem>>, vector<1x18x32xf32>,
    %c0_22 = arith.constant 0 : index
    %c0_23 = arith.constant 0 : index
    %c0_24 = arith.constant 0 : index
    %25 = vector.load %arg9[%c0_22, %c0_23, %c0_24] : memref<18x18x32xf32, #tpu.memory_space<vmem>>, vector<18x1x32xf32>
    tpu.vector_store %arg9[%c0_22, %c0_23, %c0_24], %22 {strides = array<i32>} : memref<18x18x32xf32, #tpu.memory_space<vmem>>, vector<18x1x32xf32>,
    %c0_25 = arith.constant 0 : index
    %c17_26 = arith.constant 17 : index
    %c0_27 = arith.constant 0 : index
    %26 = vector.load %arg9[%c0_25, %c17_26, %c0_27] : memref<18x18x32xf32, #tpu.memory_space<vmem>>, vector<18x1x32xf32>
    tpu.vector_store %arg9[%c0_25, %c17_26, %c0_27], %22 {strides = array<i32>} : memref<18x18x32xf32, #tpu.memory_space<vmem>>, vector<18x1x32xf32>,
    %27 = vector.shape_cast %20 : vector<256x32xf32> to vector<16x16x32xf32>
    %c1 = arith.constant 1 : index
    %c1_28 = arith.constant 1 : index
    %c0_29 = arith.constant 0 : index
    %28 = vector.load %arg9[%c1, %c1_28, %c0_29] : memref<18x18x32xf32, #tpu.memory_space<vmem>>, vector<16x16x32xf32>
    tpu.vector_store %arg9[%c1, %c1_28, %c0_29], %27 {strides = array<i32>} : memref<18x18x32xf32, #tpu.memory_space<vmem>>, vector<16x16x32xf32>,
    %c0_30 = arith.constant 0 : index
    %c0_31 = arith.constant 0 : index
    %c0_32 = arith.constant 0 : index
    %29 = vector.load %arg9[%c0_30, %c0_31, %c0_32] : memref<18x18x32xf32, #tpu.memory_space<vmem>>, vector<16x16x32xf32>
    %c0_33 = arith.constant 0 : index
    %c0_34 = arith.constant 0 : index
    %c0_35 = arith.constant 0 : index
    %30 = vector.load %arg10[%c0_33, %c0_34, %c0_35] : memref<16x16x288xf32, #tpu.memory_space<vmem>>, vector<16x16x32xf32>
    tpu.vector_store %arg10[%c0_33, %c0_34, %c0_35], %29 {strides = array<i32>} : memref<16x16x288xf32, #tpu.memory_space<vmem>>, vector<16x16x32xf32>,
    %c0_36 = arith.constant 0 : index
    %c1_37 = arith.constant 1 : index
    %c0_38 = arith.constant 0 : index
    %31 = vector.load %arg9[%c0_36, %c1_37, %c0_38] : memref<18x18x32xf32, #tpu.memory_space<vmem>>, vector<16x16x32xf32>
    %c0_39 = arith.constant 0 : index
    %c0_40 = arith.constant 0 : index
    %c32 = arith.constant 32 : index
    %32 = vector.load %arg10[%c0_39, %c0_40, %c32] : memref<16x16x288xf32, #tpu.memory_space<vmem>>, vector<16x16x32xf32>
    tpu.vector_store %arg10[%c0_39, %c0_40, %c32], %31 {strides = array<i32>} : memref<16x16x288xf32, #tpu.memory_space<vmem>>, vector<16x16x32xf32>,
    %c0_41 = arith.constant 0 : index
    %c2 = arith.constant 2 : index
    %c0_42 = arith.constant 0 : index
    %33 = vector.load %arg9[%c0_41, %c2, %c0_42] : memref<18x18x32xf32, #tpu.memory_space<vmem>>, vector<16x16x32xf32>
    %c0_43 = arith.constant 0 : index
    %c0_44 = arith.constant 0 : index
    %c64 = arith.constant 64 : index
    %34 = vector.load %arg10[%c0_43, %c0_44, %c64] : memref<16x16x288xf32, #tpu.memory_space<vmem>>, vector<16x16x32xf32>
    tpu.vector_store %arg10[%c0_43, %c0_44, %c64], %33 {strides = array<i32>} : memref<16x16x288xf32, #tpu.memory_space<vmem>>, vector<16x16x32xf32>,
    %c1_45 = arith.constant 1 : index
    %c0_46 = arith.constant 0 : index
    %c0_47 = arith.constant 0 : index
    %35 = vector.load %arg9[%c1_45, %c0_46, %c0_47] : memref<18x18x32xf32, #tpu.memory_space<vmem>>, vector<16x16x32xf32>
    %c0_48 = arith.constant 0 : index
    %c0_49 = arith.constant 0 : index
    %c96 = arith.constant 96 : index
    %36 = vector.load %arg10[%c0_48, %c0_49, %c96] : memref<16x16x288xf32, #tpu.memory_space<vmem>>, vector<16x16x32xf32>
    tpu.vector_store %arg10[%c0_48, %c0_49, %c96], %35 {strides = array<i32>} : memref<16x16x288xf32, #tpu.memory_space<vmem>>, vector<16x16x32xf32>,
    %c1_50 = arith.constant 1 : index
    %c1_51 = arith.constant 1 : index
    %c0_52 = arith.constant 0 : index
    %37 = vector.load %arg9[%c1_50, %c1_51, %c0_52] : memref<18x18x32xf32, #tpu.memory_space<vmem>>, vector<16x16x32xf32>
    %c0_53 = arith.constant 0 : index
    %c0_54 = arith.constant 0 : index
    %c128 = arith.constant 128 : index
    %38 = vector.load %arg10[%c0_53, %c0_54, %c128] : memref<16x16x288xf32, #tpu.memory_space<vmem>>, vector<16x16x32xf32>
    tpu.vector_store %arg10[%c0_53, %c0_54, %c128], %37 {strides = array<i32>} : memref<16x16x288xf32, #tpu.memory_space<vmem>>, vector<16x16x32xf32>,
    %c1_55 = arith.constant 1 : index
    %c2_56 = arith.constant 2 : index
    %c0_57 = arith.constant 0 : index
    %39 = vector.load %arg9[%c1_55, %c2_56, %c0_57] : memref<18x18x32xf32, #tpu.memory_space<vmem>>, vector<16x16x32xf32>
    %c0_58 = arith.constant 0 : index
    %c0_59 = arith.constant 0 : index
    %c160 = arith.constant 160 : index
    %40 = vector.load %arg10[%c0_58, %c0_59, %c160] : memref<16x16x288xf32, #tpu.memory_space<vmem>>, vector<16x16x32xf32>
    tpu.vector_store %arg10[%c0_58, %c0_59, %c160], %39 {strides = array<i32>} : memref<16x16x288xf32, #tpu.memory_space<vmem>>, vector<16x16x32xf32>,
    %c2_60 = arith.constant 2 : index
    %c0_61 = arith.constant 0 : index
    %c0_62 = arith.constant 0 : index
    %41 = vector.load %arg9[%c2_60, %c0_61, %c0_62] : memref<18x18x32xf32, #tpu.memory_space<vmem>>, vector<16x16x32xf32>
    %c0_63 = arith.constant 0 : index
    %c0_64 = arith.constant 0 : index
    %c192 = arith.constant 192 : index
    %42 = vector.load %arg10[%c0_63, %c0_64, %c192] : memref<16x16x288xf32, #tpu.memory_space<vmem>>, vector<16x16x32xf32>
    tpu.vector_store %arg10[%c0_63, %c0_64, %c192], %41 {strides = array<i32>} : memref<16x16x288xf32, #tpu.memory_space<vmem>>, vector<16x16x32xf32>,
    %c2_65 = arith.constant 2 : index
    %c1_66 = arith.constant 1 : index
    %c0_67 = arith.constant 0 : index
    %43 = vector.load %arg9[%c2_65, %c1_66, %c0_67] : memref<18x18x32xf32, #tpu.memory_space<vmem>>, vector<16x16x32xf32>
    %c0_68 = arith.constant 0 : index
    %c0_69 = arith.constant 0 : index
    %c224 = arith.constant 224 : index
    %44 = vector.load %arg10[%c0_68, %c0_69, %c224] : memref<16x16x288xf32, #tpu.memory_space<vmem>>, vector<16x16x32xf32>
    tpu.vector_store %arg10[%c0_68, %c0_69, %c224], %43 {strides = array<i32>} : memref<16x16x288xf32, #tpu.memory_space<vmem>>, vector<16x16x32xf32>,
    %c2_70 = arith.constant 2 : index
    %c2_71 = arith.constant 2 : index
    %c0_72 = arith.constant 0 : index
    %45 = vector.load %arg9[%c2_70, %c2_71, %c0_72] : memref<18x18x32xf32, #tpu.memory_space<vmem>>, vector<16x16x32xf32>
    %c0_73 = arith.constant 0 : index
    %c0_74 = arith.constant 0 : index
    %c256 = arith.constant 256 : index
    %46 = vector.load %arg10[%c0_73, %c0_74, %c256] : memref<16x16x288xf32, #tpu.memory_space<vmem>>, vector<16x16x32xf32>
    tpu.vector_store %arg10[%c0_73, %c0_74, %c256], %45 {strides = array<i32>} : memref<16x16x288xf32, #tpu.memory_space<vmem>>, vector<16x16x32xf32>,
    %c0_75 = arith.constant 0 : index
    %c0_76 = arith.constant 0 : index
    %c0_77 = arith.constant 0 : index
    %47 = vector.load %arg10[%c0_75, %c0_76, %c0_77] : memref<16x16x288xf32, #tpu.memory_space<vmem>>, vector<16x16x288xf32>
    %48 = vector.shape_cast %47 : vector<16x16x288xf32> to vector<256x288xf32>
    %c0_78 = arith.constant 0 : index
    %c0_79 = arith.constant 0 : index
    %49 = vector.load %arg5[%c0_78, %c0_79] : memref<288x8xf32, #tpu.memory_space<vmem>>, vector<288x8xf32>
    %cst_80 = arith.constant dense<0.000000e+00> : vector<256x8xf32>
    %50 = tpu.matmul %48, %49, %cst_80 {dimension_numbers = #tpu.dot_dimension_numbers<[1], [0], [0], [1], [0, 0, 1, 1], [], []>} : vector<256x288xf32>, vector<288x8xf32>, vector<256x8xf32> -> vector<256x8xf32>
    %c0_81 = arith.constant 0 : index
    %c0_82 = arith.constant 0 : index
    %c0_83 = arith.constant 0 : index
    %c0_84 = arith.constant 0 : index
    %51 = vector.load %arg8[%c0_81, %c0_82, %c0_83, %c0_84] : memref<1x16x16x12xf32, #tpu.memory_space<vmem>>, vector<1x16x16x4xf32>
    %52 = vector.shape_cast %51 : vector<1x16x16x4xf32> to vector<16x16x4xf32>
    %53 = vector.shape_cast %1 : vector<16x16x4xf32> to vector<1x16x16x4xf32>
    tpu.vector_store %arg8[%c0_81, %c0_82, %c0_83, %c0_84], %53 {strides = array<i32>} : memref<1x16x16x12xf32, #tpu.memory_space<vmem>>, vector<1x16x16x4xf32>,
    %54 = vector.shape_cast %50 : vector<256x8xf32> to vector<16x16x8xf32>
    %c0_85 = arith.constant 0 : index
    %c0_86 = arith.constant 0 : index
    %c0_87 = arith.constant 0 : index
    %c4 = arith.constant 4 : index
    %55 = vector.load %arg8[%c0_85, %c0_86, %c0_87, %c4] : memref<1x16x16x12xf32, #tpu.memory_space<vmem>>, vector<1x16x16x8xf32>
    %56 = vector.shape_cast %55 : vector<1x16x16x8xf32> to vector<16x16x8xf32>
    %57 = vector.shape_cast %54 : vector<16x16x8xf32> to vector<1x16x16x8xf32>
    tpu.vector_store %arg8[%c0_85, %c0_86, %c0_87, %c4], %57 {strides = array<i32>} : memref<1x16x16x12xf32, #tpu.memory_space<vmem>>, vector<1x16x16x8xf32>,
    return
  }
  func.func @transform_0(%arg0: i32) -> (i32, i32, i32, i32) {
    %c0_i32 = arith.constant 0 : i32
    %c0_i32_0 = arith.constant 0 : i32
    %c0_i32_1 = arith.constant 0 : i32
    %c0_i32_2 = arith.constant 0 : i32
    return %arg0, %c0_i32, %c0_i32_0, %c0_i32_1 : i32, i32, i32, i32
  }
  func.func @transform_1(%arg0: i32) -> (i32, i32) {
    %c0_i32 = arith.constant 0 : i32
    %c0_i32_0 = arith.constant 0 : i32
    %c0_i32_1 = arith.constant 0 : i32
    return %c0_i32, %c0_i32_0 : i32, i32
  }
  func.func @transform_2(%arg0: i32) -> (i32, i32) {
    %c0_i32 = arith.constant 0 : i32
    %c0_i32_0 = arith.constant 0 : i32
    %c0_i32_1 = arith.constant 0 : i32
    return %c0_i32, %c0_i32_0 : i32, i32
  }
  func.func @transform_3(%arg0: i32) -> (i32, i32) {
    %c0_i32 = arith.constant 0 : i32
    %c0_i32_0 = arith.constant 0 : i32
    %c0_i32_1 = arith.constant 0 : i32
    return %c0_i32, %c0_i32_0 : i32, i32
  }
  func.func @transform_4(%arg0: i32) -> (i32, i32) {
    %c0_i32 = arith.constant 0 : i32
    %c0_i32_0 = arith.constant 0 : i32
    %c0_i32_1 = arith.constant 0 : i32
    return %c0_i32, %c0_i32_0 : i32, i32
  }
  func.func @transform_5(%arg0: i32) -> (i32, i32) {
    %c0_i32 = arith.constant 0 : i32
    %c0_i32_0 = arith.constant 0 : i32
    %c0_i32_1 = arith.constant 0 : i32
    return %c0_i32, %c0_i32_0 : i32, i32
  }
  func.func @transform_6(%arg0: i32) -> (i32, i32) {
    %c0_i32 = arith.constant 0 : i32
    %c0_i32_0 = arith.constant 0 : i32
    %c0_i32_1 = arith.constant 0 : i32
    return %c0_i32, %c0_i32_0 : i32, i32
  }
  func.func @transform_7(%arg0: i32) -> (i32, i32, i32, i32) {
    %c0_i32 = arith.constant 0 : i32
    %c0_i32_0 = arith.constant 0 : i32
    %c0_i32_1 = arith.constant 0 : i32
    %c0_i32_2 = arith.constant 0 : i32
    return %arg0, %c0_i32, %c0_i32_0, %c0_i32_1 : i32, i32, i32, i32
  }
}

</mosaic_0001>

<llo_original>
// kernel: tpu_custom_call.1
$region0: #{tpu_custom_call.1}
  #allocation0 [shape = 'u32[]', space=smem, size = 0x4, offset = 0x4, fixed_abs, tag = 'smem constant byte address 0x4 - core index']
  #allocation1 [shape = 'u32[144,128]{1,0:T(1,128)}', space=vmem, size = 0x12000, scoped, tag = 'internal scratch']
  #allocation2 [shape = 'f32[18,18,32]{2,1,0:T(8,128)}', space=vmem, size = 0x36000, scoped, tag = 'scratch operand']
  #allocation3 [shape = 'f32[16,16,288]{2,1,0:T(8,128)}', space=vmem, size = 0x60000, scoped, tag = 'scratch operand']
  %s0 = inlined_call_operand.vmem [shape: f32[2,16,16,4], index: 0, kind: input, shape index: {}]
  %s1 = inlined_call_operand.vmem [shape: f32[4,32], index: 1, kind: input, shape index: {}]
  %s2 = inlined_call_operand.vmem [shape: f32[1,4], index: 2, kind: input, shape index: {}]
  %s3 = inlined_call_operand.vmem [shape: f32[1,4], index: 3, kind: input, shape index: {}]
  %s4 = inlined_call_operand.vmem [shape: f32[288,8], index: 4, kind: input, shape index: {}]
  %s5 = inlined_call_operand.vmem [shape: f32[1,32], index: 5, kind: input, shape index: {}]
  %s6 = inlined_call_operand.vmem [shape: f32[1,32], index: 6, kind: input, shape index: {}]
  %s7 = inlined_call_operand.vmem [shape: f32[2,16,16,12], index: 7, kind: output, shape index: {}]
  %s8 = sld [smem:[#allocation0]]
  $region61: #{tpu_custom_call.1} parent=0
    _
  %s10 = ssub.s32 1, %s8
  %s11 = scalar_select 0, %s10, %s8
  loop: start=0, step=1, limit=4
  $region2: #{tpu_custom_call.1} parent=0 // loop_pre_header
    _
  $region3: #{tpu_custom_call.1} parent=0 // loop_header
    %s13 = sphi 0, %s17
    %p14 = scmp.ge.s32.totalorder %s13, 4
    %s23 = sphi 0, %s25
    %s26 = sphi 0, %s23
    %s27 = sphi 0, %s26
    %s43 = sphi 0, %s27
    %s47 = sphi 0, %s47
    %s49 = sphi 0, %s47
    %s50 = sphi 0, %s49
    %s64 = sphi 0, %s50
    %s68 = sphi 0, %s68
    %s70 = sphi 0, %s68
    %s71 = sphi 0, %s70
    %s85 = sphi 0, %s71
    %s89 = sphi 0, %s89
    %s91 = sphi 0, %s89
    %s92 = sphi 0, %s91
    %s106 = sphi 0, %s92
    %s110 = sphi 0, %s110
    %s112 = sphi 0, %s110
    %s113 = sphi 0, %s112
    %s127 = sphi 0, %s113
    %s131 = sphi 0, %s131
    %s133 = sphi 0, %s131
    %s134 = sphi 0, %s133
    %s148 = sphi 0, %s134
    %s152 = sphi 0, %s152
    %s154 = sphi 0, %s152
    %s155 = sphi 0, %s154
    %s169 = sphi 0, %s155
    %s175 = sphi 0, %s177
    %s178 = sphi 0, %s175
    %s179 = sphi 0, %s178
    %s195 = sphi 0, %s179
  $region4: #{tpu_custom_call.1} parent=0 // loop_header_branch
    %16 = sbr.rel (%p14) target = $region8
  $region5: #{tpu_custom_call.1} parent=0 // loop_body
    %s18 = ssub.s32 %s13, 1
    %s19 = ssub.s32 %s13, 2
    %s20 = sadd.s32 %s13, 1
    %s21 = ssub.s32 %s13, %s20
    %p22 = scmp.eq.s32.totalorder %s21, 0
    %s24 = sadd.s32 %s23, 1
    %s25 = scalar_select %p22, %s23, %s24
    %p28 = pneg %p22
    %p29 = scmp.eq.s32.totalorder %s13, 1
    %p30 = por %p28, %p29
    %p31 = scmp.ne.s32.totalorder %s23, %s26
    %p32 = scmp.eq.s32.totalorder %s13, 0
    %p33 = por %p31, %p32
    %p34 = scmp.ne.s32.totalorder %s23, %s26
    %p35 = scmp.eq.s32.totalorder %s18, 1
    %p36 = por %p34, %p35
    %p37 = scmp.ne.s32.totalorder %s26, %s27
    %p38 = scmp.eq.s32.totalorder %s18, 0
    %p39 = por %p37, %p38
    %p40 = scmp.ne.s32.totalorder %s26, %s27
    %p41 = scmp.eq.s32.totalorder %s19, 1
    %p42 = por %p40, %p41
    %p44 = scmp.ne.s32.totalorder %s27, %s43
    %p45 = scmp.eq.s32.totalorder %s19, 0
    %p46 = por %p44, %p45
    %s48 = sadd.s32 %s47, 1
    %p51 = scmp.eq.s32.totalorder %s13, 1
    %p52 = scmp.ne.s32.totalorder %s47, %s49
    %p53 = scmp.eq.s32.totalorder %s13, 0
    %p54 = por %p52, %p53
    %p55 = scmp.ne.s32.totalorder %s47, %s49
    %p56 = scmp.eq.s32.totalorder %s18, 1
    %p57 = por %p55, %p56
    %p58 = scmp.ne.s32.totalorder %s49, %s50
    %p59 = scmp.eq.s32.totalorder %s18, 0
    %p60 = por %p58, %p59
    %p61 = scmp.ne.s32.totalorder %s49, %s50
    %p62 = scmp.eq.s32.totalorder %s19, 1
    %p63 = por %p61, %p62
    %p65 = scmp.ne.s32.totalorder %s50, %s64
    %p66 = scmp.eq.s32.totalorder %s19, 0
    %p67 = por %p65, %p66
    %s69 = sadd.s32 %s68, 1
    %p72 = scmp.eq.s32.totalorder %s13, 1
    %p73 = scmp.ne.s32.totalorder %s68, %s70
    %p74 = scmp.eq.s32.totalorder %s13, 0
    %p75 = por %p73, %p74
    %p76 = scmp.ne.s32.totalorder %s68, %s70
    %p77 = scmp.eq.s32.totalorder %s18, 1
    %p78 = por %p76, %p77
    %p79 = scmp.ne.s32.totalorder %s70, %s71
    %p80 = scmp.eq.s32.totalorder %s18, 0
    %p81 = por %p79, %p80
    %p82 = scmp.ne.s32.totalorder %s70, %s71
    %p83 = scmp.eq.s32.totalorder %s19, 1
    %p84 = por %p82, %p83
    %p86 = scmp.ne.s32.totalorder %s71, %s85
    %p87 = scmp.eq.s32.totalorder %s19, 0
    %p88 = por %p86, %p87
    %s90 = sadd.s32 %s89, 1
    %p93 = scmp.eq.s32.totalorder %s13, 1
    %p94 = scmp.ne.s32.totalorder %s89, %s91
    %p95 = scmp.eq.s32.totalorder %s13, 0
    %p96 = por %p94, %p95
    %p97 = scmp.ne.s32.totalorder %s89, %s91
    %p98 = scmp.eq.s32.totalorder %s18, 1
    %p99 = por %p97, %p98
    %p100 = scmp.ne.s32.totalorder %s91, %s92
    %p101 = scmp.eq.s32.totalorder %s18, 0
    %p102 = por %p100, %p101
    %p103 = scmp.ne.s32.totalorder %s91, %s92
    %p104 = scmp.eq.s32.totalorder %s19, 1
    %p105 = por %p103, %p104
    %p107 = scmp.ne.s32.totalorder %s92, %s106
    %p108 = scmp.eq.s32.totalorder %s19, 0
    %p109 = por %p107, %p108
    %s111 = sadd.s32 %s110, 1
    %p114 = scmp.eq.s32.totalorder %s13, 1
    %p115 = scmp.ne.s32.totalorder %s110, %s112
    %p116 = scmp.eq.s32.totalorder %s13, 0
    %p117 = por %p115, %p116
    %p118 = scmp.ne.s32.totalorder %s110, %s112
    %p119 = scmp.eq.s32.totalorder %s18, 1
    %p120 = por %p118, %p119
    %p121 = scmp.ne.s32.totalorder %s112, %s113
    %p122 = scmp.eq.s32.totalorder %s18, 0
    %p123 = por %p121, %p122
    %p124 = scmp.ne.s32.totalorder %s112, %s113
    %p125 = scmp.eq.s32.totalorder %s19, 1
    %p126 = por %p124, %p125
    %p128 = scmp.ne.s32.totalorder %s113, %s127
    %p129 = scmp.eq.s32.totalorder %s19, 0
    %p130 = por %p128, %p129
    %s132 = sadd.s32 %s131, 1
    %p135 = scmp.eq.s32.totalorder %s13, 1
    %p136 = scmp.ne.s32.totalorder %s131, %s133
    %p137 = scmp.eq.s32.totalorder %s13, 0
    %p138 = por %p136, %p137
    %p139 = scmp.ne.s32.totalorder %s131, %s133
    %p140 = scmp.eq.s32.totalorder %s18, 1
    %p141 = por %p139, %p140
    %p142 = scmp.ne.s32.totalorder %s133, %s134
    %p143 = scmp.eq.s32.totalorder %s18, 0
    %p144 = por %p142, %p143
    %p145 = scmp.ne.s32.totalorder %s133, %s134
    %p146 = scmp.eq.s32.totalorder %s19, 1
    %p147 = por %p145, %p146
    %p149 = scmp.ne.s32.totalorder %s134, %s148
    %p150 = scmp.eq.s32.totalorder %s19, 0
    %p151 = por %p149, %p150
    %s153 = sadd.s32 %s152, 1
    %p156 = scmp.eq.s32.totalorder %s13, 1
    %p157 = scmp.ne.s32.totalorder %s152, %s154
    %p158 = scmp.eq.s32.totalorder %s13, 0
    %p159 = por %p157, %p158
    %p160 = scmp.ne.s32.totalorder %s152, %s154
    %p161 = scmp.eq.s32.totalorder %s18, 1
    %p162 = por %p160, %p161
    %p163 = scmp.ne.s32.totalorder %s154, %s155
    %p164 = scmp.eq.s32.totalorder %s18, 0
    %p165 = por %p163, %p164
    %p166 = scmp.ne.s32.totalorder %s154, %s155
    %p167 = scmp.eq.s32.totalorder %s19, 1
    %p168 = por %p166, %p167
    %p170 = scmp.ne.s32.totalorder %s155, %s169
    %p171 = scmp.eq.s32.totalorder %s19, 0
    %p172 = por %p170, %p171
    %s173 = ssub.s32 %s13, %s20
    %p174 = scmp.eq.s32.totalorder %s173, 0
    %s176 = sadd.s32 %s175, 1
    %s177 = scalar_select %p174, %s175, %s176
    %p180 = pneg %p174
    %p181 = scmp.eq.s32.totalorder %s13, 1
    %p182 = por %p180, %p181
    %p183 = scmp.ne.s32.totalorder %s175, %s178
    %p184 = scmp.eq.s32.totalorder %s13, 0
    %p185 = por %p183, %p184
    %p186 = scmp.ne.s32.totalorder %s175, %s178
    %p187 = scmp.eq.s32.totalorder %s18, 1
    %p188 = por %p186, %p187
    %p189 = scmp.ne.s32.totalorder %s178, %s179
    %p190 = scmp.eq.s32.totalorder %s18, 0
    %p191 = por %p189, %p190
    %p192 = scmp.ne.s32.totalorder %s178, %s179
    %p193 = scmp.eq.s32.totalorder %s19, 1
    %p194 = por %p192, %p193
    %p196 = scmp.ne.s32.totalorder %s179, %s195
    %p197 = scmp.eq.s32.totalorder %s19, 0
    %p198 = por %p196, %p197
    %p199 = scmp.le.s32.totalorder 1, %s13
    %p200 = scmp.lt.s32.totalorder %s13, 3
    %p201 = pnand %p199, %p200
    %p202 = pneg %p201
    // Predicated region
    $region9: #{tpu_custom_call.1} parent=5 // pred_check
      _
    $region10: #{tpu_custom_call.1} parent=5 // pred_check_branch
      %204 = sbr.rel (%p201) target = $region12
    $region11: #{tpu_custom_call.1} parent=5 // pred_region
      %s205 = ssub.s32 %s13, 1
      // Predicated region
      $region13: #{tpu_custom_call.1} parent=11 // pred_check
        %p206 = pneg %p60
      $region14: #{tpu_custom_call.1} parent=11 // pred_check_branch
        %208 = sbr.rel (%p206) target = $region16
      $region15: #{tpu_custom_call.1} parent=11 // pred_region
        _
      $region16: #{tpu_custom_call.1} parent=11 // pred_fallthru
        _
      // Predicated region
      $region17: #{tpu_custom_call.1} parent=11 // pred_check
        %p209 = pneg %p81
      $region18: #{tpu_custom_call.1} parent=11 // pred_check_branch
        %211 = sbr.rel (%p209) target = $region20
      $region19: #{tpu_custom_call.1} parent=11 // pred_region
        _
      $region20: #{tpu_custom_call.1} parent=11 // pred_fallthru
        _
      // Predicated region
      $region21: #{tpu_custom_call.1} parent=11 // pred_check
        %p212 = pneg %p102
      $region22: #{tpu_custom_call.1} parent=11 // pred_check_branch
        %214 = sbr.rel (%p212) target = $region24
      $region23: #{tpu_custom_call.1} parent=11 // pred_region
        _
      $region24: #{tpu_custom_call.1} parent=11 // pred_fallthru
        _
      // Predicated region
      $region25: #{tpu_custom_call.1} parent=11 // pred_check
        %p215 = pneg %p123
      $region26: #{tpu_custom_call.1} parent=11 // pred_check_branch
        %217 = sbr.rel (%p215) target = $region28
      $region27: #{tpu_custom_call.1} parent=11 // pred_region
        _
      $region28: #{tpu_custom_call.1} parent=11 // pred_fallthru
        _
      // Predicated region
      $region29: #{tpu_custom_call.1} parent=11 // pred_check
        %p218 = pneg %p144
      $region30: #{tpu_custom_call.1} parent=11 // pred_check_branch
        %220 = sbr.rel (%p218) target = $region32
      $region31: #{tpu_custom_call.1} parent=11 // pred_region
        _
      $region32: #{tpu_custom_call.1} parent=11 // pred_fallthru
        _
      // Predicated region
      $region33: #{tpu_custom_call.1} parent=11 // pred_check
        %p221 = pneg %p165
      $region34: #{tpu_custom_call.1} parent=11 // pred_check_branch
        %223 = sbr.rel (%p221) target = $region36
      $region35: #{tpu_custom_call.1} parent=11 // pred_region
        _
      $region36: #{tpu_custom_call.1} parent=11 // pred_fallthru
        _
    $region12: #{tpu_custom_call.1} parent=5 // pred_fallthru
      _
    %p224 = scmp.lt.s32.totalorder %s13, 2
    // Predicated region
    $region37: #{tpu_custom_call.1} parent=5 // pred_check
      %p225 = pneg %p224
    $region38: #{tpu_custom_call.1} parent=5 // pred_check_branch
      %227 = sbr.rel (%p225) target = $region40
    $region39: #{tpu_custom_call.1} parent=5 // pred_region
      // Predicated region
      $region41: #{tpu_custom_call.1} parent=39 // pred_check
        %p228 = pneg %p33
      $region42: #{tpu_custom_call.1} parent=39 // pred_check_branch
        %230 = sbr.rel (%p228) target = $region44
      $region43: #{tpu_custom_call.1} parent=39 // pred_region
        %p231 = scmp.lt.s32.totalorder %s13, 1
        %s232 = scalar_select %p231, %s13, 1
        %s233 = smul.addr %s232, 32
        %s234 = smul.addr %s233, 8
        %s235 = scalar_lea.vmem %s0, %s234
      $region44: #{tpu_custom_call.1} parent=39 // pred_fallthru
        _
    $region40: #{tpu_custom_call.1} parent=5 // pred_fallthru
      _
    %p236 = scmp.le.s32.totalorder 1, %s13
    %p237 = scmp.lt.s32.totalorder %s13, 3
    %p238 = pnand %p236, %p237
    %p239 = pneg %p238
    // Predicated region
    $region45: #{tpu_custom_call.1} parent=5 // pred_check
      _
    $region46: #{tpu_custom_call.1} parent=5 // pred_check_branch
      %241 = sbr.rel (%p238) target = $region48
    $region47: #{tpu_custom_call.1} parent=5 // pred_region
      %s242 = ssub.s32 %s13, 1
      %p243 = scmp.lt.s32.totalorder %s18, 1
      %s244 = scalar_select %p243, %s18, 1
      %s245 = smul.addr %s244, 32
      %s246 = smul.addr %s245, 8
      %s247 = scalar_lea.vmem %s0, %s246
      %p248 = pneg %p39
      %p249 = pneg %p36
      %p250 = pneg %p60
      %p251 = pneg %p57
      %p252 = pneg %p81
      %p253 = pneg %p78
      %p254 = pneg %p102
      %p255 = pneg %p99
      %p256 = pneg %p123
      %p257 = pneg %p120
      %p258 = pneg %p144
      %p259 = pneg %p141
      %p260 = pneg %p165
      %p261 = pneg %p162
      %p262 = pneg %p191
      %p263 = pneg %p188
      %p264 = scmp.lt.s32.totalorder %s18, 1
      %s265 = scalar_select %p264, %s18, 1
      %s266 = smul.addr %s265, 32
      %s267 = smul.addr %s266, 8
      %s268 = scalar_lea.vmem %s7, %s267
      %p269 = scmp.lt.s32.totalorder %s18, 1
      %s270 = scalar_select %p269, %s18, 1
      %s271 = smul.addr %s270, 32
      %s272 = smul.addr %s271, 8
      %s273 = scalar_lea.vmem %s0, %s272
      %p274 = scmp.lt.s32.totalorder %s18, 1
      %s275 = scalar_select %p274, %s18, 1
      %s276 = smul.addr %s275, 32
      %s277 = smul.addr %s276, 8
      %s278 = scalar_lea.vmem %s7, %s277
      %v279 = vld [vmem:[%s273] sm:$0xff]
      %v280 = vld [vmem:[%s273 + $0x8] sm:$0xff]
      %v281 = vld [vmem:[%s273 + $0x10] sm:$0xff]
      %v282 = vld [vmem:[%s273 + $0x18] sm:$0xff]
      %v283 = vld [vmem:[%s273 + $0x20] sm:$0xff]
      %v284 = vld [vmem:[%s273 + $0x28] sm:$0xff]
      %v285 = vld [vmem:[%s273 + $0x30] sm:$0xff]
      %v286 = vld [vmem:[%s273 + $0x38] sm:$0xff]
      %v287 = vld [vmem:[%s273 + $0x40] sm:$0xff]
      %v288 = vld [vmem:[%s273 + $0x48] sm:$0xff]
      %v289 = vld [vmem:[%s273 + $0x50] sm:$0xff]
      %v290 = vld [vmem:[%s273 + $0x58] sm:$0xff]
      %v291 = vld [vmem:[%s273 + $0x60] sm:$0xff]
      %v292 = vld [vmem:[%s273 + $0x68] sm:$0xff]
      %v293 = vld [vmem:[%s273 + $0x70] sm:$0xff]
      %v294 = vld [vmem:[%s273 + $0x78] sm:$0xff]
      %v295 = vld [vmem:[%s273 + $0x80] sm:$0xff]
      %v296 = vld [vmem:[%s273 + $0x88] sm:$0xff]
      %v297 = vld [vmem:[%s273 + $0x90] sm:$0xff]
      %v298 = vld [vmem:[%s273 + $0x98] sm:$0xff]
      %v299 = vld [vmem:[%s273 + $0xa0] sm:$0xff]
      %v300 = vld [vmem:[%s273 + $0xa8] sm:$0xff]
      %v301 = vld [vmem:[%s273 + $0xb0] sm:$0xff]
      %v302 = vld [vmem:[%s273 + $0xb8] sm:$0xff]
      %v303 = vld [vmem:[%s273 + $0xc0] sm:$0xff]
      %v304 = vld [vmem:[%s273 + $0xc8] sm:$0xff]
      %v305 = vld [vmem:[%s273 + $0xd0] sm:$0xff]
      %v306 = vld [vmem:[%s273 + $0xd8] sm:$0xff]
      %v307 = vld [vmem:[%s273 + $0xe0] sm:$0xff]
      %v308 = vld [vmem:[%s273 + $0xe8] sm:$0xff]
      %v309 = vld [vmem:[%s273 + $0xf0] sm:$0xff]
      %v310 = vld [vmem:[%s273 + $0xf8] sm:$0xff]
      %v311 = vld [vmem:[%s2] sm:$0x1]
      %v313 = vlaneseq
      %v314 = vshrl.u32 %v313, 7
      %v315 = vsub.s32 0, %v314
      %v316 = vrot.slane %v311, %v315
      %v318 = vmul.f32 %v279, %v316
      %v319 = vmul.f32 %v280, %v316
      %v320 = vmul.f32 %v281, %v316
      %v321 = vmul.f32 %v282, %v316
      %v322 = vmul.f32 %v283, %v316
      %v323 = vmul.f32 %v284, %v316
      %v324 = vmul.f32 %v285, %v316
      %v325 = vmul.f32 %v286, %v316
      %v326 = vmul.f32 %v287, %v316
      %v327 = vmul.f32 %v288, %v316
      %v328 = vmul.f32 %v289, %v316
      %v329 = vmul.f32 %v290, %v316
      %v330 = vmul.f32 %v291, %v316
      %v331 = vmul.f32 %v292, %v316
      %v332 = vmul.f32 %v293, %v316
      %v333 = vmul.f32 %v294, %v316
      %v334 = vmul.f32 %v295, %v316
      %v335 = vmul.f32 %v296, %v316
      %v336 = vmul.f32 %v297, %v316
      %v337 = vmul.f32 %v298, %v316
      %v338 = vmul.f32 %v299, %v316
      %v339 = vmul.f32 %v300, %v316
      %v340 = vmul.f32 %v301, %v316
      %v341 = vmul.f32 %v302, %v316
      %v342 = vmul.f32 %v303, %v316
      %v343 = vmul.f32 %v304, %v316
      %v344 = vmul.f32 %v305, %v316
      %v345 = vmul.f32 %v306, %v316
      %v346 = vmul.f32 %v307, %v316
      %v347 = vmul.f32 %v308, %v316
      %v348 = vmul.f32 %v309, %v316
      %v349 = vmul.f32 %v310, %v316
      %v350 = vld [vmem:[%s3] sm:$0x1]
      %v352 = vlaneseq
      %v353 = vshrl.u32 %v352, 7
      %v354 = vsub.s32 0, %v353
      %v355 = vrot.slane %v350, %v354
      %v357 = vadd.f32 %v318, %v355
      %v358 = vadd.f32 %v319, %v355
      %v359 = vadd.f32 %v320, %v355
      %v360 = vadd.f32 %v321, %v355
      %v361 = vadd.f32 %v322, %v355
      %v362 = vadd.f32 %v323, %v355
      %v363 = vadd.f32 %v324, %v355
      %v364 = vadd.f32 %v325, %v355
      %v365 = vadd.f32 %v326, %v355
      %v366 = vadd.f32 %v327, %v355
      %v367 = vadd.f32 %v328, %v355
      %v368 = vadd.f32 %v329, %v355
      %v369 = vadd.f32 %v330, %v355
      %v370 = vadd.f32 %v331, %v355
      %v371 = vadd.f32 %v332, %v355
      %v372 = vadd.f32 %v333, %v355
      %v373 = vadd.f32 %v334, %v355
      %v374 = vadd.f32 %v335, %v355
      %v375 = vadd.f32 %v336, %v355
      %v376 = vadd.f32 %v337, %v355
      %v377 = vadd.f32 %v338, %v355
      %v378 = vadd.f32 %v339, %v355
      %v379 = vadd.f32 %v340, %v355
      %v380 = vadd.f32 %v341, %v355
      %v381 = vadd.f32 %v342, %v355
      %v382 = vadd.f32 %v343, %v355
      %v383 = vadd.f32 %v344, %v355
      %v384 = vadd.f32 %v345, %v355
      %v385 = vadd.f32 %v346, %v355
      %v386 = vadd.f32 %v347, %v355
      %v387 = vadd.f32 %v348, %v355
      %v388 = vadd.f32 %v349, %v355
      %v389 = vmax.f32 %v357, 0.0
      %v390 = vmax.f32 %v358, 0.0
      %v391 = vmax.f32 %v359, 0.0
      %v392 = vmax.f32 %v360, 0.0
      %v393 = vmax.f32 %v361, 0.0
      %v394 = vmax.f32 %v362, 0.0
      %v395 = vmax.f32 %v363, 0.0
      %v396 = vmax.f32 %v364, 0.0
      %v397 = vmax.f32 %v365, 0.0
      %v398 = vmax.f32 %v366, 0.0
      %v399 = vmax.f32 %v367, 0.0
      %v400 = vmax.f32 %v368, 0.0
      %v401 = vmax.f32 %v369, 0.0
      %v402 = vmax.f32 %v370, 0.0
      %v403 = vmax.f32 %v371, 0.0
      %v404 = vmax.f32 %v372, 0.0
      %v405 = vmax.f32 %v373, 0.0
      %v406 = vmax.f32 %v374, 0.0
      %v407 = vmax.f32 %v375, 0.0
      %v408 = vmax.f32 %v376, 0.0
      %v409 = vmax.f32 %v377, 0.0
      %v410 = vmax.f32 %v378, 0.0
      %v411 = vmax.f32 %v379, 0.0
      %v412 = vmax.f32 %v380, 0.0
      %v413 = vmax.f32 %v381, 0.0
      %v414 = vmax.f32 %v382, 0.0
      %v415 = vmax.f32 %v383, 0.0
      %v416 = vmax.f32 %v384, 0.0
      %v417 = vmax.f32 %v385, 0.0
      %v418 = vmax.f32 %v386, 0.0
      %v419 = vmax.f32 %v387, 0.0
      %v420 = vmax.f32 %v388, 0.0
      %v421 = vld [vmem:[%s1] sm:$0xf]
      %vm422 = vcmask 31744
      %v424 = vsel %vm422, %v389, 0
      %v427 = vsel %vm422, %v390, 0
      %v430 = vsel %vm422, %v391, 0
      %v433 = vsel %vm422, %v392, 0
      %v436 = vsel %vm422, %v393, 0
      %v439 = vsel %vm422, %v394, 0
      %v442 = vsel %vm422, %v395, 0
      %v445 = vsel %vm422, %v396, 0
      %v448 = vsel %vm422, %v397, 0
      %v451 = vsel %vm422, %v398, 0
      %v454 = vsel %vm422, %v399, 0
      %v457 = vsel %vm422, %v400, 0
      %v460 = vsel %vm422, %v401, 0
      %v463 = vsel %vm422, %v402, 0
      %v466 = vsel %vm422, %v403, 0
      %v469 = vsel %vm422, %v404, 0
      %v472 = vsel %vm422, %v405, 0
      %v475 = vsel %vm422, %v406, 0
      %v478 = vsel %vm422, %v407, 0
      %v481 = vsel %vm422, %v408, 0
      %v484 = vsel %vm422, %v409, 0
      %v487 = vsel %vm422, %v410, 0
      %v490 = vsel %vm422, %v411, 0
      %v493 = vsel %vm422, %v412, 0
      %v496 = vsel %vm422, %v413, 0
      %v499 = vsel %vm422, %v414, 0
      %v502 = vsel %vm422, %v415, 0
      %v505 = vsel %vm422, %v416, 0
      %v508 = vsel %vm422, %v417, 0
      %v511 = vsel %vm422, %v418, 0
      %v514 = vsel %vm422, %v419, 0
      %v517 = vsel %vm422, %v420, 0
      %vm519 = vcmask 1043456
      %v521 = vsel %vm519, %v421, 0
      %523 = vmatprep.subr.mxu0 0.0
      %524 = vmatpush1.msra.mxu0 %v521
      %525 = vmatprep.subr.mxu0 0.0
      %526 = vmatpush1.msra.mxu0 0.0
      %527 = vmatprep.subr.mxu0 0.0
      %528 = vmatpush1.msra.mxu0 0.0
      %529 = vmatprep.subr.mxu0 0.0
      %530 = vmatpush1.msra.mxu0 0.0
      %531 = vmatprep.subr.mxu0 0.0
      %532 = vmatpush1.msra.mxu0 0.0
      %533 = vmatprep.subr.mxu0 0.0
      %534 = vmatpush1.msra.mxu0 0.0
      %535 = vmatprep.subr.mxu0 0.0
      %536 = vmatpush1.msra.mxu0 0.0
      %537 = vmatprep.subr.mxu0 0.0
      %538 = vmatpush1.msra.mxu0 0.0
      %539 = vmatprep.subr.mxu0 0.0
      %540 = vmatpush1.msra.mxu0 0.0
      %541 = vmatprep.subr.mxu0 0.0
      %542 = vmatpush1.msra.mxu0 0.0
      %543 = vmatprep.subr.mxu0 0.0
      %544 = vmatpush1.msra.mxu0 0.0
      %545 = vmatprep.subr.mxu0 0.0
      %546 = vmatpush1.msra.mxu0 0.0
      %547 = vmatprep.subr.mxu0 0.0
      %548 = vmatpush1.msra.mxu0 0.0
      %549 = vmatprep.subr.mxu0 0.0
      %550 = vmatpush1.msra.mxu0 0.0
      %551 = vmatprep.subr.mxu0 0.0
      %552 = vmatpush1.msra.mxu0 0.0
      %553 = vmatprep.subr.mxu0 0.0
      %554 = vmatpush1.msra.mxu0 0.0
      %555 = vmatprep.subr.mxu0 0.0
      %556 = vmatpush1.msra.mxu0 0.0
      %557 = vmatprep.subr.mxu0 0.0
      %558 = vmatpush1.msra.mxu0 0.0
      %559 = vmatprep.subr.mxu0 0.0
      %560 = vmatpush1.msra.mxu0 0.0
      %561 = vmatprep.subr.mxu0 0.0
      %562 = vmatpush1.msra.mxu0 0.0
      %563 = vmatprep.subr.mxu0 0.0
      %564 = vmatpush1.msra.mxu0 0.0
      %565 = vmatprep.subr.mxu0 0.0
      %566 = vmatpush1.msra.mxu0 0.0
      %567 = vmatprep.subr.mxu0 0.0
      %568 = vmatpush1.msra.mxu0 0.0
      %569 = vmatprep.subr.mxu0 0.0
      %570 = vmatpush1.msra.mxu0 0.0
      %571 = vmatprep.subr.mxu0 0.0
      %572 = vmatpush1.msra.mxu0 0.0
      %573 = vmatprep.subr.mxu0 0.0
      %574 = vmatpush1.msra.mxu0 0.0
      %575 = vmatprep.subr.mxu0 0.0
      %576 = vmatpush1.msra.mxu0 0.0
      %577 = vmatprep.subr.mxu0 0.0
      %578 = vmatpush1.msra.mxu0 0.0
      %579 = vmatprep.subr.mxu0 0.0
      %580 = vmatpush1.msra.mxu0 0.0
      %581 = vmatprep.subr.mxu0 0.0
      %582 = vmatpush1.msra.mxu0 0.0
      %583 = vmatprep.subr.mxu0 0.0
      %584 = vmatpush1.msra.mxu0 0.0
      %585 = vmatprep.subr.mxu0 0.0
      %586 = vmatpush1.msra.mxu0 0.0
      %587 = vmatprep.mubr.f32.mxu0 0.0
      %588 = vmatmul.mubr.f32.gmra.mrb[0].mxu0 %v424
      %v589 = vpop.f32.mrb[0].mxu0
      %v590 = vadd.f32 0.0, %v589
      %v591 = vpop.f32.mrb[0].mxu0
      %592 = vmatprep.mubr.f32.mxu0 0.0
      %593 = vmatmul.mubr.f32.gmra.mrb[0].mxu0 %v427
      %v594 = vpop.f32.mrb[0].mxu0
      %v595 = vadd.f32 0.0, %v594
      %v596 = vpop.f32.mrb[0].mxu0
      %597 = vmatprep.mubr.f32.mxu0 0.0
      %598 = vmatmul.mubr.f32.gmra.mrb[0].mxu0 %v430
      %v599 = vpop.f32.mrb[0].mxu0
      %v600 = vadd.f32 0.0, %v599
      %v601 = vpop.f32.mrb[0].mxu0
      %602 = vmatprep.mubr.f32.mxu0 0.0
      %603 = vmatmul.mubr.f32.gmra.mrb[0].mxu0 %v433
      %v604 = vpop.f32.mrb[0].mxu0
      %v605 = vadd.f32 0.0, %v604
      %v606 = vpop.f32.mrb[0].mxu0
      %607 = vmatprep.mubr.f32.mxu0 0.0
      %608 = vmatmul.mubr.f32.gmra.mrb[0].mxu0 %v436
      %v609 = vpop.f32.mrb[0].mxu0
      %v610 = vadd.f32 0.0, %v609
      %v611 = vpop.f32.mrb[0].mxu0
      %612 = vmatprep.mubr.f32.mxu0 0.0
      %613 = vmatmul.mubr.f32.gmra.mrb[0].mxu0 %v439
      %v614 = vpop.f32.mrb[0].mxu0
      %v615 = vadd.f32 0.0, %v614
      %v616 = vpop.f32.mrb[0].mxu0
      %617 = vmatprep.mubr.f32.mxu0 0.0
      %618 = vmatmul.mubr.f32.gmra.mrb[0].mxu0 %v442
      %v619 = vpop.f32.mrb[0].mxu0
      %v620 = vadd.f32 0.0, %v619
      %v621 = vpop.f32.mrb[0].mxu0
      %622 = vmatprep.mubr.f32.mxu0 0.0
      %623 = vmatmul.mubr.f32.gmra.mrb[0].mxu0 %v445
      %v624 = vpop.f32.mrb[0].mxu0
      %v625 = vadd.f32 0.0, %v624
      %v626 = vpop.f32.mrb[0].mxu0
      %627 = vmatprep.mubr.f32.mxu0 0.0
      %628 = vmatmul.mubr.f32.gmra.mrb[0].mxu0 %v448
      %v629 = vpop.f32.mrb[0].mxu0
      %v630 = vadd.f32 0.0, %v629
      %v631 = vpop.f32.mrb[0].mxu0
      %632 = vmatprep.mubr.f32.mxu0 0.0
      %633 = vmatmul.mubr.f32.gmra.mrb[0].mxu0 %v451
      %v634 = vpop.f32.mrb[0].mxu0
      %v635 = vadd.f32 0.0, %v634
      %v636 = vpop.f32.mrb[0].mxu0
      %637 = vmatprep.mubr.f32.mxu0 0.0
      %638 = vmatmul.mubr.f32.gmra.mrb[0].mxu0 %v454
      %v639 = vpop.f32.mrb[0].mxu0
      %v640 = vadd.f32 0.0, %v639
      %v641 = vpop.f32.mrb[0].mxu0
      %642 = vmatprep.mubr.f32.mxu0 0.0
      %643 = vmatmul.mubr.f32.gmra.mrb[0].mxu0 %v457
      %v644 = vpop.f32.mrb[0].mxu0
      %v645 = vadd.f32 0.0, %v644
      %v646 = vpop.f32.mrb[0].mxu0
      %647 = vmatprep.mubr.f32.mxu0 0.0
      %648 = vmatmul.mubr.f32.gmra.mrb[0].mxu0 %v460
      %v649 = vpop.f32.mrb[0].mxu0
      %v650 = vadd.f32 0.0, %v649
      %v651 = vpop.f32.mrb[0].mxu0
      %652 = vmatprep.mubr.f32.mxu0 0.0
      %653 = vmatmul.mubr.f32.gmra.mrb[0].mxu0 %v463
      %v654 = vpop.f32.mrb[0].mxu0
      %v655 = vadd.f32 0.0, %v654
      %v656 = vpop.f32.mrb[0].mxu0
      %657 = vmatprep.mubr.f32.mxu0 0.0
      %658 = vmatmul.mubr.f32.gmra.mrb[0].mxu0 %v466
      %v659 = vpop.f32.mrb[0].mxu0
      %v660 = vadd.f32 0.0, %v659
      %v661 = vpop.f32.mrb[0].mxu0
      %662 = vmatprep.mubr.f32.mxu0 0.0
      %663 = vmatmul.mubr.f32.gmra.mrb[0].mxu0 %v469
      %v664 = vpop.f32.mrb[0].mxu0
      %v665 = vadd.f32 0.0, %v664
      %v666 = vpop.f32.mrb[0].mxu0
      %667 = vmatprep.mubr.f32.mxu0 0.0
      %668 = vmatmul.mubr.f32.gmra.mrb[0].mxu0 %v472
      %v669 = vpop.f32.mrb[0].mxu0
      %v670 = vadd.f32 0.0, %v669
      %v671 = vpop.f32.mrb[0].mxu0
      %672 = vmatprep.mubr.f32.mxu0 0.0
      %673 = vmatmul.mubr.f32.gmra.mrb[0].mxu0 %v475
      %v674 = vpop.f32.mrb[0].mxu0
      %v675 = vadd.f32 0.0, %v674
      %v676 = vpop.f32.mrb[0].mxu0
      %677 = vmatprep.mubr.f32.mxu0 0.0
      %678 = vmatmul.mubr.f32.gmra.mrb[0].mxu0 %v478
      %v679 = vpop.f32.mrb[0].mxu0
      %v680 = vadd.f32 0.0, %v679
      %v681 = vpop.f32.mrb[0].mxu0
      %682 = vmatprep.mubr.f32.mxu0 0.0
      %683 = vmatmul.mubr.f32.gmra.mrb[0].mxu0 %v481
      %v684 = vpop.f32.mrb[0].mxu0
      %v685 = vadd.f32 0.0, %v684
      %v686 = vpop.f32.mrb[0].mxu0
      %687 = vmatprep.mubr.f32.mxu0 0.0
      %688 = vmatmul.mubr.f32.gmra.mrb[0].mxu0 %v484
      %v689 = vpop.f32.mrb[0].mxu0
      %v690 = vadd.f32 0.0, %v689
      %v691 = vpop.f32.mrb[0].mxu0
      %692 = vmatprep.mubr.f32.mxu0 0.0
      %693 = vmatmul.mubr.f32.gmra.mrb[0].mxu0 %v487
      %v694 = vpop.f32.mrb[0].mxu0
      %v695 = vadd.f32 0.0, %v694
      %v696 = vpop.f32.mrb[0].mxu0
      %697 = vmatprep.mubr.f32.mxu0 0.0
      %698 = vmatmul.mubr.f32.gmra.mrb[0].mxu0 %v490
      %v699 = vpop.f32.mrb[0].mxu0
      %v700 = vadd.f32 0.0, %v699
      %v701 = vpop.f32.mrb[0].mxu0
      %702 = vmatprep.mubr.f32.mxu0 0.0
      %703 = vmatmul.mubr.f32.gmra.mrb[0].mxu0 %v493
      %v704 = vpop.f32.mrb[0].mxu0
      %v705 = vadd.f32 0.0, %v704
      %v706 = vpop.f32.mrb[0].mxu0
      %707 = vmatprep.mubr.f32.mxu0 0.0
      %708 = vmatmul.mubr.f32.gmra.mrb[0].mxu0 %v496
      %v709 = vpop.f32.mrb[0].mxu0
      %v710 = vadd.f32 0.0, %v709
      %v711 = vpop.f32.mrb[0].mxu0
      %712 = vmatprep.mubr.f32.mxu0 0.0
      %713 = vmatmul.mubr.f32.gmra.mrb[0].mxu0 %v499
      %v714 = vpop.f32.mrb[0].mxu0
      %v715 = vadd.f32 0.0, %v714
      %v716 = vpop.f32.mrb[0].mxu0
      %717 = vmatprep.mubr.f32.mxu0 0.0
      %718 = vmatmul.mubr.f32.gmra.mrb[0].mxu0 %v502
      %v719 = vpop.f32.mrb[0].mxu0
      %v720 = vadd.f32 0.0, %v719
      %v721 = vpop.f32.mrb[0].mxu0
      %722 = vmatprep.mubr.f32.mxu0 0.0
      %723 = vmatmul.mubr.f32.gmra.mrb[0].mxu0 %v505
      %v724 = vpop.f32.mrb[0].mxu0
      %v725 = vadd.f32 0.0, %v724
      %v726 = vpop.f32.mrb[0].mxu0
      %727 = vmatprep.mubr.f32.mxu0 0.0
      %728 = vmatmul.mubr.f32.gmra.mrb[0].mxu0 %v508
      %v729 = vpop.f32.mrb[0].mxu0
      %v730 = vadd.f32 0.0, %v729
      %v731 = vpop.f32.mrb[0].mxu0
      %732 = vmatprep.mubr.f32.mxu0 0.0
      %733 = vmatmul.mubr.f32.gmra.mrb[0].mxu0 %v511
      %v734 = vpop.f32.mrb[0].mxu0
      %v735 = vadd.f32 0.0, %v734
      %v736 = vpop.f32.mrb[0].mxu0
      %737 = vmatprep.mubr.f32.mxu0 0.0
      %738 = vmatmul.mubr.f32.gmra.mrb[0].mxu0 %v514
      %v739 = vpop.f32.mrb[0].mxu0
      %v740 = vadd.f32 0.0, %v739
      %v741 = vpop.f32.mrb[0].mxu0
      %742 = vmatprep.mubr.f32.mxu0 0.0
      %743 = vmatmul.mubr.f32.gmra.mrb[0].mxu0 %v517
      %v744 = vpop.f32.mrb[0].mxu0
      %v745 = vadd.f32 0.0, %v744
      %v746 = vpop.f32.mrb[0].mxu0
      %747 = vdwg.mxu0
      %v748 = vld [vmem:[%s5] sm:$0x1]
      %v750 = vlaneseq
      %v751 = vshrl.u32 %v750, 7
      %v752 = vsub.s32 0, %v751
      %v753 = vrot.slane %v748, %v752
      %v755 = vmul.f32 %v590, %v753
      %v756 = vmul.f32 %v595, %v753
      %v757 = vmul.f32 %v600, %v753
      %v758 = vmul.f32 %v605, %v753
      %v759 = vmul.f32 %v610, %v753
      %v760 = vmul.f32 %v615, %v753
      %v761 = vmul.f32 %v620, %v753
      %v762 = vmul.f32 %v625, %v753
      %v763 = vmul.f32 %v630, %v753
      %v764 = vmul.f32 %v635, %v753
      %v765 = vmul.f32 %v640, %v753
      %v766 = vmul.f32 %v645, %v753
      %v767 = vmul.f32 %v650, %v753
      %v768 = vmul.f32 %v655, %v753
      %v769 = vmul.f32 %v660, %v753
      %v770 = vmul.f32 %v665, %v753
      %v771 = vmul.f32 %v670, %v753
      %v772 = vmul.f32 %v675, %v753
      %v773 = vmul.f32 %v680, %v753
      %v774 = vmul.f32 %v685, %v753
      %v775 = vmul.f32 %v690, %v753
      %v776 = vmul.f32 %v695, %v753
      %v777 = vmul.f32 %v700, %v753
      %v778 = vmul.f32 %v705, %v753
      %v779 = vmul.f32 %v710, %v753
      %v780 = vmul.f32 %v715, %v753
      %v781 = vmul.f32 %v720, %v753
      %v782 = vmul.f32 %v725, %v753
      %v783 = vmul.f32 %v730, %v753
      %v784 = vmul.f32 %v735, %v753
      %v785 = vmul.f32 %v740, %v753
      %v786 = vmul.f32 %v745, %v753
      %v787 = vld [vmem:[%s6] sm:$0x1]
      %v789 = vlaneseq
      %v790 = vshrl.u32 %v789, 7
      %v791 = vsub.s32 0, %v790
      %v792 = vrot.slane %v787, %v791
      %v794 = vadd.f32 %v755, %v792
      %v795 = vadd.f32 %v756, %v792
      %v796 = vadd.f32 %v757, %v792
      %v797 = vadd.f32 %v758, %v792
      %v798 = vadd.f32 %v759, %v792
      %v799 = vadd.f32 %v760, %v792
      %v800 = vadd.f32 %v761, %v792
      %v801 = vadd.f32 %v762, %v792
      %v802 = vadd.f32 %v763, %v792
      %v803 = vadd.f32 %v764, %v792
      %v804 = vadd.f32 %v765, %v792
      %v805 = vadd.f32 %v766, %v792
      %v806 = vadd.f32 %v767, %v792
      %v807 = vadd.f32 %v768, %v792
      %v808 = vadd.f32 %v769, %v792
      %v809 = vadd.f32 %v770, %v792
      %v810 = vadd.f32 %v771, %v792
      %v811 = vadd.f32 %v772, %v792
      %v812 = vadd.f32 %v773, %v792
      %v813 = vadd.f32 %v774, %v792
      %v814 = vadd.f32 %v775, %v792
      %v815 = vadd.f32 %v776, %v792
      %v816 = vadd.f32 %v777, %v792
      %v817 = vadd.f32 %v778, %v792
      %v818 = vadd.f32 %v779, %v792
      %v819 = vadd.f32 %v780, %v792
      %v820 = vadd.f32 %v781, %v792
      %v821 = vadd.f32 %v782, %v792
      %v822 = vadd.f32 %v783, %v792
      %v823 = vadd.f32 %v784, %v792
      %v824 = vadd.f32 %v785, %v792
      %v825 = vadd.f32 %v786, %v792
      %v826 = vmax.f32 %v794, 0.0
      %v827 = vmax.f32 %v795, 0.0
      %v828 = vmax.f32 %v796, 0.0
      %v829 = vmax.f32 %v797, 0.0
      %v830 = vmax.f32 %v798, 0.0
      %v831 = vmax.f32 %v799, 0.0
      %v832 = vmax.f32 %v800, 0.0
      %v833 = vmax.f32 %v801, 0.0
      %v834 = vmax.f32 %v802, 0.0
      %v835 = vmax.f32 %v803, 0.0
      %v836 = vmax.f32 %v804, 0.0
      %v837 = vmax.f32 %v805, 0.0
      %v838 = vmax.f32 %v806, 0.0
      %v839 = vmax.f32 %v807, 0.0
      %v840 = vmax.f32 %v808, 0.0
      %v841 = vmax.f32 %v809, 0.0
      %v842 = vmax.f32 %v810, 0.0
      %v843 = vmax.f32 %v811, 0.0
      %v844 = vmax.f32 %v812, 0.0
      %v845 = vmax.f32 %v813, 0.0
      %v846 = vmax.f32 %v814, 0.0
      %v847 = vmax.f32 %v815, 0.0
      %v848 = vmax.f32 %v816, 0.0
      %v849 = vmax.f32 %v817, 0.0
      %v850 = vmax.f32 %v818, 0.0
      %v851 = vmax.f32 %v819, 0.0
      %v852 = vmax.f32 %v820, 0.0
      %v853 = vmax.f32 %v821, 0.0
      %v854 = vmax.f32 %v822, 0.0
      %v855 = vmax.f32 %v823, 0.0
      %v856 = vmax.f32 %v824, 0.0
      %v857 = vmax.f32 %v825, 0.0
      %vm858 = vcmask 261120
      %859 = vst.msk [vmem:[#allocation2] sm:$0xff] %vm858, 0.0
      %860 = vst.msk [vmem:[#allocation2 + $0x8] sm:$0xff] %vm858, 0.0
      %vm861 = vcmask 254976
      %862 = vst.msk [vmem:[#allocation2 + $0x10] sm:$0x3] %vm861, 0.0
      %s863 = scalar_lea.vmem [#allocation2], 408
      %864 = vst.msk [vmem:[%s863] sm:$0xff] %vm858, 0.0
      %865 = vst.msk [vmem:[%s863 + $0x8] sm:$0xff] %vm858, 0.0
      %866 = vst.msk [vmem:[%s863 + $0x10] sm:$0x3] %vm861, 0.0
      %vm867 = vcmask 253952
      %868 = vst.msk [vmem:[#allocation2] sm:$0x1] %vm867, 0.0
      %869 = vst.msk [vmem:[#allocation2 + $0x18] sm:$0x1] %vm867, 0.0
      %870 = vst.msk [vmem:[#allocation2 + $0x30] sm:$0x1] %vm867, 0.0
      %871 = vst.msk [vmem:[#allocation2 + $0x48] sm:$0x1] %vm867, 0.0
      %872 = vst.msk [vmem:[#allocation2 + $0x60] sm:$0x1] %vm867, 0.0
      %873 = vst.msk [vmem:[#allocation2 + $0x78] sm:$0x1] %vm867, 0.0
      %874 = vst.msk [vmem:[#allocation2 + $0x90] sm:$0x1] %vm867, 0.0
      %875 = vst.msk [vmem:[#allocation2 + $0xa8] sm:$0x1] %vm867, 0.0
      %876 = vst.msk [vmem:[#allocation2 + $0xc0] sm:$0x1] %vm867, 0.0
      %877 = vst.msk [vmem:[#allocation2 + $0xd8] sm:$0x1] %vm867, 0.0
      %878 = vst.msk [vmem:[#allocation2 + $0xf0] sm:$0x1] %vm867, 0.0
      %879 = vst.msk [vmem:[#allocation2 + $0x108] sm:$0x1] %vm867, 0.0
      %880 = vst.msk [vmem:[#allocation2 + $0x120] sm:$0x1] %vm867, 0.0
      %881 = vst.msk [vmem:[#allocation2 + $0x138] sm:$0x1] %vm867, 0.0
      %882 = vst.msk [vmem:[#allocation2 + $0x150] sm:$0x1] %vm867, 0.0
      %883 = vst.msk [vmem:[#allocation2 + $0x168] sm:$0x1] %vm867, 0.0
      %884 = vst.msk [vmem:[#allocation2 + $0x180] sm:$0x1] %vm867, 0.0
      %885 = vst.msk [vmem:[#allocation2 + $0x198] sm:$0x1] %vm867, 0.0
      %886 = vst.msk [vmem:[#allocation2 + $0x11] sm:$0x1] %vm867, 0.0
      %887 = vst.msk [vmem:[#allocation2 + $0x29] sm:$0x1] %vm867, 0.0
      %888 = vst.msk [vmem:[#allocation2 + $0x41] sm:$0x1] %vm867, 0.0
      %889 = vst.msk [vmem:[#allocation2 + $0x59] sm:$0x1] %vm867, 0.0
      %890 = vst.msk [vmem:[#allocation2 + $0x71] sm:$0x1] %vm867, 0.0
      %891 = vst.msk [vmem:[#allocation2 + $0x89] sm:$0x1] %vm867, 0.0
      %892 = vst.msk [vmem:[#allocation2 + $0xa1] sm:$0x1] %vm867, 0.0
      %893 = vst.msk [vmem:[#allocation2 + $0xb9] sm:$0x1] %vm867, 0.0
      %894 = vst.msk [vmem:[#allocation2 + $0xd1] sm:$0x1] %vm867, 0.0
      %895 = vst.msk [vmem:[#allocation2 + $0xe9] sm:$0x1] %vm867, 0.0
      %896 = vst.msk [vmem:[#allocation2 + $0x101] sm:$0x1] %vm867, 0.0
      %897 = vst.msk [vmem:[#allocation2 + $0x119] sm:$0x1] %vm867, 0.0
      %898 = vst.msk [vmem:[#allocation2 + $0x131] sm:$0x1] %vm867, 0.0
      %899 = vst.msk [vmem:[#allocation2 + $0x149] sm:$0x1] %vm867, 0.0
      %900 = vst.msk [vmem:[#allocation2 + $0x161] sm:$0x1] %vm867, 0.0
      %901 = vst.msk [vmem:[#allocation2 + $0x179] sm:$0x1] %vm867, 0.0
      %902 = vst.msk [vmem:[#allocation2 + $0x191] sm:$0x1] %vm867, 0.0
      %903 = vst.msk [vmem:[#allocation2 + $0x1a9] sm:$0x1] %vm867, 0.0
      %s904 = scalar_lea.vmem [#allocation2], 24
      %905 = vst.msk [vmem:[%s904 + $0x1] sm:$0xff] %vm858, %v826
      %906 = vst.msk [vmem:[%s904 + $0x9] sm:$0xff] %vm858, %v827
      %907 = vst.msk [vmem:[%s904 + $0x19] sm:$0xff] %vm858, %v828
      %908 = vst.msk [vmem:[%s904 + $0x21] sm:$0xff] %vm858, %v829
      %909 = vst.msk [vmem:[%s904 + $0x31] sm:$0xff] %vm858, %v830
      %910 = vst.msk [vmem:[%s904 + $0x39] sm:$0xff] %vm858, %v831
      %911 = vst.msk [vmem:[%s904 + $0x49] sm:$0xff] %vm858, %v832
      %912 = vst.msk [vmem:[%s904 + $0x51] sm:$0xff] %vm858, %v833
      %913 = vst.msk [vmem:[%s904 + $0x61] sm:$0xff] %vm858, %v834
      %914 = vst.msk [vmem:[%s904 + $0x69] sm:$0xff] %vm858, %v835
      %915 = vst.msk [vmem:[%s904 + $0x79] sm:$0xff] %vm858, %v836
      %916 = vst.msk [vmem:[%s904 + $0x81] sm:$0xff] %vm858, %v837
      %917 = vst.msk [vmem:[%s904 + $0x91] sm:$0xff] %vm858, %v838
      %918 = vst.msk [vmem:[%s904 + $0x99] sm:$0xff] %vm858, %v839
      %919 = vst.msk [vmem:[%s904 + $0xa9] sm:$0xff] %vm858, %v840
      %920 = vst.msk [vmem:[%s904 + $0xb1] sm:$0xff] %vm858, %v841
      %921 = vst.msk [vmem:[%s904 + $0xc1] sm:$0xff] %vm858, %v842
      %922 = vst.msk [vmem:[%s904 + $0xc9] sm:$0xff] %vm858, %v843
      %923 = vst.msk [vmem:[%s904 + $0xd9] sm:$0xff] %vm858, %v844
      %924 = vst.msk [vmem:[%s904 + $0xe1] sm:$0xff] %vm858, %v845
      %925 = vst.msk [vmem:[%s904 + $0xf1] sm:$0xff] %vm858, %v846
      %926 = vst.msk [vmem:[%s904 + $0xf9] sm:$0xff] %vm858, %v847
      %927 = vst.msk [vmem:[%s904 + $0x109] sm:$0xff] %vm858, %v848
      %928 = vst.msk [vmem:[%s904 + $0x111] sm:$0xff] %vm858, %v849
      %929 = vst.msk [vmem:[%s904 + $0x121] sm:$0xff] %vm858, %v850
      %930 = vst.msk [vmem:[%s904 + $0x129] sm:$0xff] %vm858, %v851
      %931 = vst.msk [vmem:[%s904 + $0x139] sm:$0xff] %vm858, %v852
      %932 = vst.msk [vmem:[%s904 + $0x141] sm:$0xff] %vm858, %v853
      %933 = vst.msk [vmem:[%s904 + $0x151] sm:$0xff] %vm858, %v854
      %934 = vst.msk [vmem:[%s904 + $0x159] sm:$0xff] %vm858, %v855
      %935 = vst.msk [vmem:[%s904 + $0x169] sm:$0xff] %vm858, %v856
      %936 = vst.msk [vmem:[%s904 + $0x171] sm:$0xff] %vm858, %v857
      %v937 = vld [vmem:[#allocation2] sm:$0xff]
      %v938 = vld [vmem:[#allocation2 + $0x8] sm:$0xff]
      %v939 = vld [vmem:[#allocation2 + $0x18] sm:$0xff]
      %v940 = vld [vmem:[#allocation2 + $0x20] sm:$0xff]
      %v941 = vld [vmem:[#allocation2 + $0x30] sm:$0xff]
      %v942 = vld [vmem:[#allocation2 + $0x38] sm:$0xff]
      %v943 = vld [vmem:[#allocation2 + $0x48] sm:$0xff]
      %v944 = vld [vmem:[#allocation2 + $0x50] sm:$0xff]
      %v945 = vld [vmem:[#allocation2 + $0x60] sm:$0xff]
      %v946 = vld [vmem:[#allocation2 + $0x68] sm:$0xff]
      %v947 = vld [vmem:[#allocation2 + $0x78] sm:$0xff]
      %v948 = vld [vmem:[#allocation2 + $0x80] sm:$0xff]
      %v949 = vld [vmem:[#allocation2 + $0x90] sm:$0xff]
      %v950 = vld [vmem:[#allocation2 + $0x98] sm:$0xff]
      %v951 = vld [vmem:[#allocation2 + $0xa8] sm:$0xff]
      %v952 = vld [vmem:[#allocation2 + $0xb0] sm:$0xff]
      %v953 = vld [vmem:[#allocation2 + $0xc0] sm:$0xff]
      %v954 = vld [vmem:[#allocation2 + $0xc8] sm:$0xff]
      %v955 = vld [vmem:[#allocation2 + $0xd8] sm:$0xff]
      %v956 = vld [vmem:[#allocation2 + $0xe0] sm:$0xff]
      %v957 = vld [vmem:[#allocation2 + $0xf0] sm:$0xff]
      %v958 = vld [vmem:[#allocation2 + $0xf8] sm:$0xff]
      %v959 = vld [vmem:[#allocation2 + $0x108] sm:$0xff]
      %v960 = vld [vmem:[#allocation2 + $0x110] sm:$0xff]
      %v961 = vld [vmem:[#allocation2 + $0x120] sm:$0xff]
      %v962 = vld [vmem:[#allocation2 + $0x128] sm:$0xff]
      %v963 = vld [vmem:[#allocation2 + $0x138] sm:$0xff]
      %v964 = vld [vmem:[#allocation2 + $0x140] sm:$0xff]
      %v965 = vld [vmem:[#allocation2 + $0x150] sm:$0xff]
      %v966 = vld [vmem:[#allocation2 + $0x158] sm:$0xff]
      %v967 = vld [vmem:[#allocation2 + $0x168] sm:$0xff]
      %v968 = vld [vmem:[#allocation2 + $0x170] sm:$0xff]
      %969 = vst.msk [vmem:[#allocation3] sm:$0xff] %vm858, %v937
      %970 = vst.msk [vmem:[#allocation3 + $0x18] sm:$0xff] %vm858, %v938
      %971 = vst.msk [vmem:[#allocation3 + $0x30] sm:$0xff] %vm858, %v939
      %972 = vst.msk [vmem:[#allocation3 + $0x48] sm:$0xff] %vm858, %v940
      %973 = vst.msk [vmem:[#allocation3 + $0x60] sm:$0xff] %vm858, %v941
      %974 = vst.msk [vmem:[#allocation3 + $0x78] sm:$0xff] %vm858, %v942
      %975 = vst.msk [vmem:[#allocation3 + $0x90] sm:$0xff] %vm858, %v943
      %976 = vst.msk [vmem:[#allocation3 + $0xa8] sm:$0xff] %vm858, %v944
      %977 = vst.msk [vmem:[#allocation3 + $0xc0] sm:$0xff] %vm858, %v945
      %978 = vst.msk [vmem:[#allocation3 + $0xd8] sm:$0xff] %vm858, %v946
      %979 = vst.msk [vmem:[#allocation3 + $0xf0] sm:$0xff] %vm858, %v947
      %980 = vst.msk [vmem:[#allocation3 + $0x108] sm:$0xff] %vm858, %v948
      %981 = vst.msk [vmem:[#allocation3 + $0x120] sm:$0xff] %vm858, %v949
      %982 = vst.msk [vmem:[#allocation3 + $0x138] sm:$0xff] %vm858, %v950
      %983 = vst.msk [vmem:[#allocation3 + $0x150] sm:$0xff] %vm858, %v951
      %984 = vst.msk [vmem:[#allocation3 + $0x168] sm:$0xff] %vm858, %v952
      %985 = vst.msk [vmem:[#allocation3 + $0x180] sm:$0xff] %vm858, %v953
      %986 = vst.msk [vmem:[#allocation3 + $0x198] sm:$0xff] %vm858, %v954
      %987 = vst.msk [vmem:[#allocation3 + $0x1b0] sm:$0xff] %vm858, %v955
      %988 = vst.msk [vmem:[#allocation3 + $0x1c8] sm:$0xff] %vm858, %v956
      %989 = vst.msk [vmem:[#allocation3 + $0x1e0] sm:$0xff] %vm858, %v957
      %990 = vst.msk [vmem:[#allocation3 + $0x1f8] sm:$0xff] %vm858, %v958
      %991 = vst.msk [vmem:[#allocation3 + $0x210] sm:$0xff] %vm858, %v959
      %992 = vst.msk [vmem:[#allocation3 + $0x228] sm:$0xff] %vm858, %v960
      %993 = vst.msk [vmem:[#allocation3 + $0x240] sm:$0xff] %vm858, %v961
      %994 = vst.msk [vmem:[#allocation3 + $0x258] sm:$0xff] %vm858, %v962
      %995 = vst.msk [vmem:[#allocation3 + $0x270] sm:$0xff] %vm858, %v963
      %996 = vst.msk [vmem:[#allocation3 + $0x288] sm:$0xff] %vm858, %v964
      %997 = vst.msk [vmem:[#allocation3 + $0x2a0] sm:$0xff] %vm858, %v965
      %998 = vst.msk [vmem:[#allocation3 + $0x2b8] sm:$0xff] %vm858, %v966
      %999 = vst.msk [vmem:[#allocation3 + $0x2d0] sm:$0xff] %vm858, %v967
      %1000 = vst.msk [vmem:[#allocation3 + $0x2e8] sm:$0xff] %vm858, %v968
      %v1001 = vld [vmem:[#allocation2 + $0x1] sm:$0xff]
      %v1002 = vld [vmem:[#allocation2 + $0x9] sm:$0xff]
      %v1003 = vld [vmem:[#allocation2 + $0x19] sm:$0xff]
      %v1004 = vld [vmem:[#allocation2 + $0x21] sm:$0xff]
      %v1005 = vld [vmem:[#allocation2 + $0x31] sm:$0xff]
      %v1006 = vld [vmem:[#allocation2 + $0x39] sm:$0xff]
      %v1007 = vld [vmem:[#allocation2 + $0x49] sm:$0xff]
      %v1008 = vld [vmem:[#allocation2 + $0x51] sm:$0xff]
      %v1009 = vld [vmem:[#allocation2 + $0x61] sm:$0xff]
      %v1010 = vld [vmem:[#allocation2 + $0x69] sm:$0xff]
      %v1011 = vld [vmem:[#allocation2 + $0x79] sm:$0xff]
      %v1012 = vld [vmem:[#allocation2 + $0x81] sm:$0xff]
      %v1013 = vld [vmem:[#allocation2 + $0x91] sm:$0xff]
      %v1014 = vld [vmem:[#allocation2 + $0x99] sm:$0xff]
      %v1015 = vld [vmem:[#allocation2 + $0xa9] sm:$0xff]
      %v1016 = vld [vmem:[#allocation2 + $0xb1] sm:$0xff]
      %v1017 = vld [vmem:[#allocation2 + $0xc1] sm:$0xff]
      %v1018 = vld [vmem:[#allocation2 + $0xc9] sm:$0xff]
      %v1019 = vld [vmem:[#allocation2 + $0xd9] sm:$0xff]
      %v1020 = vld [vmem:[#allocation2 + $0xe1] sm:$0xff]
      %v1021 = vld [vmem:[#allocation2 + $0xf1] sm:$0xff]
      %v1022 = vld [vmem:[#allocation2 + $0xf9] sm:$0xff]
      %v1023 = vld [vmem:[#allocation2 + $0x109] sm:$0xff]
      %v1024 = vld [vmem:[#allocation2 + $0x111] sm:$0xff]
      %v1025 = vld [vmem:[#allocation2 + $0x121] sm:$0xff]
      %v1026 = vld [vmem:[#allocation2 + $0x129] sm:$0xff]
      %v1027 = vld [vmem:[#allocation2 + $0x139] sm:$0xff]
      %v1028 = vld [vmem:[#allocation2 + $0x141] sm:$0xff]
      %v1029 = vld [vmem:[#allocation2 + $0x151] sm:$0xff]
      %v1030 = vld [vmem:[#allocation2 + $0x159] sm:$0xff]
      %v1031 = vld [vmem:[#allocation2 + $0x169] sm:$0xff]
      %v1032 = vld [vmem:[#allocation2 + $0x171] sm:$0xff]
      %1065 = vrot.lane.b32.xlu0 %v1001, 32
      %v1066 = vpop.permute.xlu0 %1065
      %1067 = vrot.lane.b32.xlu0 %v1002, 32
      %v1068 = vpop.permute.xlu0 %1067
      %1069 = vrot.lane.b32.xlu0 %v1003, 32
      %v1070 = vpop.permute.xlu0 %1069
      %1071 = vrot.lane.b32.xlu0 %v1004, 32
      %v1072 = vpop.permute.xlu0 %1071
      %1073 = vrot.lane.b32.xlu0 %v1005, 32
      %v1074 = vpop.permute.xlu0 %1073
      %1075 = vrot.lane.b32.xlu0 %v1006, 32
      %v1076 = vpop.permute.xlu0 %1075
      %1077 = vrot.lane.b32.xlu0 %v1007, 32
      %v1078 = vpop.permute.xlu0 %1077
      %1079 = vrot.lane.b32.xlu0 %v1008, 32
      %v1080 = vpop.permute.xlu0 %1079
      %1081 = vrot.lane.b32.xlu0 %v1009, 32
      %v1082 = vpop.permute.xlu0 %1081
      %1083 = vrot.lane.b32.xlu0 %v1010, 32
      %v1084 = vpop.permute.xlu0 %1083
      %1085 = vrot.lane.b32.xlu0 %v1011, 32
      %v1086 = vpop.permute.xlu0 %1085
      %1087 = vrot.lane.b32.xlu0 %v1012, 32
      %v1088 = vpop.permute.xlu0 %1087
      %1089 = vrot.lane.b32.xlu0 %v1013, 32
      %v1090 = vpop.permute.xlu0 %1089
      %1091 = vrot.lane.b32.xlu0 %v1014, 32
      %v1092 = vpop.permute.xlu0 %1091
      %1093 = vrot.lane.b32.xlu0 %v1015, 32
      %v1094 = vpop.permute.xlu0 %1093
      %1095 = vrot.lane.b32.xlu0 %v1016, 32
      %v1096 = vpop.permute.xlu0 %1095
      %1097 = vrot.lane.b32.xlu0 %v1017, 32
      %v1098 = vpop.permute.xlu0 %1097
      %1099 = vrot.lane.b32.xlu0 %v1018, 32
      %v1100 = vpop.permute.xlu0 %1099
      %1101 = vrot.lane.b32.xlu0 %v1019, 32
      %v1102 = vpop.permute.xlu0 %1101
      %1103 = vrot.lane.b32.xlu0 %v1020, 32
      %v1104 = vpop.permute.xlu0 %1103
      %1105 = vrot.lane.b32.xlu0 %v1021, 32
      %v1106 = vpop.permute.xlu0 %1105
      %1107 = vrot.lane.b32.xlu0 %v1022, 32
      %v1108 = vpop.permute.xlu0 %1107
      %1109 = vrot.lane.b32.xlu0 %v1023, 32
      %v1110 = vpop.permute.xlu0 %1109
      %1111 = vrot.lane.b32.xlu0 %v1024, 32
      %v1112 = vpop.permute.xlu0 %1111
      %1113 = vrot.lane.b32.xlu0 %v1025, 32
      %v1114 = vpop.permute.xlu0 %1113
      %1115 = vrot.lane.b32.xlu0 %v1026, 32
      %v1116 = vpop.permute.xlu0 %1115
      %1117 = vrot.lane.b32.xlu0 %v1027, 32
      %v1118 = vpop.permute.xlu0 %1117
      %1119 = vrot.lane.b32.xlu0 %v1028, 32
      %v1120 = vpop.permute.xlu0 %1119
      %1121 = vrot.lane.b32.xlu0 %v1029, 32
      %v1122 = vpop.permute.xlu0 %1121
      %1123 = vrot.lane.b32.xlu0 %v1030, 32
      %v1124 = vpop.permute.xlu0 %1123
      %1125 = vrot.lane.b32.xlu0 %v1031, 32
      %v1126 = vpop.permute.xlu0 %1125
      %1127 = vrot.lane.b32.xlu0 %v1032, 32
      %v1128 = vpop.permute.xlu0 %1127
      %vm1161 = vcmask 523520
      %1162 = vst.msk [vmem:[#allocation3] sm:$0xff] %vm1161, %v1066
      %1163 = vst.msk [vmem:[#allocation3 + $0x18] sm:$0xff] %vm1161, %v1068
      %1164 = vst.msk [vmem:[#allocation3 + $0x30] sm:$0xff] %vm1161, %v1070
      %1165 = vst.msk [vmem:[#allocation3 + $0x48] sm:$0xff] %vm1161, %v1072
      %1166 = vst.msk [vmem:[#allocation3 + $0x60] sm:$0xff] %vm1161, %v1074
      %1167 = vst.msk [vmem:[#allocation3 + $0x78] sm:$0xff] %vm1161, %v1076
      %1168 = vst.msk [vmem:[#allocation3 + $0x90] sm:$0xff] %vm1161, %v1078
      %1169 = vst.msk [vmem:[#allocation3 + $0xa8] sm:$0xff] %vm1161, %v1080
      %1170 = vst.msk [vmem:[#allocation3 + $0xc0] sm:$0xff] %vm1161, %v1082
      %1171 = vst.msk [vmem:[#allocation3 + $0xd8] sm:$0xff] %vm1161, %v1084
      %1172 = vst.msk [vmem:[#allocation3 + $0xf0] sm:$0xff] %vm1161, %v1086
      %1173 = vst.msk [vmem:[#allocation3 + $0x108] sm:$0xff] %vm1161, %v1088
      %1174 = vst.msk [vmem:[#allocation3 + $0x120] sm:$0xff] %vm1161, %v1090
      %1175 = vst.msk [vmem:[#allocation3 + $0x138] sm:$0xff] %vm1161, %v1092
      %1176 = vst.msk [vmem:[#allocation3 + $0x150] sm:$0xff] %vm1161, %v1094
      %1177 = vst.msk [vmem:[#allocation3 + $0x168] sm:$0xff] %vm1161, %v1096
      %1178 = vst.msk [vmem:[#allocation3 + $0x180] sm:$0xff] %vm1161, %v1098
      %1179 = vst.msk [vmem:[#allocation3 + $0x198] sm:$0xff] %vm1161, %v1100
      %1180 = vst.msk [vmem:[#allocation3 + $0x1b0] sm:$0xff] %vm1161, %v1102
      %1181 = vst.msk [vmem:[#allocation3 + $0x1c8] sm:$0xff] %vm1161, %v1104
      %1182 = vst.msk [vmem:[#allocation3 + $0x1e0] sm:$0xff] %vm1161, %v1106
      %1183 = vst.msk [vmem:[#allocation3 + $0x1f8] sm:$0xff] %vm1161, %v1108
      %1184 = vst.msk [vmem:[#allocation3 + $0x210] sm:$0xff] %vm1161, %v1110
      %1185 = vst.msk [vmem:[#allocation3 + $0x228] sm:$0xff] %vm1161, %v1112
      %1186 = vst.msk [vmem:[#allocation3 + $0x240] sm:$0xff] %vm1161, %v1114
      %1187 = vst.msk [vmem:[#allocation3 + $0x258] sm:$0xff] %vm1161, %v1116
      %1188 = vst.msk [vmem:[#allocation3 + $0x270] sm:$0xff] %vm1161, %v1118
      %1189 = vst.msk [vmem:[#allocation3 + $0x288] sm:$0xff] %vm1161, %v1120
      %1190 = vst.msk [vmem:[#allocation3 + $0x2a0] sm:$0xff] %vm1161, %v1122
      %1191 = vst.msk [vmem:[#allocation3 + $0x2b8] sm:$0xff] %vm1161, %v1124
      %1192 = vst.msk [vmem:[#allocation3 + $0x2d0] sm:$0xff] %vm1161, %v1126
      %1193 = vst.msk [vmem:[#allocation3 + $0x2e8] sm:$0xff] %vm1161, %v1128
      %v1194 = vld [vmem:[#allocation2 + $0x2] sm:$0xff]
      %v1195 = vld [vmem:[#allocation2 + $0xa] sm:$0xff]
      %v1196 = vld [vmem:[#allocation2 + $0x1a] sm:$0xff]
      %v1197 = vld [vmem:[#allocation2 + $0x22] sm:$0xff]
      %v1198 = vld [vmem:[#allocation2 + $0x32] sm:$0xff]
      %v1199 = vld [vmem:[#allocation2 + $0x3a] sm:$0xff]
      %v1200 = vld [vmem:[#allocation2 + $0x4a] sm:$0xff]
      %v1201 = vld [vmem:[#allocation2 + $0x52] sm:$0xff]
      %v1202 = vld [vmem:[#allocation2 + $0x62] sm:$0xff]
      %v1203 = vld [vmem:[#allocation2 + $0x6a] sm:$0xff]
      %v1204 = vld [vmem:[#allocation2 + $0x7a] sm:$0xff]
      %v1205 = vld [vmem:[#allocation2 + $0x82] sm:$0xff]
      %v1206 = vld [vmem:[#allocation2 + $0x92] sm:$0xff]
      %v1207 = vld [vmem:[#allocation2 + $0x9a] sm:$0xff]
      %v1208 = vld [vmem:[#allocation2 + $0xaa] sm:$0xff]
      %v1209 = vld [vmem:[#allocation2 + $0xb2] sm:$0xff]
      %v1210 = vld [vmem:[#allocation2 + $0xc2] sm:$0xff]
      %v1211 = vld [vmem:[#allocation2 + $0xca] sm:$0xff]
      %v1212 = vld [vmem:[#allocation2 + $0xda] sm:$0xff]
      %v1213 = vld [vmem:[#allocation2 + $0xe2] sm:$0xff]
      %v1214 = vld [vmem:[#allocation2 + $0xf2] sm:$0xff]
      %v1215 = vld [vmem:[#allocation2 + $0xfa] sm:$0xff]
      %v1216 = vld [vmem:[#allocation2 + $0x10a] sm:$0xff]
      %v1217 = vld [vmem:[#allocation2 + $0x112] sm:$0xff]
      %v1218 = vld [vmem:[#allocation2 + $0x122] sm:$0xff]
      %v1219 = vld [vmem:[#allocation2 + $0x12a] sm:$0xff]
      %v1220 = vld [vmem:[#allocation2 + $0x13a] sm:$0xff]
      %v1221 = vld [vmem:[#allocation2 + $0x142] sm:$0xff]
      %v1222 = vld [vmem:[#allocation2 + $0x152] sm:$0xff]
      %v1223 = vld [vmem:[#allocation2 + $0x15a] sm:$0xff]
      %v1224 = vld [vmem:[#allocation2 + $0x16a] sm:$0xff]
      %v1225 = vld [vmem:[#allocation2 + $0x172] sm:$0xff]
      %1258 = vrot.lane.b32.xlu0 %v1194, 64
      %v1259 = vpop.permute.xlu0 %1258
      %1260 = vrot.lane.b32.xlu0 %v1195, 64
      %v1261 = vpop.permute.xlu0 %1260
      %1262 = vrot.lane.b32.xlu0 %v1196, 64
      %v1263 = vpop.permute.xlu0 %1262
      %1264 = vrot.lane.b32.xlu0 %v1197, 64
      %v1265 = vpop.permute.xlu0 %1264
      %1266 = vrot.lane.b32.xlu0 %v1198, 64
      %v1267 = vpop.permute.xlu0 %1266
      %1268 = vrot.lane.b32.xlu0 %v1199, 64
      %v1269 = vpop.permute.xlu0 %1268
      %1270 = vrot.lane.b32.xlu0 %v1200, 64
      %v1271 = vpop.permute.xlu0 %1270
      %1272 = vrot.lane.b32.xlu0 %v1201, 64
      %v1273 = vpop.permute.xlu0 %1272
      %1274 = vrot.lane.b32.xlu0 %v1202, 64
      %v1275 = vpop.permute.xlu0 %1274
      %1276 = vrot.lane.b32.xlu0 %v1203, 64
      %v1277 = vpop.permute.xlu0 %1276
      %1278 = vrot.lane.b32.xlu0 %v1204, 64
      %v1279 = vpop.permute.xlu0 %1278
      %1280 = vrot.lane.b32.xlu0 %v1205, 64
      %v1281 = vpop.permute.xlu0 %1280
      %1282 = vrot.lane.b32.xlu0 %v1206, 64
      %v1283 = vpop.permute.xlu0 %1282
      %1284 = vrot.lane.b32.xlu0 %v1207, 64
      %v1285 = vpop.permute.xlu0 %1284
      %1286 = vrot.lane.b32.xlu0 %v1208, 64
      %v1287 = vpop.permute.xlu0 %1286
      %1288 = vrot.lane.b32.xlu0 %v1209, 64
      %v1289 = vpop.permute.xlu0 %1288
      %1290 = vrot.lane.b32.xlu0 %v1210, 64
      %v1291 = vpop.permute.xlu0 %1290
      %1292 = vrot.lane.b32.xlu0 %v1211, 64
      %v1293 = vpop.permute.xlu0 %1292
      %1294 = vrot.lane.b32.xlu0 %v1212, 64
      %v1295 = vpop.permute.xlu0 %1294
      %1296 = vrot.lane.b32.xlu0 %v1213, 64
      %v1297 = vpop.permute.xlu0 %1296
      %1298 = vrot.lane.b32.xlu0 %v1214, 64
      %v1299 = vpop.permute.xlu0 %1298
      %1300 = vrot.lane.b32.xlu0 %v1215, 64
      %v1301 = vpop.permute.xlu0 %1300
      %1302 = vrot.lane.b32.xlu0 %v1216, 64
      %v1303 = vpop.permute.xlu0 %1302
      %1304 = vrot.lane.b32.xlu0 %v1217, 64
      %v1305 = vpop.permute.xlu0 %1304
      %1306 = vrot.lane.b32.xlu0 %v1218, 64
      %v1307 = vpop.permute.xlu0 %1306
      %1308 = vrot.lane.b32.xlu0 %v1219, 64
      %v1309 = vpop.permute.xlu0 %1308
      %1310 = vrot.lane.b32.xlu0 %v1220, 64
      %v1311 = vpop.permute.xlu0 %1310
      %1312 = vrot.lane.b32.xlu0 %v1221, 64
      %v1313 = vpop.permute.xlu0 %1312
      %1314 = vrot.lane.b32.xlu0 %v1222, 64
      %v1315 = vpop.permute.xlu0 %1314
      %1316 = vrot.lane.b32.xlu0 %v1223, 64
      %v1317 = vpop.permute.xlu0 %1316
      %1318 = vrot.lane.b32.xlu0 %v1224, 64
      %v1319 = vpop.permute.xlu0 %1318
      %1320 = vrot.lane.b32.xlu0 %v1225, 64
      %v1321 = vpop.permute.xlu0 %1320
      %vm1354 = vcmask 785920
      %1355 = vst.msk [vmem:[#allocation3] sm:$0xff] %vm1354, %v1259
      %1356 = vst.msk [vmem:[#allocation3 + $0x18] sm:$0xff] %vm1354, %v1261
      %1357 = vst.msk [vmem:[#allocation3 + $0x30] sm:$0xff] %vm1354, %v1263
      %1358 = vst.msk [vmem:[#allocation3 + $0x48] sm:$0xff] %vm1354, %v1265
      %1359 = vst.msk [vmem:[#allocation3 + $0x60] sm:$0xff] %vm1354, %v1267
      %1360 = vst.msk [vmem:[#allocation3 + $0x78] sm:$0xff] %vm1354, %v1269
      %1361 = vst.msk [vmem:[#allocation3 + $0x90] sm:$0xff] %vm1354, %v1271
      %1362 = vst.msk [vmem:[#allocation3 + $0xa8] sm:$0xff] %vm1354, %v1273
      %1363 = vst.msk [vmem:[#allocation3 + $0xc0] sm:$0xff] %vm1354, %v1275
      %1364 = vst.msk [vmem:[#allocation3 + $0xd8] sm:$0xff] %vm1354, %v1277
      %1365 = vst.msk [vmem:[#allocation3 + $0xf0] sm:$0xff] %vm1354, %v1279
      %1366 = vst.msk [vmem:[#allocation3 + $0x108] sm:$0xff] %vm1354, %v1281
      %1367 = vst.msk [vmem:[#allocation3 + $0x120] sm:$0xff] %vm1354, %v1283
      %1368 = vst.msk [vmem:[#allocation3 + $0x138] sm:$0xff] %vm1354, %v1285
      %1369 = vst.msk [vmem:[#allocation3 + $0x150] sm:$0xff] %vm1354, %v1287
      %1370 = vst.msk [vmem:[#allocation3 + $0x168] sm:$0xff] %vm1354, %v1289
      %1371 = vst.msk [vmem:[#allocation3 + $0x180] sm:$0xff] %vm1354, %v1291
      %1372 = vst.msk [vmem:[#allocation3 + $0x198] sm:$0xff] %vm1354, %v1293
      %1373 = vst.msk [vmem:[#allocation3 + $0x1b0] sm:$0xff] %vm1354, %v1295
      %1374 = vst.msk [vmem:[#allocation3 + $0x1c8] sm:$0xff] %vm1354, %v1297
      %1375 = vst.msk [vmem:[#allocation3 + $0x1e0] sm:$0xff] %vm1354, %v1299
      %1376 = vst.msk [vmem:[#allocation3 + $0x1f8] sm:$0xff] %vm1354, %v1301
      %1377 = vst.msk [vmem:[#allocation3 + $0x210] sm:$0xff] %vm1354, %v1303
      %1378 = vst.msk [vmem:[#allocation3 + $0x228] sm:$0xff] %vm1354, %v1305
      %1379 = vst.msk [vmem:[#allocation3 + $0x240] sm:$0xff] %vm1354, %v1307
      %1380 = vst.msk [vmem:[#allocation3 + $0x258] sm:$0xff] %vm1354, %v1309
      %1381 = vst.msk [vmem:[#allocation3 + $0x270] sm:$0xff] %vm1354, %v1311
      %1382 = vst.msk [vmem:[#allocation3 + $0x288] sm:$0xff] %vm1354, %v1313
      %1383 = vst.msk [vmem:[#allocation3 + $0x2a0] sm:$0xff] %vm1354, %v1315
      %1384 = vst.msk [vmem:[#allocation3 + $0x2b8] sm:$0xff] %vm1354, %v1317
      %1385 = vst.msk [vmem:[#allocation3 + $0x2d0] sm:$0xff] %vm1354, %v1319
      %1386 = vst.msk [vmem:[#allocation3 + $0x2e8] sm:$0xff] %vm1354, %v1321
      %v1387 = vld [vmem:[%s904] sm:$0xff]
      %v1388 = vld [vmem:[%s904 + $0x8] sm:$0xff]
      %v1389 = vld [vmem:[%s904 + $0x18] sm:$0xff]
      %v1390 = vld [vmem:[%s904 + $0x20] sm:$0xff]
      %v1391 = vld [vmem:[%s904 + $0x30] sm:$0xff]
      %v1392 = vld [vmem:[%s904 + $0x38] sm:$0xff]
      %v1393 = vld [vmem:[%s904 + $0x48] sm:$0xff]
      %v1394 = vld [vmem:[%s904 + $0x50] sm:$0xff]
      %v1395 = vld [vmem:[%s904 + $0x60] sm:$0xff]
      %v1396 = vld [vmem:[%s904 + $0x68] sm:$0xff]
      %v1397 = vld [vmem:[%s904 + $0x78] sm:$0xff]
      %v1398 = vld [vmem:[%s904 + $0x80] sm:$0xff]
      %v1399 = vld [vmem:[%s904 + $0x90] sm:$0xff]
      %v1400 = vld [vmem:[%s904 + $0x98] sm:$0xff]
      %v1401 = vld [vmem:[%s904 + $0xa8] sm:$0xff]
      %v1402 = vld [vmem:[%s904 + $0xb0] sm:$0xff]
      %v1403 = vld [vmem:[%s904 + $0xc0] sm:$0xff]
      %v1404 = vld [vmem:[%s904 + $0xc8] sm:$0xff]
      %v1405 = vld [vmem:[%s904 + $0xd8] sm:$0xff]
      %v1406 = vld [vmem:[%s904 + $0xe0] sm:$0xff]
      %v1407 = vld [vmem:[%s904 + $0xf0] sm:$0xff]
      %v1408 = vld [vmem:[%s904 + $0xf8] sm:$0xff]
      %v1409 = vld [vmem:[%s904 + $0x108] sm:$0xff]
      %v1410 = vld [vmem:[%s904 + $0x110] sm:$0xff]
      %v1411 = vld [vmem:[%s904 + $0x120] sm:$0xff]
      %v1412 = vld [vmem:[%s904 + $0x128] sm:$0xff]
      %v1413 = vld [vmem:[%s904 + $0x138] sm:$0xff]
      %v1414 = vld [vmem:[%s904 + $0x140] sm:$0xff]
      %v1415 = vld [vmem:[%s904 + $0x150] sm:$0xff]
      %v1416 = vld [vmem:[%s904 + $0x158] sm:$0xff]
      %v1417 = vld [vmem:[%s904 + $0x168] sm:$0xff]
      %v1418 = vld [vmem:[%s904 + $0x170] sm:$0xff]
      %1451 = vrot.lane.b32.xlu0 %v1387, 96
      %v1452 = vpop.permute.xlu0 %1451
      %1453 = vrot.lane.b32.xlu0 %v1388, 96
      %v1454 = vpop.permute.xlu0 %1453
      %1455 = vrot.lane.b32.xlu0 %v1389, 96
      %v1456 = vpop.permute.xlu0 %1455
      %1457 = vrot.lane.b32.xlu0 %v1390, 96
      %v1458 = vpop.permute.xlu0 %1457
      %1459 = vrot.lane.b32.xlu0 %v1391, 96
      %v1460 = vpop.permute.xlu0 %1459
      %1461 = vrot.lane.b32.xlu0 %v1392, 96
      %v1462 = vpop.permute.xlu0 %1461
      %1463 = vrot.lane.b32.xlu0 %v1393, 96
      %v1464 = vpop.permute.xlu0 %1463
      %1465 = vrot.lane.b32.xlu0 %v1394, 96
      %v1466 = vpop.permute.xlu0 %1465
      %1467 = vrot.lane.b32.xlu0 %v1395, 96
      %v1468 = vpop.permute.xlu0 %1467
      %1469 = vrot.lane.b32.xlu0 %v1396, 96
      %v1470 = vpop.permute.xlu0 %1469
      %1471 = vrot.lane.b32.xlu0 %v1397, 96
      %v1472 = vpop.permute.xlu0 %1471
      %1473 = vrot.lane.b32.xlu0 %v1398, 96
      %v1474 = vpop.permute.xlu0 %1473
      %1475 = vrot.lane.b32.xlu0 %v1399, 96
      %v1476 = vpop.permute.xlu0 %1475
      %1477 = vrot.lane.b32.xlu0 %v1400, 96
      %v1478 = vpop.permute.xlu0 %1477
      %1479 = vrot.lane.b32.xlu0 %v1401, 96
      %v1480 = vpop.permute.xlu0 %1479
      %1481 = vrot.lane.b32.xlu0 %v1402, 96
      %v1482 = vpop.permute.xlu0 %1481
      %1483 = vrot.lane.b32.xlu0 %v1403, 96
      %v1484 = vpop.permute.xlu0 %1483
      %1485 = vrot.lane.b32.xlu0 %v1404, 96
      %v1486 = vpop.permute.xlu0 %1485
      %1487 = vrot.lane.b32.xlu0 %v1405, 96
      %v1488 = vpop.permute.xlu0 %1487
      %1489 = vrot.lane.b32.xlu0 %v1406, 96
      %v1490 = vpop.permute.xlu0 %1489
      %1491 = vrot.lane.b32.xlu0 %v1407, 96
      %v1492 = vpop.permute.xlu0 %1491
      %1493 = vrot.lane.b32.xlu0 %v1408, 96
      %v1494 = vpop.permute.xlu0 %1493
      %1495 = vrot.lane.b32.xlu0 %v1409, 96
      %v1496 = vpop.permute.xlu0 %1495
      %1497 = vrot.lane.b32.xlu0 %v1410, 96
      %v1498 = vpop.permute.xlu0 %1497
      %1499 = vrot.lane.b32.xlu0 %v1411, 96
      %v1500 = vpop.permute.xlu0 %1499
      %1501 = vrot.lane.b32.xlu0 %v1412, 96
      %v1502 = vpop.permute.xlu0 %1501
      %1503 = vrot.lane.b32.xlu0 %v1413, 96
      %v1504 = vpop.permute.xlu0 %1503
      %1505 = vrot.lane.b32.xlu0 %v1414, 96
      %v1506 = vpop.permute.xlu0 %1505
      %1507 = vrot.lane.b32.xlu0 %v1415, 96
      %v1508 = vpop.permute.xlu0 %1507
      %1509 = vrot.lane.b32.xlu0 %v1416, 96
      %v1510 = vpop.permute.xlu0 %1509
      %1511 = vrot.lane.b32.xlu0 %v1417, 96
      %v1512 = vpop.permute.xlu0 %1511
      %1513 = vrot.lane.b32.xlu0 %v1418, 96
      %v1514 = vpop.permute.xlu0 %1513
      %vm1547 = vcmask 1048320
      %1548 = vst.msk [vmem:[#allocation3] sm:$0xff] %vm1547, %v1452
      %1549 = vst.msk [vmem:[#allocation3 + $0x18] sm:$0xff] %vm1547, %v1454
      %1550 = vst.msk [vmem:[#allocation3 + $0x30] sm:$0xff] %vm1547, %v1456
      %1551 = vst.msk [vmem:[#allocation3 + $0x48] sm:$0xff] %vm1547, %v1458
      %1552 = vst.msk [vmem:[#allocation3 + $0x60] sm:$0xff] %vm1547, %v1460
      %1553 = vst.msk [vmem:[#allocation3 + $0x78] sm:$0xff] %vm1547, %v1462
      %1554 = vst.msk [vmem:[#allocation3 + $0x90] sm:$0xff] %vm1547, %v1464
      %1555 = vst.msk [vmem:[#allocation3 + $0xa8] sm:$0xff] %vm1547, %v1466
      %1556 = vst.msk [vmem:[#allocation3 + $0xc0] sm:$0xff] %vm1547, %v1468
      %1557 = vst.msk [vmem:[#allocation3 + $0xd8] sm:$0xff] %vm1547, %v1470
      %1558 = vst.msk [vmem:[#allocation3 + $0xf0] sm:$0xff] %vm1547, %v1472
      %1559 = vst.msk [vmem:[#allocation3 + $0x108] sm:$0xff] %vm1547, %v1474
      %1560 = vst.msk [vmem:[#allocation3 + $0x120] sm:$0xff] %vm1547, %v1476
      %1561 = vst.msk [vmem:[#allocation3 + $0x138] sm:$0xff] %vm1547, %v1478
      %1562 = vst.msk [vmem:[#allocation3 + $0x150] sm:$0xff] %vm1547, %v1480
      %1563 = vst.msk [vmem:[#allocation3 + $0x168] sm:$0xff] %vm1547, %v1482
      %1564 = vst.msk [vmem:[#allocation3 + $0x180] sm:$0xff] %vm1547, %v1484
      %1565 = vst.msk [vmem:[#allocation3 + $0x198] sm:$0xff] %vm1547, %v1486
      %1566 = vst.msk [vmem:[#allocation3 + $0x1b0] sm:$0xff] %vm1547, %v1488
      %1567 = vst.msk [vmem:[#allocation3 + $0x1c8] sm:$0xff] %vm1547, %v1490
      %1568 = vst.msk [vmem:[#allocation3 + $0x1e0] sm:$0xff] %vm1547, %v1492
      %1569 = vst.msk [vmem:[#allocation3 + $0x1f8] sm:$0xff] %vm1547, %v1494
      %1570 = vst.msk [vmem:[#allocation3 + $0x210] sm:$0xff] %vm1547, %v1496
      %1571 = vst.msk [vmem:[#allocation3 + $0x228] sm:$0xff] %vm1547, %v1498
      %1572 = vst.msk [vmem:[#allocation3 + $0x240] sm:$0xff] %vm1547, %v1500
      %1573 = vst.msk [vmem:[#allocation3 + $0x258] sm:$0xff] %vm1547, %v1502
      %1574 = vst.msk [vmem:[#allocation3 + $0x270] sm:$0xff] %vm1547, %v1504
      %1575 = vst.msk [vmem:[#allocation3 + $0x288] sm:$0xff] %vm1547, %v1506
      %1576 = vst.msk [vmem:[#allocation3 + $0x2a0] sm:$0xff] %vm1547, %v1508
      %1577 = vst.msk [vmem:[#allocation3 + $0x2b8] sm:$0xff] %vm1547, %v1510
      %1578 = vst.msk [vmem:[#allocation3 + $0x2d0] sm:$0xff] %vm1547, %v1512
      %1579 = vst.msk [vmem:[#allocation3 + $0x2e8] sm:$0xff] %vm1547, %v1514
      %v1580 = vld [vmem:[%s904 + $0x1] sm:$0xff]
      %v1581 = vld [vmem:[%s904 + $0x9] sm:$0xff]
      %v1582 = vld [vmem:[%s904 + $0x19] sm:$0xff]
      %v1583 = vld [vmem:[%s904 + $0x21] sm:$0xff]
      %v1584 = vld [vmem:[%s904 + $0x31] sm:$0xff]
      %v1585 = vld [vmem:[%s904 + $0x39] sm:$0xff]
      %v1586 = vld [vmem:[%s904 + $0x49] sm:$0xff]
      %v1587 = vld [vmem:[%s904 + $0x51] sm:$0xff]
      %v1588 = vld [vmem:[%s904 + $0x61] sm:$0xff]
      %v1589 = vld [vmem:[%s904 + $0x69] sm:$0xff]
      %v1590 = vld [vmem:[%s904 + $0x79] sm:$0xff]
      %v1591 = vld [vmem:[%s904 + $0x81] sm:$0xff]
      %v1592 = vld [vmem:[%s904 + $0x91] sm:$0xff]
      %v1593 = vld [vmem:[%s904 + $0x99] sm:$0xff]
      %v1594 = vld [vmem:[%s904 + $0xa9] sm:$0xff]
      %v1595 = vld [vmem:[%s904 + $0xb1] sm:$0xff]
      %v1596 = vld [vmem:[%s904 + $0xc1] sm:$0xff]
      %v1597 = vld [vmem:[%s904 + $0xc9] sm:$0xff]
      %v1598 = vld [vmem:[%s904 + $0xd9] sm:$0xff]
      %v1599 = vld [vmem:[%s904 + $0xe1] sm:$0xff]
      %v1600 = vld [vmem:[%s904 + $0xf1] sm:$0xff]
      %v1601 = vld [vmem:[%s904 + $0xf9] sm:$0xff]
      %v1602 = vld [vmem:[%s904 + $0x109] sm:$0xff]
      %v1603 = vld [vmem:[%s904 + $0x111] sm:$0xff]
      %v1604 = vld [vmem:[%s904 + $0x121] sm:$0xff]
      %v1605 = vld [vmem:[%s904 + $0x129] sm:$0xff]
      %v1606 = vld [vmem:[%s904 + $0x139] sm:$0xff]
      %v1607 = vld [vmem:[%s904 + $0x141] sm:$0xff]
      %v1608 = vld [vmem:[%s904 + $0x151] sm:$0xff]
      %v1609 = vld [vmem:[%s904 + $0x159] sm:$0xff]
      %v1610 = vld [vmem:[%s904 + $0x169] sm:$0xff]
      %v1611 = vld [vmem:[%s904 + $0x171] sm:$0xff]
      %1612 = vst.msk [vmem:[#allocation3 + $0x8] sm:$0xff] %vm858, %v1580
      %1613 = vst.msk [vmem:[#allocation3 + $0x20] sm:$0xff] %vm858, %v1581
      %1614 = vst.msk [vmem:[#allocation3 + $0x38] sm:$0xff] %vm858, %v1582
      %1615 = vst.msk [vmem:[#allocation3 + $0x50] sm:$0xff] %vm858, %v1583
      %1616 = vst.msk [vmem:[#allocation3 + $0x68] sm:$0xff] %vm858, %v1584
      %1617 = vst.msk [vmem:[#allocation3 + $0x80] sm:$0xff] %vm858, %v1585
      %1618 = vst.msk [vmem:[#allocation3 + $0x98] sm:$0xff] %vm858, %v1586
      %1619 = vst.msk [vmem:[#allocation3 + $0xb0] sm:$0xff] %vm858, %v1587
      %1620 = vst.msk [vmem:[#allocation3 + $0xc8] sm:$0xff] %vm858, %v1588
      %1621 = vst.msk [vmem:[#allocation3 + $0xe0] sm:$0xff] %vm858, %v1589
      %1622 = vst.msk [vmem:[#allocation3 + $0xf8] sm:$0xff] %vm858, %v1590
      %1623 = vst.msk [vmem:[#allocation3 + $0x110] sm:$0xff] %vm858, %v1591
      %1624 = vst.msk [vmem:[#allocation3 + $0x128] sm:$0xff] %vm858, %v1592
      %1625 = vst.msk [vmem:[#allocation3 + $0x140] sm:$0xff] %vm858, %v1593
      %1626 = vst.msk [vmem:[#allocation3 + $0x158] sm:$0xff] %vm858, %v1594
      %1627 = vst.msk [vmem:[#allocation3 + $0x170] sm:$0xff] %vm858, %v1595
      %1628 = vst.msk [vmem:[#allocation3 + $0x188] sm:$0xff] %vm858, %v1596
      %1629 = vst.msk [vmem:[#allocation3 + $0x1a0] sm:$0xff] %vm858, %v1597
      %1630 = vst.msk [vmem:[#allocation3 + $0x1b8] sm:$0xff] %vm858, %v1598
      %1631 = vst.msk [vmem:[#allocation3 + $0x1d0] sm:$0xff] %vm858, %v1599
      %1632 = vst.msk [vmem:[#allocation3 + $0x1e8] sm:$0xff] %vm858, %v1600
      %1633 = vst.msk [vmem:[#allocation3 + $0x200] sm:$0xff] %vm858, %v1601
      %1634 = vst.msk [vmem:[#allocation3 + $0x218] sm:$0xff] %vm858, %v1602
      %1635 = vst.msk [vmem:[#allocation3 + $0x230] sm:$0xff] %vm858, %v1603
      %1636 = vst.msk [vmem:[#allocation3 + $0x248] sm:$0xff] %vm858, %v1604
      %1637 = vst.msk [vmem:[#allocation3 + $0x260] sm:$0xff] %vm858, %v1605
      %1638 = vst.msk [vmem:[#allocation3 + $0x278] sm:$0xff] %vm858, %v1606
      %1639 = vst.msk [vmem:[#allocation3 + $0x290] sm:$0xff] %vm858, %v1607
      %1640 = vst.msk [vmem:[#allocation3 + $0x2a8] sm:$0xff] %vm858, %v1608
      %1641 = vst.msk [vmem:[#allocation3 + $0x2c0] sm:$0xff] %vm858, %v1609
      %1642 = vst.msk [vmem:[#allocation3 + $0x2d8] sm:$0xff] %vm858, %v1610
      %1643 = vst.msk [vmem:[#allocation3 + $0x2f0] sm:$0xff] %vm858, %v1611
      %v1644 = vld [vmem:[%s904 + $0x2] sm:$0xff]
      %v1645 = vld [vmem:[%s904 + $0xa] sm:$0xff]
      %v1646 = vld [vmem:[%s904 + $0x1a] sm:$0xff]
      %v1647 = vld [vmem:[%s904 + $0x22] sm:$0xff]
      %v1648 = vld [vmem:[%s904 + $0x32] sm:$0xff]
      %v1649 = vld [vmem:[%s904 + $0x3a] sm:$0xff]
      %v1650 = vld [vmem:[%s904 + $0x4a] sm:$0xff]
      %v1651 = vld [vmem:[%s904 + $0x52] sm:$0xff]
      %v1652 = vld [vmem:[%s904 + $0x62] sm:$0xff]
      %v1653 = vld [vmem:[%s904 + $0x6a] sm:$0xff]
      %v1654 = vld [vmem:[%s904 + $0x7a] sm:$0xff]
      %v1655 = vld [vmem:[%s904 + $0x82] sm:$0xff]
      %v1656 = vld [vmem:[%s904 + $0x92] sm:$0xff]
      %v1657 = vld [vmem:[%s904 + $0x9a] sm:$0xff]
      %v1658 = vld [vmem:[%s904 + $0xaa] sm:$0xff]
      %v1659 = vld [vmem:[%s904 + $0xb2] sm:$0xff]
      %v1660 = vld [vmem:[%s904 + $0xc2] sm:$0xff]
      %v1661 = vld [vmem:[%s904 + $0xca] sm:$0xff]
      %v1662 = vld [vmem:[%s904 + $0xda] sm:$0xff]
      %v1663 = vld [vmem:[%s904 + $0xe2] sm:$0xff]
      %v1664 = vld [vmem:[%s904 + $0xf2] sm:$0xff]
      %v1665 = vld [vmem:[%s904 + $0xfa] sm:$0xff]
      %v1666 = vld [vmem:[%s904 + $0x10a] sm:$0xff]
      %v1667 = vld [vmem:[%s904 + $0x112] sm:$0xff]
      %v1668 = vld [vmem:[%s904 + $0x122] sm:$0xff]
      %v1669 = vld [vmem:[%s904 + $0x12a] sm:$0xff]
      %v1670 = vld [vmem:[%s904 + $0x13a] sm:$0xff]
      %v1671 = vld [vmem:[%s904 + $0x142] sm:$0xff]
      %v1672 = vld [vmem:[%s904 + $0x152] sm:$0xff]
      %v1673 = vld [vmem:[%s904 + $0x15a] sm:$0xff]
      %v1674 = vld [vmem:[%s904 + $0x16a] sm:$0xff]
      %v1675 = vld [vmem:[%s904 + $0x172] sm:$0xff]
      %1708 = vrot.lane.b32.xlu0 %v1644, 32
      %v1709 = vpop.permute.xlu0 %1708
      %1710 = vrot.lane.b32.xlu0 %v1645, 32
      %v1711 = vpop.permute.xlu0 %1710
      %1712 = vrot.lane.b32.xlu0 %v1646, 32
      %v1713 = vpop.permute.xlu0 %1712
      %1714 = vrot.lane.b32.xlu0 %v1647, 32
      %v1715 = vpop.permute.xlu0 %1714
      %1716 = vrot.lane.b32.xlu0 %v1648, 32
      %v1717 = vpop.permute.xlu0 %1716
      %1718 = vrot.lane.b32.xlu0 %v1649, 32
      %v1719 = vpop.permute.xlu0 %1718
      %1720 = vrot.lane.b32.xlu0 %v1650, 32
      %v1721 = vpop.permute.xlu0 %1720
      %1722 = vrot.lane.b32.xlu0 %v1651, 32
      %v1723 = vpop.permute.xlu0 %1722
      %1724 = vrot.lane.b32.xlu0 %v1652, 32
      %v1725 = vpop.permute.xlu0 %1724
      %1726 = vrot.lane.b32.xlu0 %v1653, 32
      %v1727 = vpop.permute.xlu0 %1726
      %1728 = vrot.lane.b32.xlu0 %v1654, 32
      %v1729 = vpop.permute.xlu0 %1728
      %1730 = vrot.lane.b32.xlu0 %v1655, 32
      %v1731 = vpop.permute.xlu0 %1730
      %1732 = vrot.lane.b32.xlu0 %v1656, 32
      %v1733 = vpop.permute.xlu0 %1732
      %1734 = vrot.lane.b32.xlu0 %v1657, 32
      %v1735 = vpop.permute.xlu0 %1734
      %1736 = vrot.lane.b32.xlu0 %v1658, 32
      %v1737 = vpop.permute.xlu0 %1736
      %1738 = vrot.lane.b32.xlu0 %v1659, 32
      %v1739 = vpop.permute.xlu0 %1738
      %1740 = vrot.lane.b32.xlu0 %v1660, 32
      %v1741 = vpop.permute.xlu0 %1740
      %1742 = vrot.lane.b32.xlu0 %v1661, 32
      %v1743 = vpop.permute.xlu0 %1742
      %1744 = vrot.lane.b32.xlu0 %v1662, 32
      %v1745 = vpop.permute.xlu0 %1744
      %1746 = vrot.lane.b32.xlu0 %v1663, 32
      %v1747 = vpop.permute.xlu0 %1746
      %1748 = vrot.lane.b32.xlu0 %v1664, 32
      %v1749 = vpop.permute.xlu0 %1748
      %1750 = vrot.lane.b32.xlu0 %v1665, 32
      %v1751 = vpop.permute.xlu0 %1750
      %1752 = vrot.lane.b32.xlu0 %v1666, 32
      %v1753 = vpop.permute.xlu0 %1752
      %1754 = vrot.lane.b32.xlu0 %v1667, 32
      %v1755 = vpop.permute.xlu0 %1754
      %1756 = vrot.lane.b32.xlu0 %v1668, 32
      %v1757 = vpop.permute.xlu0 %1756
      %1758 = vrot.lane.b32.xlu0 %v1669, 32
      %v1759 = vpop.permute.xlu0 %1758
      %1760 = vrot.lane.b32.xlu0 %v1670, 32
      %v1761 = vpop.permute.xlu0 %1760
      %1762 = vrot.lane.b32.xlu0 %v1671, 32
      %v1763 = vpop.permute.xlu0 %1762
      %1764 = vrot.lane.b32.xlu0 %v1672, 32
      %v1765 = vpop.permute.xlu0 %1764
      %1766 = vrot.lane.b32.xlu0 %v1673, 32
      %v1767 = vpop.permute.xlu0 %1766
      %1768 = vrot.lane.b32.xlu0 %v1674, 32
      %v1769 = vpop.permute.xlu0 %1768
      %1770 = vrot.lane.b32.xlu0 %v1675, 32
      %v1771 = vpop.permute.xlu0 %1770
      %1804 = vst.msk [vmem:[#allocation3 + $0x8] sm:$0xff] %vm1161, %v1709
      %1805 = vst.msk [vmem:[#allocation3 + $0x20] sm:$0xff] %vm1161, %v1711
      %1806 = vst.msk [vmem:[#allocation3 + $0x38] sm:$0xff] %vm1161, %v1713
      %1807 = vst.msk [vmem:[#allocation3 + $0x50] sm:$0xff] %vm1161, %v1715
      %1808 = vst.msk [vmem:[#allocation3 + $0x68] sm:$0xff] %vm1161, %v1717
      %1809 = vst.msk [vmem:[#allocation3 + $0x80] sm:$0xff] %vm1161, %v1719
      %1810 = vst.msk [vmem:[#allocation3 + $0x98] sm:$0xff] %vm1161, %v1721
      %1811 = vst.msk [vmem:[#allocation3 + $0xb0] sm:$0xff] %vm1161, %v1723
      %1812 = vst.msk [vmem:[#allocation3 + $0xc8] sm:$0xff] %vm1161, %v1725
      %1813 = vst.msk [vmem:[#allocation3 + $0xe0] sm:$0xff] %vm1161, %v1727
      %1814 = vst.msk [vmem:[#allocation3 + $0xf8] sm:$0xff] %vm1161, %v1729
      %1815 = vst.msk [vmem:[#allocation3 + $0x110] sm:$0xff] %vm1161, %v1731
      %1816 = vst.msk [vmem:[#allocation3 + $0x128] sm:$0xff] %vm1161, %v1733
      %1817 = vst.msk [vmem:[#allocation3 + $0x140] sm:$0xff] %vm1161, %v1735
      %1818 = vst.msk [vmem:[#allocation3 + $0x158] sm:$0xff] %vm1161, %v1737
      %1819 = vst.msk [vmem:[#allocation3 + $0x170] sm:$0xff] %vm1161, %v1739
      %1820 = vst.msk [vmem:[#allocation3 + $0x188] sm:$0xff] %vm1161, %v1741
      %1821 = vst.msk [vmem:[#allocation3 + $0x1a0] sm:$0xff] %vm1161, %v1743
      %1822 = vst.msk [vmem:[#allocation3 + $0x1b8] sm:$0xff] %vm1161, %v1745
      %1823 = vst.msk [vmem:[#allocation3 + $0x1d0] sm:$0xff] %vm1161, %v1747
      %1824 = vst.msk [vmem:[#allocation3 + $0x1e8] sm:$0xff] %vm1161, %v1749
      %1825 = vst.msk [vmem:[#allocation3 + $0x200] sm:$0xff] %vm1161, %v1751
      %1826 = vst.msk [vmem:[#allocation3 + $0x218] sm:$0xff] %vm1161, %v1753
      %1827 = vst.msk [vmem:[#allocation3 + $0x230] sm:$0xff] %vm1161, %v1755
      %1828 = vst.msk [vmem:[#allocation3 + $0x248] sm:$0xff] %vm1161, %v1757
      %1829 = vst.msk [vmem:[#allocation3 + $0x260] sm:$0xff] %vm1161, %v1759
      %1830 = vst.msk [vmem:[#allocation3 + $0x278] sm:$0xff] %vm1161, %v1761
      %1831 = vst.msk [vmem:[#allocation3 + $0x290] sm:$0xff] %vm1161, %v1763
      %1832 = vst.msk [vmem:[#allocation3 + $0x2a8] sm:$0xff] %vm1161, %v1765
      %1833 = vst.msk [vmem:[#allocation3 + $0x2c0] sm:$0xff] %vm1161, %v1767
      %1834 = vst.msk [vmem:[#allocation3 + $0x2d8] sm:$0xff] %vm1161, %v1769
      %1835 = vst.msk [vmem:[#allocation3 + $0x2f0] sm:$0xff] %vm1161, %v1771
      %s1836 = scalar_lea.vmem [#allocation2], 48
      %v1837 = vld [vmem:[%s1836] sm:$0xff]
      %v1838 = vld [vmem:[%s1836 + $0x8] sm:$0xff]
      %v1839 = vld [vmem:[%s1836 + $0x18] sm:$0xff]
      %v1840 = vld [vmem:[%s1836 + $0x20] sm:$0xff]
      %v1841 = vld [vmem:[%s1836 + $0x30] sm:$0xff]
      %v1842 = vld [vmem:[%s1836 + $0x38] sm:$0xff]
      %v1843 = vld [vmem:[%s1836 + $0x48] sm:$0xff]
      %v1844 = vld [vmem:[%s1836 + $0x50] sm:$0xff]
      %v1845 = vld [vmem:[%s1836 + $0x60] sm:$0xff]
      %v1846 = vld [vmem:[%s1836 + $0x68] sm:$0xff]
      %v1847 = vld [vmem:[%s1836 + $0x78] sm:$0xff]
      %v1848 = vld [vmem:[%s1836 + $0x80] sm:$0xff]
      %v1849 = vld [vmem:[%s1836 + $0x90] sm:$0xff]
      %v1850 = vld [vmem:[%s1836 + $0x98] sm:$0xff]
      %v1851 = vld [vmem:[%s1836 + $0xa8] sm:$0xff]
      %v1852 = vld [vmem:[%s1836 + $0xb0] sm:$0xff]
      %v1853 = vld [vmem:[%s1836 + $0xc0] sm:$0xff]
      %v1854 = vld [vmem:[%s1836 + $0xc8] sm:$0xff]
      %v1855 = vld [vmem:[%s1836 + $0xd8] sm:$0xff]
      %v1856 = vld [vmem:[%s1836 + $0xe0] sm:$0xff]
      %v1857 = vld [vmem:[%s1836 + $0xf0] sm:$0xff]
      %v1858 = vld [vmem:[%s1836 + $0xf8] sm:$0xff]
      %v1859 = vld [vmem:[%s1836 + $0x108] sm:$0xff]
      %v1860 = vld [vmem:[%s1836 + $0x110] sm:$0xff]
      %v1861 = vld [vmem:[%s1836 + $0x120] sm:$0xff]
      %v1862 = vld [vmem:[%s1836 + $0x128] sm:$0xff]
      %v1863 = vld [vmem:[%s1836 + $0x138] sm:$0xff]
      %v1864 = vld [vmem:[%s1836 + $0x140] sm:$0xff]
      %v1865 = vld [vmem:[%s1836 + $0x150] sm:$0xff]
      %v1866 = vld [vmem:[%s1836 + $0x158] sm:$0xff]
      %v1867 = vld [vmem:[%s1836 + $0x168] sm:$0xff]
      %v1868 = vld [vmem:[%s1836 + $0x170] sm:$0xff]
      %1901 = vrot.lane.b32.xlu0 %v1837, 64
      %v1902 = vpop.permute.xlu0 %1901
      %1903 = vrot.lane.b32.xlu0 %v1838, 64
      %v1904 = vpop.permute.xlu0 %1903
      %1905 = vrot.lane.b32.xlu0 %v1839, 64
      %v1906 = vpop.permute.xlu0 %1905
      %1907 = vrot.lane.b32.xlu0 %v1840, 64
      %v1908 = vpop.permute.xlu0 %1907
      %1909 = vrot.lane.b32.xlu0 %v1841, 64
      %v1910 = vpop.permute.xlu0 %1909
      %1911 = vrot.lane.b32.xlu0 %v1842, 64
      %v1912 = vpop.permute.xlu0 %1911
      %1913 = vrot.lane.b32.xlu0 %v1843, 64
      %v1914 = vpop.permute.xlu0 %1913
      %1915 = vrot.lane.b32.xlu0 %v1844, 64
      %v1916 = vpop.permute.xlu0 %1915
      %1917 = vrot.lane.b32.xlu0 %v1845, 64
      %v1918 = vpop.permute.xlu0 %1917
      %1919 = vrot.lane.b32.xlu0 %v1846, 64
      %v1920 = vpop.permute.xlu0 %1919
      %1921 = vrot.lane.b32.xlu0 %v1847, 64
      %v1922 = vpop.permute.xlu0 %1921
      %1923 = vrot.lane.b32.xlu0 %v1848, 64
      %v1924 = vpop.permute.xlu0 %1923
      %1925 = vrot.lane.b32.xlu0 %v1849, 64
      %v1926 = vpop.permute.xlu0 %1925
      %1927 = vrot.lane.b32.xlu0 %v1850, 64
      %v1928 = vpop.permute.xlu0 %1927
      %1929 = vrot.lane.b32.xlu0 %v1851, 64
      %v1930 = vpop.permute.xlu0 %1929
      %1931 = vrot.lane.b32.xlu0 %v1852, 64
      %v1932 = vpop.permute.xlu0 %1931
      %1933 = vrot.lane.b32.xlu0 %v1853, 64
      %v1934 = vpop.permute.xlu0 %1933
      %1935 = vrot.lane.b32.xlu0 %v1854, 64
      %v1936 = vpop.permute.xlu0 %1935
      %1937 = vrot.lane.b32.xlu0 %v1855, 64
      %v1938 = vpop.permute.xlu0 %1937
      %1939 = vrot.lane.b32.xlu0 %v1856, 64
      %v1940 = vpop.permute.xlu0 %1939
      %1941 = vrot.lane.b32.xlu0 %v1857, 64
      %v1942 = vpop.permute.xlu0 %1941
      %1943 = vrot.lane.b32.xlu0 %v1858, 64
      %v1944 = vpop.permute.xlu0 %1943
      %1945 = vrot.lane.b32.xlu0 %v1859, 64
      %v1946 = vpop.permute.xlu0 %1945
      %1947 = vrot.lane.b32.xlu0 %v1860, 64
      %v1948 = vpop.permute.xlu0 %1947
      %1949 = vrot.lane.b32.xlu0 %v1861, 64
      %v1950 = vpop.permute.xlu0 %1949
      %1951 = vrot.lane.b32.xlu0 %v1862, 64
      %v1952 = vpop.permute.xlu0 %1951
      %1953 = vrot.lane.b32.xlu0 %v1863, 64
      %v1954 = vpop.permute.xlu0 %1953
      %1955 = vrot.lane.b32.xlu0 %v1864, 64
      %v1956 = vpop.permute.xlu0 %1955
      %1957 = vrot.lane.b32.xlu0 %v1865, 64
      %v1958 = vpop.permute.xlu0 %1957
      %1959 = vrot.lane.b32.xlu0 %v1866, 64
      %v1960 = vpop.permute.xlu0 %1959
      %1961 = vrot.lane.b32.xlu0 %v1867, 64
      %v1962 = vpop.permute.xlu0 %1961
      %1963 = vrot.lane.b32.xlu0 %v1868, 64
      %v1964 = vpop.permute.xlu0 %1963
      %1997 = vst.msk [vmem:[#allocation3 + $0x8] sm:$0xff] %vm1354, %v1902
      %1998 = vst.msk [vmem:[#allocation3 + $0x20] sm:$0xff] %vm1354, %v1904
      %1999 = vst.msk [vmem:[#allocation3 + $0x38] sm:$0xff] %vm1354, %v1906
      %2000 = vst.msk [vmem:[#allocation3 + $0x50] sm:$0xff] %vm1354, %v1908
      %2001 = vst.msk [vmem:[#allocation3 + $0x68] sm:$0xff] %vm1354, %v1910
      %2002 = vst.msk [vmem:[#allocation3 + $0x80] sm:$0xff] %vm1354, %v1912
      %2003 = vst.msk [vmem:[#allocation3 + $0x98] sm:$0xff] %vm1354, %v1914
      %2004 = vst.msk [vmem:[#allocation3 + $0xb0] sm:$0xff] %vm1354, %v1916
      %2005 = vst.msk [vmem:[#allocation3 + $0xc8] sm:$0xff] %vm1354, %v1918
      %2006 = vst.msk [vmem:[#allocation3 + $0xe0] sm:$0xff] %vm1354, %v1920
      %2007 = vst.msk [vmem:[#allocation3 + $0xf8] sm:$0xff] %vm1354, %v1922
      %2008 = vst.msk [vmem:[#allocation3 + $0x110] sm:$0xff] %vm1354, %v1924
      %2009 = vst.msk [vmem:[#allocation3 + $0x128] sm:$0xff] %vm1354, %v1926
      %2010 = vst.msk [vmem:[#allocation3 + $0x140] sm:$0xff] %vm1354, %v1928
      %2011 = vst.msk [vmem:[#allocation3 + $0x158] sm:$0xff] %vm1354, %v1930
      %2012 = vst.msk [vmem:[#allocation3 + $0x170] sm:$0xff] %vm1354, %v1932
      %2013 = vst.msk [vmem:[#allocation3 + $0x188] sm:$0xff] %vm1354, %v1934
      %2014 = vst.msk [vmem:[#allocation3 + $0x1a0] sm:$0xff] %vm1354, %v1936
      %2015 = vst.msk [vmem:[#allocation3 + $0x1b8] sm:$0xff] %vm1354, %v1938
      %2016 = vst.msk [vmem:[#allocation3 + $0x1d0] sm:$0xff] %vm1354, %v1940
      %2017 = vst.msk [vmem:[#allocation3 + $0x1e8] sm:$0xff] %vm1354, %v1942
      %2018 = vst.msk [vmem:[#allocation3 + $0x200] sm:$0xff] %vm1354, %v1944
      %2019 = vst.msk [vmem:[#allocation3 + $0x218] sm:$0xff] %vm1354, %v1946
      %2020 = vst.msk [vmem:[#allocation3 + $0x230] sm:$0xff] %vm1354, %v1948
      %2021 = vst.msk [vmem:[#allocation3 + $0x248] sm:$0xff] %vm1354, %v1950
      %2022 = vst.msk [vmem:[#allocation3 + $0x260] sm:$0xff] %vm1354, %v1952
      %2023 = vst.msk [vmem:[#allocation3 + $0x278] sm:$0xff] %vm1354, %v1954
      %2024 = vst.msk [vmem:[#allocation3 + $0x290] sm:$0xff] %vm1354, %v1956
      %2025 = vst.msk [vmem:[#allocation3 + $0x2a8] sm:$0xff] %vm1354, %v1958
      %2026 = vst.msk [vmem:[#allocation3 + $0x2c0] sm:$0xff] %vm1354, %v1960
      %2027 = vst.msk [vmem:[#allocation3 + $0x2d8] sm:$0xff] %vm1354, %v1962
      %2028 = vst.msk [vmem:[#allocation3 + $0x2f0] sm:$0xff] %vm1354, %v1964
      %v2029 = vld [vmem:[%s1836 + $0x1] sm:$0xff]
      %v2030 = vld [vmem:[%s1836 + $0x9] sm:$0xff]
      %v2031 = vld [vmem:[%s1836 + $0x19] sm:$0xff]
      %v2032 = vld [vmem:[%s1836 + $0x21] sm:$0xff]
      %v2033 = vld [vmem:[%s1836 + $0x31] sm:$0xff]
      %v2034 = vld [vmem:[%s1836 + $0x39] sm:$0xff]
      %v2035 = vld [vmem:[%s1836 + $0x49] sm:$0xff]
      %v2036 = vld [vmem:[%s1836 + $0x51] sm:$0xff]
      %v2037 = vld [vmem:[%s1836 + $0x61] sm:$0xff]
      %v2038 = vld [vmem:[%s1836 + $0x69] sm:$0xff]
      %v2039 = vld [vmem:[%s1836 + $0x79] sm:$0xff]
      %v2040 = vld [vmem:[%s1836 + $0x81] sm:$0xff]
      %v2041 = vld [vmem:[%s1836 + $0x91] sm:$0xff]
      %v2042 = vld [vmem:[%s1836 + $0x99] sm:$0xff]
      %v2043 = vld [vmem:[%s1836 + $0xa9] sm:$0xff]
      %v2044 = vld [vmem:[%s1836 + $0xb1] sm:$0xff]
      %v2045 = vld [vmem:[%s1836 + $0xc1] sm:$0xff]
      %v2046 = vld [vmem:[%s1836 + $0xc9] sm:$0xff]
      %v2047 = vld [vmem:[%s1836 + $0xd9] sm:$0xff]
      %v2048 = vld [vmem:[%s1836 + $0xe1] sm:$0xff]
      %v2049 = vld [vmem:[%s1836 + $0xf1] sm:$0xff]
      %v2050 = vld [vmem:[%s1836 + $0xf9] sm:$0xff]
      %v2051 = vld [vmem:[%s1836 + $0x109] sm:$0xff]
      %v2052 = vld [vmem:[%s1836 + $0x111] sm:$0xff]
      %v2053 = vld [vmem:[%s1836 + $0x121] sm:$0xff]
      %v2054 = vld [vmem:[%s1836 + $0x129] sm:$0xff]
      %v2055 = vld [vmem:[%s1836 + $0x139] sm:$0xff]
      %v2056 = vld [vmem:[%s1836 + $0x141] sm:$0xff]
      %v2057 = vld [vmem:[%s1836 + $0x151] sm:$0xff]
      %v2058 = vld [vmem:[%s1836 + $0x159] sm:$0xff]
      %v2059 = vld [vmem:[%s1836 + $0x169] sm:$0xff]
      %v2060 = vld [vmem:[%s1836 + $0x171] sm:$0xff]
      %2093 = vrot.lane.b32.xlu0 %v2029, 96
      %v2094 = vpop.permute.xlu0 %2093
      %2095 = vrot.lane.b32.xlu0 %v2030, 96
      %v2096 = vpop.permute.xlu0 %2095
      %2097 = vrot.lane.b32.xlu0 %v2031, 96
      %v2098 = vpop.permute.xlu0 %2097
      %2099 = vrot.lane.b32.xlu0 %v2032, 96
      %v2100 = vpop.permute.xlu0 %2099
      %2101 = vrot.lane.b32.xlu0 %v2033, 96
      %v2102 = vpop.permute.xlu0 %2101
      %2103 = vrot.lane.b32.xlu0 %v2034, 96
      %v2104 = vpop.permute.xlu0 %2103
      %2105 = vrot.lane.b32.xlu0 %v2035, 96
      %v2106 = vpop.permute.xlu0 %2105
      %2107 = vrot.lane.b32.xlu0 %v2036, 96
      %v2108 = vpop.permute.xlu0 %2107
      %2109 = vrot.lane.b32.xlu0 %v2037, 96
      %v2110 = vpop.permute.xlu0 %2109
      %2111 = vrot.lane.b32.xlu0 %v2038, 96
      %v2112 = vpop.permute.xlu0 %2111
      %2113 = vrot.lane.b32.xlu0 %v2039, 96
      %v2114 = vpop.permute.xlu0 %2113
      %2115 = vrot.lane.b32.xlu0 %v2040, 96
      %v2116 = vpop.permute.xlu0 %2115
      %2117 = vrot.lane.b32.xlu0 %v2041, 96
      %v2118 = vpop.permute.xlu0 %2117
      %2119 = vrot.lane.b32.xlu0 %v2042, 96
      %v2120 = vpop.permute.xlu0 %2119
      %2121 = vrot.lane.b32.xlu0 %v2043, 96
      %v2122 = vpop.permute.xlu0 %2121
      %2123 = vrot.lane.b32.xlu0 %v2044, 96
      %v2124 = vpop.permute.xlu0 %2123
      %2125 = vrot.lane.b32.xlu0 %v2045, 96
      %v2126 = vpop.permute.xlu0 %2125
      %2127 = vrot.lane.b32.xlu0 %v2046, 96
      %v2128 = vpop.permute.xlu0 %2127
      %2129 = vrot.lane.b32.xlu0 %v2047, 96
      %v2130 = vpop.permute.xlu0 %2129
      %2131 = vrot.lane.b32.xlu0 %v2048, 96
      %v2132 = vpop.permute.xlu0 %2131
      %2133 = vrot.lane.b32.xlu0 %v2049, 96
      %v2134 = vpop.permute.xlu0 %2133
      %2135 = vrot.lane.b32.xlu0 %v2050, 96
      %v2136 = vpop.permute.xlu0 %2135
      %2137 = vrot.lane.b32.xlu0 %v2051, 96
      %v2138 = vpop.permute.xlu0 %2137
      %2139 = vrot.lane.b32.xlu0 %v2052, 96
      %v2140 = vpop.permute.xlu0 %2139
      %2141 = vrot.lane.b32.xlu0 %v2053, 96
      %v2142 = vpop.permute.xlu0 %2141
      %2143 = vrot.lane.b32.xlu0 %v2054, 96
      %v2144 = vpop.permute.xlu0 %2143
      %2145 = vrot.lane.b32.xlu0 %v2055, 96
      %v2146 = vpop.permute.xlu0 %2145
      %2147 = vrot.lane.b32.xlu0 %v2056, 96
      %v2148 = vpop.permute.xlu0 %2147
      %2149 = vrot.lane.b32.xlu0 %v2057, 96
      %v2150 = vpop.permute.xlu0 %2149
      %2151 = vrot.lane.b32.xlu0 %v2058, 96
      %v2152 = vpop.permute.xlu0 %2151
      %2153 = vrot.lane.b32.xlu0 %v2059, 96
      %v2154 = vpop.permute.xlu0 %2153
      %2155 = vrot.lane.b32.xlu0 %v2060, 96
      %v2156 = vpop.permute.xlu0 %2155
      %2189 = vst.msk [vmem:[#allocation3 + $0x8] sm:$0xff] %vm1547, %v2094
      %2190 = vst.msk [vmem:[#allocation3 + $0x20] sm:$0xff] %vm1547, %v2096
      %2191 = vst.msk [vmem:[#allocation3 + $0x38] sm:$0xff] %vm1547, %v2098
      %2192 = vst.msk [vmem:[#allocation3 + $0x50] sm:$0xff] %vm1547, %v2100
      %2193 = vst.msk [vmem:[#allocation3 + $0x68] sm:$0xff] %vm1547, %v2102
      %2194 = vst.msk [vmem:[#allocation3 + $0x80] sm:$0xff] %vm1547, %v2104
      %2195 = vst.msk [vmem:[#allocation3 + $0x98] sm:$0xff] %vm1547, %v2106
      %2196 = vst.msk [vmem:[#allocation3 + $0xb0] sm:$0xff] %vm1547, %v2108
      %2197 = vst.msk [vmem:[#allocation3 + $0xc8] sm:$0xff] %vm1547, %v2110
      %2198 = vst.msk [vmem:[#allocation3 + $0xe0] sm:$0xff] %vm1547, %v2112
      %2199 = vst.msk [vmem:[#allocation3 + $0xf8] sm:$0xff] %vm1547, %v2114
      %2200 = vst.msk [vmem:[#allocation3 + $0x110] sm:$0xff] %vm1547, %v2116
      %2201 = vst.msk [vmem:[#allocation3 + $0x128] sm:$0xff] %vm1547, %v2118
      %2202 = vst.msk [vmem:[#allocation3 + $0x140] sm:$0xff] %vm1547, %v2120
      %2203 = vst.msk [vmem:[#allocation3 + $0x158] sm:$0xff] %vm1547, %v2122
      %2204 = vst.msk [vmem:[#allocation3 + $0x170] sm:$0xff] %vm1547, %v2124
      %2205 = vst.msk [vmem:[#allocation3 + $0x188] sm:$0xff] %vm1547, %v2126
      %2206 = vst.msk [vmem:[#allocation3 + $0x1a0] sm:$0xff] %vm1547, %v2128
      %2207 = vst.msk [vmem:[#allocation3 + $0x1b8] sm:$0xff] %vm1547, %v2130
      %2208 = vst.msk [vmem:[#allocation3 + $0x1d0] sm:$0xff] %vm1547, %v2132
      %2209 = vst.msk [vmem:[#allocation3 + $0x1e8] sm:$0xff] %vm1547, %v2134
      %2210 = vst.msk [vmem:[#allocation3 + $0x200] sm:$0xff] %vm1547, %v2136
      %2211 = vst.msk [vmem:[#allocation3 + $0x218] sm:$0xff] %vm1547, %v2138
      %2212 = vst.msk [vmem:[#allocation3 + $0x230] sm:$0xff] %vm1547, %v2140
      %2213 = vst.msk [vmem:[#allocation3 + $0x248] sm:$0xff] %vm1547, %v2142
      %2214 = vst.msk [vmem:[#allocation3 + $0x260] sm:$0xff] %vm1547, %v2144
      %2215 = vst.msk [vmem:[#allocation3 + $0x278] sm:$0xff] %vm1547, %v2146
      %2216 = vst.msk [vmem:[#allocation3 + $0x290] sm:$0xff] %vm1547, %v2148
      %2217 = vst.msk [vmem:[#allocation3 + $0x2a8] sm:$0xff] %vm1547, %v2150
      %2218 = vst.msk [vmem:[#allocation3 + $0x2c0] sm:$0xff] %vm1547, %v2152
      %2219 = vst.msk [vmem:[#allocation3 + $0x2d8] sm:$0xff] %vm1547, %v2154
      %2220 = vst.msk [vmem:[#allocation3 + $0x2f0] sm:$0xff] %vm1547, %v2156
      %v2221 = vld [vmem:[%s1836 + $0x2] sm:$0xff]
      %v2222 = vld [vmem:[%s1836 + $0xa] sm:$0xff]
      %v2223 = vld [vmem:[%s1836 + $0x1a] sm:$0xff]
      %v2224 = vld [vmem:[%s1836 + $0x22] sm:$0xff]
      %v2225 = vld [vmem:[%s1836 + $0x32] sm:$0xff]
      %v2226 = vld [vmem:[%s1836 + $0x3a] sm:$0xff]
      %v2227 = vld [vmem:[%s1836 + $0x4a] sm:$0xff]
      %v2228 = vld [vmem:[%s1836 + $0x52] sm:$0xff]
      %v2229 = vld [vmem:[%s1836 + $0x62] sm:$0xff]
      %v2230 = vld [vmem:[%s1836 + $0x6a] sm:$0xff]
      %v2231 = vld [vmem:[%s1836 + $0x7a] sm:$0xff]
      %v2232 = vld [vmem:[%s1836 + $0x82] sm:$0xff]
      %v2233 = vld [vmem:[%s1836 + $0x92] sm:$0xff]
      %v2234 = vld [vmem:[%s1836 + $0x9a] sm:$0xff]
      %v2235 = vld [vmem:[%s1836 + $0xaa] sm:$0xff]
      %v2236 = vld [vmem:[%s1836 + $0xb2] sm:$0xff]
      %v2237 = vld [vmem:[%s1836 + $0xc2] sm:$0xff]
      %v2238 = vld [vmem:[%s1836 + $0xca] sm:$0xff]
      %v2239 = vld [vmem:[%s1836 + $0xda] sm:$0xff]
      %v2240 = vld [vmem:[%s1836 + $0xe2] sm:$0xff]
      %v2241 = vld [vmem:[%s1836 + $0xf2] sm:$0xff]
      %v2242 = vld [vmem:[%s1836 + $0xfa] sm:$0xff]
      %v2243 = vld [vmem:[%s1836 + $0x10a] sm:$0xff]
      %v2244 = vld [vmem:[%s1836 + $0x112] sm:$0xff]
      %v2245 = vld [vmem:[%s1836 + $0x122] sm:$0xff]
      %v2246 = vld [vmem:[%s1836 + $0x12a] sm:$0xff]
      %v2247 = vld [vmem:[%s1836 + $0x13a] sm:$0xff]
      %v2248 = vld [vmem:[%s1836 + $0x142] sm:$0xff]
      %v2249 = vld [vmem:[%s1836 + $0x152] sm:$0xff]
      %v2250 = vld [vmem:[%s1836 + $0x15a] sm:$0xff]
      %v2251 = vld [vmem:[%s1836 + $0x16a] sm:$0xff]
      %v2252 = vld [vmem:[%s1836 + $0x172] sm:$0xff]
      %2253 = vst.msk [vmem:[#allocation3 + $0x10] sm:$0xff] %vm858, %v2221
      %2254 = vst.msk [vmem:[#allocation3 + $0x28] sm:$0xff] %vm858, %v2222
      %2255 = vst.msk [vmem:[#allocation3 + $0x40] sm:$0xff] %vm858, %v2223
      %2256 = vst.msk [vmem:[#allocation3 + $0x58] sm:$0xff] %vm858, %v2224
      %2257 = vst.msk [vmem:[#allocation3 + $0x70] sm:$0xff] %vm858, %v2225
      %2258 = vst.msk [vmem:[#allocation3 + $0x88] sm:$0xff] %vm858, %v2226
      %2259 = vst.msk [vmem:[#allocation3 + $0xa0] sm:$0xff] %vm858, %v2227
      %2260 = vst.msk [vmem:[#allocation3 + $0xb8] sm:$0xff] %vm858, %v2228
      %2261 = vst.msk [vmem:[#allocation3 + $0xd0] sm:$0xff] %vm858, %v2229
      %2262 = vst.msk [vmem:[#allocation3 + $0xe8] sm:$0xff] %vm858, %v2230
      %2263 = vst.msk [vmem:[#allocation3 + $0x100] sm:$0xff] %vm858, %v2231
      %2264 = vst.msk [vmem:[#allocation3 + $0x118] sm:$0xff] %vm858, %v2232
      %2265 = vst.msk [vmem:[#allocation3 + $0x130] sm:$0xff] %vm858, %v2233
      %2266 = vst.msk [vmem:[#allocation3 + $0x148] sm:$0xff] %vm858, %v2234
      %2267 = vst.msk [vmem:[#allocation3 + $0x160] sm:$0xff] %vm858, %v2235
      %2268 = vst.msk [vmem:[#allocation3 + $0x178] sm:$0xff] %vm858, %v2236
      %2269 = vst.msk [vmem:[#allocation3 + $0x190] sm:$0xff] %vm858, %v2237
      %2270 = vst.msk [vmem:[#allocation3 + $0x1a8] sm:$0xff] %vm858, %v2238
      %2271 = vst.msk [vmem:[#allocation3 + $0x1c0] sm:$0xff] %vm858, %v2239
      %2272 = vst.msk [vmem:[#allocation3 + $0x1d8] sm:$0xff] %vm858, %v2240
      %2273 = vst.msk [vmem:[#allocation3 + $0x1f0] sm:$0xff] %vm858, %v2241
      %2274 = vst.msk [vmem:[#allocation3 + $0x208] sm:$0xff] %vm858, %v2242
      %2275 = vst.msk [vmem:[#allocation3 + $0x220] sm:$0xff] %vm858, %v2243
      %2276 = vst.msk [vmem:[#allocation3 + $0x238] sm:$0xff] %vm858, %v2244
      %2277 = vst.msk [vmem:[#allocation3 + $0x250] sm:$0xff] %vm858, %v2245
      %2278 = vst.msk [vmem:[#allocation3 + $0x268] sm:$0xff] %vm858, %v2246
      %2279 = vst.msk [vmem:[#allocation3 + $0x280] sm:$0xff] %vm858, %v2247
      %2280 = vst.msk [vmem:[#allocation3 + $0x298] sm:$0xff] %vm858, %v2248
      %2281 = vst.msk [vmem:[#allocation3 + $0x2b0] sm:$0xff] %vm858, %v2249
      %2282 = vst.msk [vmem:[#allocation3 + $0x2c8] sm:$0xff] %vm858, %v2250
      %2283 = vst.msk [vmem:[#allocation3 + $0x2e0] sm:$0xff] %vm858, %v2251
      %2284 = vst.msk [vmem:[#allocation3 + $0x2f8] sm:$0xff] %vm858, %v2252
      %v2285 = vld [vmem:[#allocation3] sm:$0xff]
      %v2286 = vld [vmem:[#allocation3 + $0x8] sm:$0xff]
      %v2287 = vld [vmem:[#allocation3 + $0x10] sm:$0xff]
      %v2288 = vld [vmem:[#allocation3 + $0x18] sm:$0xff]
      %v2289 = vld [vmem:[#allocation3 + $0x20] sm:$0xff]
      %v2290 = vld [vmem:[#allocation3 + $0x28] sm:$0xff]
      %v2291 = vld [vmem:[#allocation3 + $0x30] sm:$0xff]
      %v2292 = vld [vmem:[#allocation3 + $0x38] sm:$0xff]
      %v2293 = vld [vmem:[#allocation3 + $0x40] sm:$0xff]
      %v2294 = vld [vmem:[#allocation3 + $0x48] sm:$0xff]
      %v2295 = vld [vmem:[#allocation3 + $0x50] sm:$0xff]
      %v2296 = vld [vmem:[#allocation3 + $0x58] sm:$0xff]
      %v2297 = vld [vmem:[#allocation3 + $0x60] sm:$0xff]
      %v2298 = vld [vmem:[#allocation3 + $0x68] sm:$0xff]
      %v2299 = vld [vmem:[#allocation3 + $0x70] sm:$0xff]
      %v2300 = vld [vmem:[#allocation3 + $0x78] sm:$0xff]
      %v2301 = vld [vmem:[#allocation3 + $0x80] sm:$0xff]
      %v2302 = vld [vmem:[#allocation3 + $0x88] sm:$0xff]
      %v2303 = vld [vmem:[#allocation3 + $0x90] sm:$0xff]
      %v2304 = vld [vmem:[#allocation3 + $0x98] sm:$0xff]
      %v2305 = vld [vmem:[#allocation3 + $0xa0] sm:$0xff]
      %v2306 = vld [vmem:[#allocation3 + $0xa8] sm:$0xff]
      %v2307 = vld [vmem:[#allocation3 + $0xb0] sm:$0xff]
      %v2308 = vld [vmem:[#allocation3 + $0xb8] sm:$0xff]
      %v2309 = vld [vmem:[#allocation3 + $0xc0] sm:$0xff]
      %v2310 = vld [vmem:[#allocation3 + $0xc8] sm:$0xff]
      %v2311 = vld [vmem:[#allocation3 + $0xd0] sm:$0xff]
      %v2312 = vld [vmem:[#allocation3 + $0xd8] sm:$0xff]
      %v2313 = vld [vmem:[#allocation3 + $0xe0] sm:$0xff]
      %v2314 = vld [vmem:[#allocation3 + $0xe8] sm:$0xff]
      %v2315 = vld [vmem:[#allocation3 + $0xf0] sm:$0xff]
      %v2316 = vld [vmem:[#allocation3 + $0xf8] sm:$0xff]
      %v2317 = vld [vmem:[#allocation3 + $0x100] sm:$0xff]
      %v2318 = vld [vmem:[#allocation3 + $0x108] sm:$0xff]
      %v2319 = vld [vmem:[#allocation3 + $0x110] sm:$0xff]
      %v2320 = vld [vmem:[#allocation3 + $0x118] sm:$0xff]
      %v2321 = vld [vmem:[#allocation3 + $0x120] sm:$0xff]
      %v2322 = vld [vmem:[#allocation3 + $0x128] sm:$0xff]
      %v2323 = vld [vmem:[#allocation3 + $0x130] sm:$0xff]
      %v2324 = vld [vmem:[#allocation3 + $0x138] sm:$0xff]
      %v2325 = vld [vmem:[#allocation3 + $0x140] sm:$0xff]
      %v2326 = vld [vmem:[#allocation3 + $0x148] sm:$0xff]
      %v2327 = vld [vmem:[#allocation3 + $0x150] sm:$0xff]
      %v2328 = vld [vmem:[#allocation3 + $0x158] sm:$0xff]
      %v2329 = vld [vmem:[#allocation3 + $0x160] sm:$0xff]
      %v2330 = vld [vmem:[#allocation3 + $0x168] sm:$0xff]
      %v2331 = vld [vmem:[#allocation3 + $0x170] sm:$0xff]
      %v2332 = vld [vmem:[#allocation3 + $0x178] sm:$0xff]
      %v2333 = vld [vmem:[#allocation3 + $0x180] sm:$0xff]
      %v2334 = vld [vmem:[#allocation3 + $0x188] sm:$0xff]
      %v2335 = vld [vmem:[#allocation3 + $0x190] sm:$0xff]
      %v2336 = vld [vmem:[#allocation3 + $0x198] sm:$0xff]
      %v2337 = vld [vmem:[#allocation3 + $0x1a0] sm:$0xff]
      %v2338 = vld [vmem:[#allocation3 + $0x1a8] sm:$0xff]
      %v2339 = vld [vmem:[#allocation3 + $0x1b0] sm:$0xff]
      %v2340 = vld [vmem:[#allocation3 + $0x1b8] sm:$0xff]
      %v2341 = vld [vmem:[#allocation3 + $0x1c0] sm:$0xff]
      %v2342 = vld [vmem:[#allocation3 + $0x1c8] sm:$0xff]
      %v2343 = vld [vmem:[#allocation3 + $0x1d0] sm:$0xff]
      %v2344 = vld [vmem:[#allocation3 + $0x1d8] sm:$0xff]
      %v2345 = vld [vmem:[#allocation3 + $0x1e0] sm:$0xff]
      %v2346 = vld [vmem:[#allocation3 + $0x1e8] sm:$0xff]
      %v2347 = vld [vmem:[#allocation3 + $0x1f0] sm:$0xff]
      %v2348 = vld [vmem:[#allocation3 + $0x1f8] sm:$0xff]
      %v2349 = vld [vmem:[#allocation3 + $0x200] sm:$0xff]
      %v2350 = vld [vmem:[#allocation3 + $0x208] sm:$0xff]
      %v2351 = vld [vmem:[#allocation3 + $0x210] sm:$0xff]
      %v2352 = vld [vmem:[#allocation3 + $0x218] sm:$0xff]
      %v2353 = vld [vmem:[#allocation3 + $0x220] sm:$0xff]
      %v2354 = vld [vmem:[#allocation3 + $0x228] sm:$0xff]
      %v2355 = vld [vmem:[#allocation3 + $0x230] sm:$0xff]
      %v2356 = vld [vmem:[#allocation3 + $0x238] sm:$0xff]
      %v2357 = vld [vmem:[#allocation3 + $0x240] sm:$0xff]
      %v2358 = vld [vmem:[#allocation3 + $0x248] sm:$0xff]
      %v2359 = vld [vmem:[#allocation3 + $0x250] sm:$0xff]
      %v2360 = vld [vmem:[#allocation3 + $0x258] sm:$0xff]
      %v2361 = vld [vmem:[#allocation3 + $0x260] sm:$0xff]
      %v2362 = vld [vmem:[#allocation3 + $0x268] sm:$0xff]
      %v2363 = vld [vmem:[#allocation3 + $0x270] sm:$0xff]
      %v2364 = vld [vmem:[#allocation3 + $0x278] sm:$0xff]
      %v2365 = vld [vmem:[#allocation3 + $0x280] sm:$0xff]
      %v2366 = vld [vmem:[#allocation3 + $0x288] sm:$0xff]
      %v2367 = vld [vmem:[#allocation3 + $0x290] sm:$0xff]
      %v2368 = vld [vmem:[#allocation3 + $0x298] sm:$0xff]
      %v2369 = vld [vmem:[#allocation3 + $0x2a0] sm:$0xff]
      %v2370 = vld [vmem:[#allocation3 + $0x2a8] sm:$0xff]
      %v2371 = vld [vmem:[#allocation3 + $0x2b0] sm:$0xff]
      %v2372 = vld [vmem:[#allocation3 + $0x2b8] sm:$0xff]
      %v2373 = vld [vmem:[#allocation3 + $0x2c0] sm:$0xff]
      %v2374 = vld [vmem:[#allocation3 + $0x2c8] sm:$0xff]
      %v2375 = vld [vmem:[#allocation3 + $0x2d0] sm:$0xff]
      %v2376 = vld [vmem:[#allocation3 + $0x2d8] sm:$0xff]
      %v2377 = vld [vmem:[#allocation3 + $0x2e0] sm:$0xff]
      %v2378 = vld [vmem:[#allocation3 + $0x2e8] sm:$0xff]
      %v2379 = vld [vmem:[#allocation3 + $0x2f0] sm:$0xff]
      %v2380 = vld [vmem:[#allocation3 + $0x2f8] sm:$0xff]
      %v2381 = vld [vmem:[%s4] sm:$0xff]
      %v2382 = vld [vmem:[%s4 + $0x8] sm:$0xff]
      %v2383 = vld [vmem:[%s4 + $0x10] sm:$0xff]
      %v2384 = vld [vmem:[%s4 + $0x18] sm:$0xff]
      %v2385 = vld [vmem:[%s4 + $0x20] sm:$0xff]
      %v2386 = vld [vmem:[%s4 + $0x28] sm:$0xff]
      %v2387 = vld [vmem:[%s4 + $0x30] sm:$0xff]
      %v2388 = vld [vmem:[%s4 + $0x38] sm:$0xff]
      %v2389 = vld [vmem:[%s4 + $0x40] sm:$0xff]
      %v2390 = vld [vmem:[%s4 + $0x48] sm:$0xff]
      %v2391 = vld [vmem:[%s4 + $0x50] sm:$0xff]
      %v2392 = vld [vmem:[%s4 + $0x58] sm:$0xff]
      %v2393 = vld [vmem:[%s4 + $0x60] sm:$0xff]
      %v2394 = vld [vmem:[%s4 + $0x68] sm:$0xff]
      %v2395 = vld [vmem:[%s4 + $0x70] sm:$0xff]
      %v2396 = vld [vmem:[%s4 + $0x78] sm:$0xff]
      %v2397 = vld [vmem:[%s4 + $0x80] sm:$0xff]
      %v2398 = vld [vmem:[%s4 + $0x88] sm:$0xff]
      %v2399 = vld [vmem:[%s4 + $0x90] sm:$0xff]
      %v2400 = vld [vmem:[%s4 + $0x98] sm:$0xff]
      %v2401 = vld [vmem:[%s4 + $0xa0] sm:$0xff]
      %v2402 = vld [vmem:[%s4 + $0xa8] sm:$0xff]
      %v2403 = vld [vmem:[%s4 + $0xb0] sm:$0xff]
      %v2404 = vld [vmem:[%s4 + $0xb8] sm:$0xff]
      %v2405 = vld [vmem:[%s4 + $0xc0] sm:$0xff]
      %v2406 = vld [vmem:[%s4 + $0xc8] sm:$0xff]
      %v2407 = vld [vmem:[%s4 + $0xd0] sm:$0xff]
      %v2408 = vld [vmem:[%s4 + $0xd8] sm:$0xff]
      %v2409 = vld [vmem:[%s4 + $0xe0] sm:$0xff]
      %v2410 = vld [vmem:[%s4 + $0xe8] sm:$0xff]
      %v2411 = vld [vmem:[%s4 + $0xf0] sm:$0xff]
      %v2412 = vld [vmem:[%s4 + $0xf8] sm:$0xff]
      %v2413 = vld [vmem:[%s4 + $0x100] sm:$0xff]
      %v2414 = vld [vmem:[%s4 + $0x108] sm:$0xff]
      %v2415 = vld [vmem:[%s4 + $0x110] sm:$0xff]
      %v2416 = vld [vmem:[%s4 + $0x118] sm:$0xff]
      %v2418 = vsel %vm858, %v2287, 0
      %v2421 = vsel %vm858, %v2290, 0
      %v2424 = vsel %vm858, %v2293, 0
      %v2427 = vsel %vm858, %v2296, 0
      %v2430 = vsel %vm858, %v2299, 0
      %v2433 = vsel %vm858, %v2302, 0
      %v2436 = vsel %vm858, %v2305, 0
      %v2439 = vsel %vm858, %v2308, 0
      %v2442 = vsel %vm858, %v2311, 0
      %v2445 = vsel %vm858, %v2314, 0
      %v2448 = vsel %vm858, %v2317, 0
      %v2451 = vsel %vm858, %v2320, 0
      %v2454 = vsel %vm858, %v2323, 0
      %v2457 = vsel %vm858, %v2326, 0
      %v2460 = vsel %vm858, %v2329, 0
      %v2463 = vsel %vm858, %v2332, 0
      %v2466 = vsel %vm858, %v2335, 0
      %v2469 = vsel %vm858, %v2338, 0
      %v2472 = vsel %vm858, %v2341, 0
      %v2475 = vsel %vm858, %v2344, 0
      %v2478 = vsel %vm858, %v2347, 0
      %v2481 = vsel %vm858, %v2350, 0
      %v2484 = vsel %vm858, %v2353, 0
      %v2487 = vsel %vm858, %v2356, 0
      %v2490 = vsel %vm858, %v2359, 0
      %v2493 = vsel %vm858, %v2362, 0
      %v2496 = vsel %vm858, %v2365, 0
      %v2499 = vsel %vm858, %v2368, 0
      %v2502 = vsel %vm858, %v2371, 0
      %v2505 = vsel %vm858, %v2374, 0
      %v2508 = vsel %vm858, %v2377, 0
      %v2511 = vsel %vm858, %v2380, 0
      %2513 = vmatprep.subr.mxu0 0.0
      %2514 = vmatpush1.msra.mxu0 %v2381
      %2515 = vmatprep.subr.mxu0 0.0
      %2516 = vmatpush1.msra.mxu0 %v2382
      %2517 = vmatprep.subr.mxu0 0.0
      %2518 = vmatpush1.msra.mxu0 %v2383
      %2519 = vmatprep.subr.mxu0 0.0
      %2520 = vmatpush1.msra.mxu0 %v2384
      %2521 = vmatprep.subr.mxu0 0.0
      %2522 = vmatpush1.msra.mxu0 %v2385
      %2523 = vmatprep.subr.mxu0 0.0
      %2524 = vmatpush1.msra.mxu0 %v2386
      %2525 = vmatprep.subr.mxu0 0.0
      %2526 = vmatpush1.msra.mxu0 %v2387
      %2527 = vmatprep.subr.mxu0 0.0
      %2528 = vmatpush1.msra.mxu0 %v2388
      %2529 = vmatprep.subr.mxu0 0.0
      %2530 = vmatpush1.msra.mxu0 %v2389
      %2531 = vmatprep.subr.mxu0 0.0
      %2532 = vmatpush1.msra.mxu0 %v2390
      %2533 = vmatprep.subr.mxu0 0.0
      %2534 = vmatpush1.msra.mxu0 %v2391
      %2535 = vmatprep.subr.mxu0 0.0
      %2536 = vmatpush1.msra.mxu0 %v2392
      %2537 = vmatprep.subr.mxu0 0.0
      %2538 = vmatpush1.msra.mxu0 %v2393
      %2539 = vmatprep.subr.mxu0 0.0
      %2540 = vmatpush1.msra.mxu0 %v2394
      %2541 = vmatprep.subr.mxu0 0.0
      %2542 = vmatpush1.msra.mxu0 %v2395
      %2543 = vmatprep.subr.mxu0 0.0
      %2544 = vmatpush1.msra.mxu0 %v2396
      %2545 = vmatprep.subr.mxu0 0.0
      %2546 = vmatpush1.msra.mxu0 %v2397
      %2547 = vmatprep.subr.mxu0 0.0
      %2548 = vmatpush1.msra.mxu0 %v2398
      %2549 = vmatprep.subr.mxu0 0.0
      %2550 = vmatpush1.msra.mxu0 %v2399
      %2551 = vmatprep.subr.mxu0 0.0
      %2552 = vmatpush1.msra.mxu0 %v2400
      %2553 = vmatprep.subr.mxu0 0.0
      %2554 = vmatpush1.msra.mxu0 %v2401
      %2555 = vmatprep.subr.mxu0 0.0
      %2556 = vmatpush1.msra.mxu0 %v2402
      %2557 = vmatprep.subr.mxu0 0.0
      %2558 = vmatpush1.msra.mxu0 %v2403
      %2559 = vmatprep.subr.mxu0 0.0
      %2560 = vmatpush1.msra.mxu0 %v2404
      %2561 = vmatprep.subr.mxu0 0.0
      %2562 = vmatpush1.msra.mxu0 %v2405
      %2563 = vmatprep.subr.mxu0 0.0
      %2564 = vmatpush1.msra.mxu0 %v2406
      %2565 = vmatprep.subr.mxu0 0.0
      %2566 = vmatpush1.msra.mxu0 %v2407
      %2567 = vmatprep.subr.mxu0 0.0
      %2568 = vmatpush1.msra.mxu0 %v2408
      %2569 = vmatprep.subr.mxu0 0.0
      %2570 = vmatpush1.msra.mxu0 %v2409
      %2571 = vmatprep.subr.mxu0 0.0
      %2572 = vmatpush1.msra.mxu0 %v2410
      %2573 = vmatprep.subr.mxu0 0.0
      %2574 = vmatpush1.msra.mxu0 %v2411
      %2575 = vmatprep.subr.mxu0 0.0
      %2576 = vmatpush1.msra.mxu0 %v2412
      %2577 = vmatprep.mubr.f32.mxu0 %v2286
      %2578 = vmatmul.mubr.f32.gmra.mrb[0].mxu0 %v2285
      %v2579 = vpop.f32.mrb[0].mxu0
      %v2580 = vadd.f32 0.0, %v2579
      %v2581 = vpop.f32.mrb[0].mxu0
      %2582 = vmatprep.mubr.f32.mxu0 %v2289
      %2583 = vmatmul.mubr.f32.gmra.mrb[0].mxu0 %v2288
      %v2584 = vpop.f32.mrb[0].mxu0
      %v2585 = vadd.f32 0.0, %v2584
      %v2586 = vpop.f32.mrb[0].mxu0
      %2587 = vmatprep.mubr.f32.mxu0 %v2292
      %2588 = vmatmul.mubr.f32.gmra.mrb[0].mxu0 %v2291
      %v2589 = vpop.f32.mrb[0].mxu0
      %v2590 = vadd.f32 0.0, %v2589
      %v2591 = vpop.f32.mrb[0].mxu0
      %2592 = vmatprep.mubr.f32.mxu0 %v2295
      %2593 = vmatmul.mubr.f32.gmra.mrb[0].mxu0 %v2294
      %v2594 = vpop.f32.mrb[0].mxu0
      %v2595 = vadd.f32 0.0, %v2594
      %v2596 = vpop.f32.mrb[0].mxu0
      %2597 = vmatprep.mubr.f32.mxu0 %v2298
      %2598 = vmatmul.mubr.f32.gmra.mrb[0].mxu0 %v2297
      %v2599 = vpop.f32.mrb[0].mxu0
      %v2600 = vadd.f32 0.0, %v2599
      %v2601 = vpop.f32.mrb[0].mxu0
      %2602 = vmatprep.mubr.f32.mxu0 %v2301
      %2603 = vmatmul.mubr.f32.gmra.mrb[0].mxu0 %v2300
      %v2604 = vpop.f32.mrb[0].mxu0
      %v2605 = vadd.f32 0.0, %v2604
      %v2606 = vpop.f32.mrb[0].mxu0
      %2607 = vmatprep.mubr.f32.mxu0 %v2304
      %2608 = vmatmul.mubr.f32.gmra.mrb[0].mxu0 %v2303
      %v2609 = vpop.f32.mrb[0].mxu0
      %v2610 = vadd.f32 0.0, %v2609
      %v2611 = vpop.f32.mrb[0].mxu0
      %2612 = vmatprep.mubr.f32.mxu0 %v2307
      %2613 = vmatmul.mubr.f32.gmra.mrb[0].mxu0 %v2306
      %v2614 = vpop.f32.mrb[0].mxu0
      %v2615 = vadd.f32 0.0, %v2614
      %v2616 = vpop.f32.mrb[0].mxu0
      %2617 = vmatprep.mubr.f32.mxu0 %v2310
      %2618 = vmatmul.mubr.f32.gmra.mrb[0].mxu0 %v2309
      %v2619 = vpop.f32.mrb[0].mxu0
      %v2620 = vadd.f32 0.0, %v2619
      %v2621 = vpop.f32.mrb[0].mxu0
      %2622 = vmatprep.mubr.f32.mxu0 %v2313
      %2623 = vmatmul.mubr.f32.gmra.mrb[0].mxu0 %v2312
      %v2624 = vpop.f32.mrb[0].mxu0
      %v2625 = vadd.f32 0.0, %v2624
      %v2626 = vpop.f32.mrb[0].mxu0
      %2627 = vmatprep.mubr.f32.mxu0 %v2316
      %2628 = vmatmul.mubr.f32.gmra.mrb[0].mxu0 %v2315
      %v2629 = vpop.f32.mrb[0].mxu0
      %v2630 = vadd.f32 0.0, %v2629
      %v2631 = vpop.f32.mrb[0].mxu0
      %2632 = vmatprep.mubr.f32.mxu0 %v2319
      %2633 = vmatmul.mubr.f32.gmra.mrb[0].mxu0 %v2318
      %v2634 = vpop.f32.mrb[0].mxu0
      %v2635 = vadd.f32 0.0, %v2634
      %v2636 = vpop.f32.mrb[0].mxu0
      %2637 = vmatprep.mubr.f32.mxu0 %v2322
      %2638 = vmatmul.mubr.f32.gmra.mrb[0].mxu0 %v2321
      %v2639 = vpop.f32.mrb[0].mxu0
      %v2640 = vadd.f32 0.0, %v2639
      %v2641 = vpop.f32.mrb[0].mxu0
      %2642 = vmatprep.mubr.f32.mxu0 %v2325
      %2643 = vmatmul.mubr.f32.gmra.mrb[0].mxu0 %v2324
      %v2644 = vpop.f32.mrb[0].mxu0
      %v2645 = vadd.f32 0.0, %v2644
      %v2646 = vpop.f32.mrb[0].mxu0
      %2647 = vmatprep.mubr.f32.mxu0 %v2328
      %2648 = vmatmul.mubr.f32.gmra.mrb[0].mxu0 %v2327
      %v2649 = vpop.f32.mrb[0].mxu0
      %v2650 = vadd.f32 0.0, %v2649
      %v2651 = vpop.f32.mrb[0].mxu0
      %2652 = vmatprep.mubr.f32.mxu0 %v2331
      %2653 = vmatmul.mubr.f32.gmra.mrb[0].mxu0 %v2330
      %v2654 = vpop.f32.mrb[0].mxu0
      %v2655 = vadd.f32 0.0, %v2654
      %v2656 = vpop.f32.mrb[0].mxu0
      %2657 = vmatprep.mubr.f32.mxu0 %v2334
      %2658 = vmatmul.mubr.f32.gmra.mrb[0].mxu0 %v2333
      %v2659 = vpop.f32.mrb[0].mxu0
      %v2660 = vadd.f32 0.0, %v2659
      %v2661 = vpop.f32.mrb[0].mxu0
      %2662 = vmatprep.mubr.f32.mxu0 %v2337
      %2663 = vmatmul.mubr.f32.gmra.mrb[0].mxu0 %v2336
      %v2664 = vpop.f32.mrb[0].mxu0
      %v2665 = vadd.f32 0.0, %v2664
      %v2666 = vpop.f32.mrb[0].mxu0
      %2667 = vmatprep.mubr.f32.mxu0 %v2340
      %2668 = vmatmul.mubr.f32.gmra.mrb[0].mxu0 %v2339
      %v2669 = vpop.f32.mrb[0].mxu0
      %v2670 = vadd.f32 0.0, %v2669
      %v2671 = vpop.f32.mrb[0].mxu0
      %2672 = vmatprep.mubr.f32.mxu0 %v2343
      %2673 = vmatmul.mubr.f32.gmra.mrb[0].mxu0 %v2342
      %v2674 = vpop.f32.mrb[0].mxu0
      %v2675 = vadd.f32 0.0, %v2674
      %v2676 = vpop.f32.mrb[0].mxu0
      %2677 = vmatprep.mubr.f32.mxu0 %v2346
      %2678 = vmatmul.mubr.f32.gmra.mrb[0].mxu0 %v2345
      %v2679 = vpop.f32.mrb[0].mxu0
      %v2680 = vadd.f32 0.0, %v2679
      %v2681 = vpop.f32.mrb[0].mxu0
      %2682 = vmatprep.mubr.f32.mxu0 %v2349
      %2683 = vmatmul.mubr.f32.gmra.mrb[0].mxu0 %v2348
      %v2684 = vpop.f32.mrb[0].mxu0
      %v2685 = vadd.f32 0.0, %v2684
      %v2686 = vpop.f32.mrb[0].mxu0
      %2687 = vmatprep.mubr.f32.mxu0 %v2352
      %2688 = vmatmul.mubr.f32.gmra.mrb[0].mxu0 %v2351
      %v2689 = vpop.f32.mrb[0].mxu0
      %v2690 = vadd.f32 0.0, %v2689
      %v2691 = vpop.f32.mrb[0].mxu0
      %2692 = vmatprep.mubr.f32.mxu0 %v2355
      %2693 = vmatmul.mubr.f32.gmra.mrb[0].mxu0 %v2354
      %v2694 = vpop.f32.mrb[0].mxu0
      %v2695 = vadd.f32 0.0, %v2694
      %v2696 = vpop.f32.mrb[0].mxu0
      %2697 = vmatprep.mubr.f32.mxu0 %v2358
      %2698 = vmatmul.mubr.f32.gmra.mrb[0].mxu0 %v2357
      %v2699 = vpop.f32.mrb[0].mxu0
      %v2700 = vadd.f32 0.0, %v2699
      %v2701 = vpop.f32.mrb[0].mxu0
      %2702 = vmatprep.mubr.f32.mxu0 %v2361
      %2703 = vmatmul.mubr.f32.gmra.mrb[0].mxu0 %v2360
      %v2704 = vpop.f32.mrb[0].mxu0
      %v2705 = vadd.f32 0.0, %v2704
      %v2706 = vpop.f32.mrb[0].mxu0
      %2707 = vmatprep.mubr.f32.mxu0 %v2364
      %2708 = vmatmul.mubr.f32.gmra.mrb[0].mxu0 %v2363
      %v2709 = vpop.f32.mrb[0].mxu0
      %v2710 = vadd.f32 0.0, %v2709
      %v2711 = vpop.f32.mrb[0].mxu0
      %2712 = vmatprep.mubr.f32.mxu0 %v2367
      %2713 = vmatmul.mubr.f32.gmra.mrb[0].mxu0 %v2366
      %v2714 = vpop.f32.mrb[0].mxu0
      %v2715 = vadd.f32 0.0, %v2714
      %v2716 = vpop.f32.mrb[0].mxu0
      %2717 = vmatprep.mubr.f32.mxu0 %v2370
      %2718 = vmatmul.mubr.f32.gmra.mrb[0].mxu0 %v2369
      %v2719 = vpop.f32.mrb[0].mxu0
      %v2720 = vadd.f32 0.0, %v2719
      %v2721 = vpop.f32.mrb[0].mxu0
      %2722 = vmatprep.mubr.f32.mxu0 %v2373
      %2723 = vmatmul.mubr.f32.gmra.mrb[0].mxu0 %v2372
      %v2724 = vpop.f32.mrb[0].mxu0
      %v2725 = vadd.f32 0.0, %v2724
      %v2726 = vpop.f32.mrb[0].mxu0
      %2727 = vmatprep.mubr.f32.mxu0 %v2376
      %2728 = vmatmul.mubr.f32.gmra.mrb[0].mxu0 %v2375
      %v2729 = vpop.f32.mrb[0].mxu0
      %v2730 = vadd.f32 0.0, %v2729
      %v2731 = vpop.f32.mrb[0].mxu0
      %2732 = vmatprep.mubr.f32.mxu0 %v2379
      %2733 = vmatmul.mubr.f32.gmra.mrb[0].mxu0 %v2378
      %v2734 = vpop.f32.mrb[0].mxu0
      %v2735 = vadd.f32 0.0, %v2734
      %v2736 = vpop.f32.mrb[0].mxu0
      %2737 = vdwg.mxu0
      %2738 = vmatprep.subr.mxu0 0.0
      %2739 = vmatpush1.msra.mxu0 %v2413
      %2740 = vmatprep.subr.mxu0 0.0
      %2741 = vmatpush1.msra.mxu0 %v2414
      %2742 = vmatprep.subr.mxu0 0.0
      %2743 = vmatpush1.msra.mxu0 %v2415
      %2744 = vmatprep.subr.mxu0 0.0
      %2745 = vmatpush1.msra.mxu0 %v2416
      %2746 = vmatprep.subr.mxu0 0.0
      %2747 = vmatpush1.msra.mxu0 0.0
      %2748 = vmatprep.subr.mxu0 0.0
      %2749 = vmatpush1.msra.mxu0 0.0
      %2750 = vmatprep.subr.mxu0 0.0
      %2751 = vmatpush1.msra.mxu0 0.0
      %2752 = vmatprep.subr.mxu0 0.0
      %2753 = vmatpush1.msra.mxu0 0.0
      %2754 = vmatprep.subr.mxu0 0.0
      %2755 = vmatpush1.msra.mxu0 0.0
      %2756 = vmatprep.subr.mxu0 0.0
      %2757 = vmatpush1.msra.mxu0 0.0
      %2758 = vmatprep.subr.mxu0 0.0
      %2759 = vmatpush1.msra.mxu0 0.0
      %2760 = vmatprep.subr.mxu0 0.0
      %2761 = vmatpush1.msra.mxu0 0.0
      %2762 = vmatprep.subr.mxu0 0.0
      %2763 = vmatpush1.msra.mxu0 0.0
      %2764 = vmatprep.subr.mxu0 0.0
      %2765 = vmatpush1.msra.mxu0 0.0
      %2766 = vmatprep.subr.mxu0 0.0
      %2767 = vmatpush1.msra.mxu0 0.0
      %2768 = vmatprep.subr.mxu0 0.0
      %2769 = vmatpush1.msra.mxu0 0.0
      %2770 = vmatprep.subr.mxu0 0.0
      %2771 = vmatpush1.msra.mxu0 0.0
      %2772 = vmatprep.subr.mxu0 0.0
      %2773 = vmatpush1.msra.mxu0 0.0
      %2774 = vmatprep.subr.mxu0 0.0
      %2775 = vmatpush1.msra.mxu0 0.0
      %2776 = vmatprep.subr.mxu0 0.0
      %2777 = vmatpush1.msra.mxu0 0.0
      %2778 = vmatprep.subr.mxu0 0.0
      %2779 = vmatpush1.msra.mxu0 0.0
      %2780 = vmatprep.subr.mxu0 0.0
      %2781 = vmatpush1.msra.mxu0 0.0
      %2782 = vmatprep.subr.mxu0 0.0
      %2783 = vmatpush1.msra.mxu0 0.0
      %2784 = vmatprep.subr.mxu0 0.0
      %2785 = vmatpush1.msra.mxu0 0.0
      %2786 = vmatprep.subr.mxu0 0.0
      %2787 = vmatpush1.msra.mxu0 0.0
      %2788 = vmatprep.subr.mxu0 0.0
      %2789 = vmatpush1.msra.mxu0 0.0
      %2790 = vmatprep.subr.mxu0 0.0
      %2791 = vmatpush1.msra.mxu0 0.0
      %2792 = vmatprep.subr.mxu0 0.0
      %2793 = vmatpush1.msra.mxu0 0.0
      %2794 = vmatprep.subr.mxu0 0.0
      %2795 = vmatpush1.msra.mxu0 0.0
      %2796 = vmatprep.subr.mxu0 0.0
      %2797 = vmatpush1.msra.mxu0 0.0
      %2798 = vmatprep.subr.mxu0 0.0
      %2799 = vmatpush1.msra.mxu0 0.0
      %2800 = vmatprep.subr.mxu0 0.0
      %2801 = vmatpush1.msra.mxu0 0.0
      %2802 = vmatprep.mubr.f32.mxu0 0.0
      %2803 = vmatmul.mubr.f32.gmra.mrb[0].mxu0 %v2418
      %v2804 = vpop.f32.mrb[0].mxu0
      %v2805 = vadd.f32 %v2580, %v2804
      %v2806 = vpop.f32.mrb[0].mxu0
      %2807 = vmatprep.mubr.f32.mxu0 0.0
      %2808 = vmatmul.mubr.f32.gmra.mrb[0].mxu0 %v2421
      %v2809 = vpop.f32.mrb[0].mxu0
      %v2810 = vadd.f32 %v2585, %v2809
      %v2811 = vpop.f32.mrb[0].mxu0
      %2812 = vmatprep.mubr.f32.mxu0 0.0
      %2813 = vmatmul.mubr.f32.gmra.mrb[0].mxu0 %v2424
      %v2814 = vpop.f32.mrb[0].mxu0
      %v2815 = vadd.f32 %v2590, %v2814
      %v2816 = vpop.f32.mrb[0].mxu0
      %2817 = vmatprep.mubr.f32.mxu0 0.0
      %2818 = vmatmul.mubr.f32.gmra.mrb[0].mxu0 %v2427
      %v2819 = vpop.f32.mrb[0].mxu0
      %v2820 = vadd.f32 %v2595, %v2819
      %v2821 = vpop.f32.mrb[0].mxu0
      %2822 = vmatprep.mubr.f32.mxu0 0.0
      %2823 = vmatmul.mubr.f32.gmra.mrb[0].mxu0 %v2430
      %v2824 = vpop.f32.mrb[0].mxu0
      %v2825 = vadd.f32 %v2600, %v2824
      %v2826 = vpop.f32.mrb[0].mxu0
      %2827 = vmatprep.mubr.f32.mxu0 0.0
      %2828 = vmatmul.mubr.f32.gmra.mrb[0].mxu0 %v2433
      %v2829 = vpop.f32.mrb[0].mxu0
      %v2830 = vadd.f32 %v2605, %v2829
      %v2831 = vpop.f32.mrb[0].mxu0
      %2832 = vmatprep.mubr.f32.mxu0 0.0
      %2833 = vmatmul.mubr.f32.gmra.mrb[0].mxu0 %v2436
      %v2834 = vpop.f32.mrb[0].mxu0
      %v2835 = vadd.f32 %v2610, %v2834
      %v2836 = vpop.f32.mrb[0].mxu0
      %2837 = vmatprep.mubr.f32.mxu0 0.0
      %2838 = vmatmul.mubr.f32.gmra.mrb[0].mxu0 %v2439
      %v2839 = vpop.f32.mrb[0].mxu0
      %v2840 = vadd.f32 %v2615, %v2839
      %v2841 = vpop.f32.mrb[0].mxu0
      %2842 = vmatprep.mubr.f32.mxu0 0.0
      %2843 = vmatmul.mubr.f32.gmra.mrb[0].mxu0 %v2442
      %v2844 = vpop.f32.mrb[0].mxu0
      %v2845 = vadd.f32 %v2620, %v2844
      %v2846 = vpop.f32.mrb[0].mxu0
      %2847 = vmatprep.mubr.f32.mxu0 0.0
      %2848 = vmatmul.mubr.f32.gmra.mrb[0].mxu0 %v2445
      %v2849 = vpop.f32.mrb[0].mxu0
      %v2850 = vadd.f32 %v2625, %v2849
      %v2851 = vpop.f32.mrb[0].mxu0
      %2852 = vmatprep.mubr.f32.mxu0 0.0
      %2853 = vmatmul.mubr.f32.gmra.mrb[0].mxu0 %v2448
      %v2854 = vpop.f32.mrb[0].mxu0
      %v2855 = vadd.f32 %v2630, %v2854
      %v2856 = vpop.f32.mrb[0].mxu0
      %2857 = vmatprep.mubr.f32.mxu0 0.0
      %2858 = vmatmul.mubr.f32.gmra.mrb[0].mxu0 %v2451
      %v2859 = vpop.f32.mrb[0].mxu0
      %v2860 = vadd.f32 %v2635, %v2859
      %v2861 = vpop.f32.mrb[0].mxu0
      %2862 = vmatprep.mubr.f32.mxu0 0.0
      %2863 = vmatmul.mubr.f32.gmra.mrb[0].mxu0 %v2454
      %v2864 = vpop.f32.mrb[0].mxu0
      %v2865 = vadd.f32 %v2640, %v2864
      %v2866 = vpop.f32.mrb[0].mxu0
      %2867 = vmatprep.mubr.f32.mxu0 0.0
      %2868 = vmatmul.mubr.f32.gmra.mrb[0].mxu0 %v2457
      %v2869 = vpop.f32.mrb[0].mxu0
      %v2870 = vadd.f32 %v2645, %v2869
      %v2871 = vpop.f32.mrb[0].mxu0
      %2872 = vmatprep.mubr.f32.mxu0 0.0
      %2873 = vmatmul.mubr.f32.gmra.mrb[0].mxu0 %v2460
      %v2874 = vpop.f32.mrb[0].mxu0
      %v2875 = vadd.f32 %v2650, %v2874
      %v2876 = vpop.f32.mrb[0].mxu0
      %2877 = vmatprep.mubr.f32.mxu0 0.0
      %2878 = vmatmul.mubr.f32.gmra.mrb[0].mxu0 %v2463
      %v2879 = vpop.f32.mrb[0].mxu0
      %v2880 = vadd.f32 %v2655, %v2879
      %v2881 = vpop.f32.mrb[0].mxu0
      %2882 = vmatprep.mubr.f32.mxu0 0.0
      %2883 = vmatmul.mubr.f32.gmra.mrb[0].mxu0 %v2466
      %v2884 = vpop.f32.mrb[0].mxu0
      %v2885 = vadd.f32 %v2660, %v2884
      %v2886 = vpop.f32.mrb[0].mxu0
      %2887 = vmatprep.mubr.f32.mxu0 0.0
      %2888 = vmatmul.mubr.f32.gmra.mrb[0].mxu0 %v2469
      %v2889 = vpop.f32.mrb[0].mxu0
      %v2890 = vadd.f32 %v2665, %v2889
      %v2891 = vpop.f32.mrb[0].mxu0
      %2892 = vmatprep.mubr.f32.mxu0 0.0
      %2893 = vmatmul.mubr.f32.gmra.mrb[0].mxu0 %v2472
      %v2894 = vpop.f32.mrb[0].mxu0
      %v2895 = vadd.f32 %v2670, %v2894
      %v2896 = vpop.f32.mrb[0].mxu0
      %2897 = vmatprep.mubr.f32.mxu0 0.0
      %2898 = vmatmul.mubr.f32.gmra.mrb[0].mxu0 %v2475
      %v2899 = vpop.f32.mrb[0].mxu0
      %v2900 = vadd.f32 %v2675, %v2899
      %v2901 = vpop.f32.mrb[0].mxu0
      %2902 = vmatprep.mubr.f32.mxu0 0.0
      %2903 = vmatmul.mubr.f32.gmra.mrb[0].mxu0 %v2478
      %v2904 = vpop.f32.mrb[0].mxu0
      %v2905 = vadd.f32 %v2680, %v2904
      %v2906 = vpop.f32.mrb[0].mxu0
      %2907 = vmatprep.mubr.f32.mxu0 0.0
      %2908 = vmatmul.mubr.f32.gmra.mrb[0].mxu0 %v2481
      %v2909 = vpop.f32.mrb[0].mxu0
      %v2910 = vadd.f32 %v2685, %v2909
      %v2911 = vpop.f32.mrb[0].mxu0
      %2912 = vmatprep.mubr.f32.mxu0 0.0
      %2913 = vmatmul.mubr.f32.gmra.mrb[0].mxu0 %v2484
      %v2914 = vpop.f32.mrb[0].mxu0
      %v2915 = vadd.f32 %v2690, %v2914
      %v2916 = vpop.f32.mrb[0].mxu0
      %2917 = vmatprep.mubr.f32.mxu0 0.0
      %2918 = vmatmul.mubr.f32.gmra.mrb[0].mxu0 %v2487
      %v2919 = vpop.f32.mrb[0].mxu0
      %v2920 = vadd.f32 %v2695, %v2919
      %v2921 = vpop.f32.mrb[0].mxu0
      %2922 = vmatprep.mubr.f32.mxu0 0.0
      %2923 = vmatmul.mubr.f32.gmra.mrb[0].mxu0 %v2490
      %v2924 = vpop.f32.mrb[0].mxu0
      %v2925 = vadd.f32 %v2700, %v2924
      %v2926 = vpop.f32.mrb[0].mxu0
      %2927 = vmatprep.mubr.f32.mxu0 0.0
      %2928 = vmatmul.mubr.f32.gmra.mrb[0].mxu0 %v2493
      %v2929 = vpop.f32.mrb[0].mxu0
      %v2930 = vadd.f32 %v2705, %v2929
      %v2931 = vpop.f32.mrb[0].mxu0
      %2932 = vmatprep.mubr.f32.mxu0 0.0
      %2933 = vmatmul.mubr.f32.gmra.mrb[0].mxu0 %v2496
      %v2934 = vpop.f32.mrb[0].mxu0
      %v2935 = vadd.f32 %v2710, %v2934
      %v2936 = vpop.f32.mrb[0].mxu0
      %2937 = vmatprep.mubr.f32.mxu0 0.0
      %2938 = vmatmul.mubr.f32.gmra.mrb[0].mxu0 %v2499
      %v2939 = vpop.f32.mrb[0].mxu0
      %v2940 = vadd.f32 %v2715, %v2939
      %v2941 = vpop.f32.mrb[0].mxu0
      %2942 = vmatprep.mubr.f32.mxu0 0.0
      %2943 = vmatmul.mubr.f32.gmra.mrb[0].mxu0 %v2502
      %v2944 = vpop.f32.mrb[0].mxu0
      %v2945 = vadd.f32 %v2720, %v2944
      %v2946 = vpop.f32.mrb[0].mxu0
      %2947 = vmatprep.mubr.f32.mxu0 0.0
      %2948 = vmatmul.mubr.f32.gmra.mrb[0].mxu0 %v2505
      %v2949 = vpop.f32.mrb[0].mxu0
      %v2950 = vadd.f32 %v2725, %v2949
      %v2951 = vpop.f32.mrb[0].mxu0
      %2952 = vmatprep.mubr.f32.mxu0 0.0
      %2953 = vmatmul.mubr.f32.gmra.mrb[0].mxu0 %v2508
      %v2954 = vpop.f32.mrb[0].mxu0
      %v2955 = vadd.f32 %v2730, %v2954
      %v2956 = vpop.f32.mrb[0].mxu0
      %2957 = vmatprep.mubr.f32.mxu0 0.0
      %2958 = vmatmul.mubr.f32.gmra.mrb[0].mxu0 %v2511
      %v2959 = vpop.f32.mrb[0].mxu0
      %v2960 = vadd.f32 %v2735, %v2959
      %v2961 = vpop.f32.mrb[0].mxu0
      %2962 = vdwg.mxu0
      %2963 = vst.msk [vmem:[%s278] sm:$0xff] %vm422, %v279
      %2964 = vst.msk [vmem:[%s278 + $0x8] sm:$0xff] %vm422, %v280
      %2965 = vst.msk [vmem:[%s278 + $0x10] sm:$0xff] %vm422, %v281
      %2966 = vst.msk [vmem:[%s278 + $0x18] sm:$0xff] %vm422, %v282
      %2967 = vst.msk [vmem:[%s278 + $0x20] sm:$0xff] %vm422, %v283
      %2968 = vst.msk [vmem:[%s278 + $0x28] sm:$0xff] %vm422, %v284
      %2969 = vst.msk [vmem:[%s278 + $0x30] sm:$0xff] %vm422, %v285
      %2970 = vst.msk [vmem:[%s278 + $0x38] sm:$0xff] %vm422, %v286
      %2971 = vst.msk [vmem:[%s278 + $0x40] sm:$0xff] %vm422, %v287
      %2972 = vst.msk [vmem:[%s278 + $0x48] sm:$0xff] %vm422, %v288
      %2973 = vst.msk [vmem:[%s278 + $0x50] sm:$0xff] %vm422, %v289
      %2974 = vst.msk [vmem:[%s278 + $0x58] sm:$0xff] %vm422, %v290
      %2975 = vst.msk [vmem:[%s278 + $0x60] sm:$0xff] %vm422, %v291
      %2976 = vst.msk [vmem:[%s278 + $0x68] sm:$0xff] %vm422, %v292
      %2977 = vst.msk [vmem:[%s278 + $0x70] sm:$0xff] %vm422, %v293
      %2978 = vst.msk [vmem:[%s278 + $0x78] sm:$0xff] %vm422, %v294
      %2979 = vst.msk [vmem:[%s278 + $0x80] sm:$0xff] %vm422, %v295
      %2980 = vst.msk [vmem:[%s278 + $0x88] sm:$0xff] %vm422, %v296
      %2981 = vst.msk [vmem:[%s278 + $0x90] sm:$0xff] %vm422, %v297
      %2982 = vst.msk [vmem:[%s278 + $0x98] sm:$0xff] %vm422, %v298
      %2983 = vst.msk [vmem:[%s278 + $0xa0] sm:$0xff] %vm422, %v299
      %2984 = vst.msk [vmem:[%s278 + $0xa8] sm:$0xff] %vm422, %v300
      %2985 = vst.msk [vmem:[%s278 + $0xb0] sm:$0xff] %vm422, %v301
      %2986 = vst.msk [vmem:[%s278 + $0xb8] sm:$0xff] %vm422, %v302
      %2987 = vst.msk [vmem:[%s278 + $0xc0] sm:$0xff] %vm422, %v303
      %2988 = vst.msk [vmem:[%s278 + $0xc8] sm:$0xff] %vm422, %v304
      %2989 = vst.msk [vmem:[%s278 + $0xd0] sm:$0xff] %vm422, %v305
      %2990 = vst.msk [vmem:[%s278 + $0xd8] sm:$0xff] %vm422, %v306
      %2991 = vst.msk [vmem:[%s278 + $0xe0] sm:$0xff] %vm422, %v307
      %2992 = vst.msk [vmem:[%s278 + $0xe8] sm:$0xff] %vm422, %v308
      %2993 = vst.msk [vmem:[%s278 + $0xf0] sm:$0xff] %vm422, %v309
      %2994 = vst.msk [vmem:[%s278 + $0xf8] sm:$0xff] %vm422, %v310
      %3027 = vrot.lane.b32.xlu0 %v2805, 4
      %v3028 = vpop.permute.xlu0 %3027
      %3029 = vrot.lane.b32.xlu0 %v2810, 4
      %v3030 = vpop.permute.xlu0 %3029
      %3031 = vrot.lane.b32.xlu0 %v2815, 4
      %v3032 = vpop.permute.xlu0 %3031
      %3033 = vrot.lane.b32.xlu0 %v2820, 4
      %v3034 = vpop.permute.xlu0 %3033
      %3035 = vrot.lane.b32.xlu0 %v2825, 4
      %v3036 = vpop.permute.xlu0 %3035
      %3037 = vrot.lane.b32.xlu0 %v2830, 4
      %v3038 = vpop.permute.xlu0 %3037
      %3039 = vrot.lane.b32.xlu0 %v2835, 4
      %v3040 = vpop.permute.xlu0 %3039
      %3041 = vrot.lane.b32.xlu0 %v2840, 4
      %v3042 = vpop.permute.xlu0 %3041
      %3043 = vrot.lane.b32.xlu0 %v2845, 4
      %v3044 = vpop.permute.xlu0 %3043
      %3045 = vrot.lane.b32.xlu0 %v2850, 4
      %v3046 = vpop.permute.xlu0 %3045
      %3047 = vrot.lane.b32.xlu0 %v2855, 4
      %v3048 = vpop.permute.xlu0 %3047
      %3049 = vrot.lane.b32.xlu0 %v2860, 4
      %v3050 = vpop.permute.xlu0 %3049
      %3051 = vrot.lane.b32.xlu0 %v2865, 4
      %v3052 = vpop.permute.xlu0 %3051
      %3053 = vrot.lane.b32.xlu0 %v2870, 4
      %v3054 = vpop.permute.xlu0 %3053
      %3055 = vrot.lane.b32.xlu0 %v2875, 4
      %v3056 = vpop.permute.xlu0 %3055
      %3057 = vrot.lane.b32.xlu0 %v2880, 4
      %v3058 = vpop.permute.xlu0 %3057
      %3059 = vrot.lane.b32.xlu0 %v2885, 4
      %v3060 = vpop.permute.xlu0 %3059
      %3061 = vrot.lane.b32.xlu0 %v2890, 4
      %v3062 = vpop.permute.xlu0 %3061
      %3063 = vrot.lane.b32.xlu0 %v2895, 4
      %v3064 = vpop.permute.xlu0 %3063
      %3065 = vrot.lane.b32.xlu0 %v2900, 4
      %v3066 = vpop.permute.xlu0 %3065
      %3067 = vrot.lane.b32.xlu0 %v2905, 4
      %v3068 = vpop.permute.xlu0 %3067
      %3069 = vrot.lane.b32.xlu0 %v2910, 4
      %v3070 = vpop.permute.xlu0 %3069
      %3071 = vrot.lane.b32.xlu0 %v2915, 4
      %v3072 = vpop.permute.xlu0 %3071
      %3073 = vrot.lane.b32.xlu0 %v2920, 4
      %v3074 = vpop.permute.xlu0 %3073
      %3075 = vrot.lane.b32.xlu0 %v2925, 4
      %v3076 = vpop.permute.xlu0 %3075
      %3077 = vrot.lane.b32.xlu0 %v2930, 4
      %v3078 = vpop.permute.xlu0 %3077
      %3079 = vrot.lane.b32.xlu0 %v2935, 4
      %v3080 = vpop.permute.xlu0 %3079
      %3081 = vrot.lane.b32.xlu0 %v2940, 4
      %v3082 = vpop.permute.xlu0 %3081
      %3083 = vrot.lane.b32.xlu0 %v2945, 4
      %v3084 = vpop.permute.xlu0 %3083
      %3085 = vrot.lane.b32.xlu0 %v2950, 4
      %v3086 = vpop.permute.xlu0 %3085
      %3087 = vrot.lane.b32.xlu0 %v2955, 4
      %v3088 = vpop.permute.xlu0 %3087
      %3089 = vrot.lane.b32.xlu0 %v2960, 4
      %v3090 = vpop.permute.xlu0 %3089
      %vm3123 = vcmask 97312
      %3124 = vst.msk [vmem:[%s278] sm:$0xff] %vm3123, %v3028
      %3125 = vst.msk [vmem:[%s278 + $0x8] sm:$0xff] %vm3123, %v3030
      %3126 = vst.msk [vmem:[%s278 + $0x10] sm:$0xff] %vm3123, %v3032
      %3127 = vst.msk [vmem:[%s278 + $0x18] sm:$0xff] %vm3123, %v3034
      %3128 = vst.msk [vmem:[%s278 + $0x20] sm:$0xff] %vm3123, %v3036
      %3129 = vst.msk [vmem:[%s278 + $0x28] sm:$0xff] %vm3123, %v3038
      %3130 = vst.msk [vmem:[%s278 + $0x30] sm:$0xff] %vm3123, %v3040
      %3131 = vst.msk [vmem:[%s278 + $0x38] sm:$0xff] %vm3123, %v3042
      %3132 = vst.msk [vmem:[%s278 + $0x40] sm:$0xff] %vm3123, %v3044
      %3133 = vst.msk [vmem:[%s278 + $0x48] sm:$0xff] %vm3123, %v3046
      %3134 = vst.msk [vmem:[%s278 + $0x50] sm:$0xff] %vm3123, %v3048
      %3135 = vst.msk [vmem:[%s278 + $0x58] sm:$0xff] %vm3123, %v3050
      %3136 = vst.msk [vmem:[%s278 + $0x60] sm:$0xff] %vm3123, %v3052
      %3137 = vst.msk [vmem:[%s278 + $0x68] sm:$0xff] %vm3123, %v3054
      %3138 = vst.msk [vmem:[%s278 + $0x70] sm:$0xff] %vm3123, %v3056
      %3139 = vst.msk [vmem:[%s278 + $0x78] sm:$0xff] %vm3123, %v3058
      %3140 = vst.msk [vmem:[%s278 + $0x80] sm:$0xff] %vm3123, %v3060
      %3141 = vst.msk [vmem:[%s278 + $0x88] sm:$0xff] %vm3123, %v3062
      %3142 = vst.msk [vmem:[%s278 + $0x90] sm:$0xff] %vm3123, %v3064
      %3143 = vst.msk [vmem:[%s278 + $0x98] sm:$0xff] %vm3123, %v3066
      %3144 = vst.msk [vmem:[%s278 + $0xa0] sm:$0xff] %vm3123, %v3068
      %3145 = vst.msk [vmem:[%s278 + $0xa8] sm:$0xff] %vm3123, %v3070
      %3146 = vst.msk [vmem:[%s278 + $0xb0] sm:$0xff] %vm3123, %v3072
      %3147 = vst.msk [vmem:[%s278 + $0xb8] sm:$0xff] %vm3123, %v3074
      %3148 = vst.msk [vmem:[%s278 + $0xc0] sm:$0xff] %vm3123, %v3076
      %3149 = vst.msk [vmem:[%s278 + $0xc8] sm:$0xff] %vm3123, %v3078
      %3150 = vst.msk [vmem:[%s278 + $0xd0] sm:$0xff] %vm3123, %v3080
      %3151 = vst.msk [vmem:[%s278 + $0xd8] sm:$0xff] %vm3123, %v3082
      %3152 = vst.msk [vmem:[%s278 + $0xe0] sm:$0xff] %vm3123, %v3084
      %3153 = vst.msk [vmem:[%s278 + $0xe8] sm:$0xff] %vm3123, %v3086
      %3154 = vst.msk [vmem:[%s278 + $0xf0] sm:$0xff] %vm3123, %v3088
      %3155 = vst.msk [vmem:[%s278 + $0xf8] sm:$0xff] %vm3123, %v3090
      %p3156 = scmp.lt.s32.totalorder %s18, 1
      %s3157 = scalar_select %p3156, %s18, 1
      %s3158 = smul.addr %s3157, 32
      %s3159 = smul.addr %s3158, 8
      %s3160 = scalar_lea.vmem %s7, %s3159
      // Predicated region
      $region49: #{tpu_custom_call.1} parent=47 // pred_check
        %p3161 = pneg %p188
      $region50: #{tpu_custom_call.1} parent=47 // pred_check_branch
        %3163 = sbr.rel (%p3161) target = $region52
      $region51: #{tpu_custom_call.1} parent=47 // pred_region
        _
      $region52: #{tpu_custom_call.1} parent=47 // pred_fallthru
        _
    $region48: #{tpu_custom_call.1} parent=5 // pred_fallthru
      _
    %p3164 = scmp.le.s32.totalorder 2, %s13
    // Predicated region
    $region53: #{tpu_custom_call.1} parent=5 // pred_check
      %p3165 = pneg %p3164
    $region54: #{tpu_custom_call.1} parent=5 // pred_check_branch
      %3167 = sbr.rel (%p3165) target = $region56
    $region55: #{tpu_custom_call.1} parent=5 // pred_region
      %s3168 = ssub.s32 %s13, 2
      // Predicated region
      $region57: #{tpu_custom_call.1} parent=55 // pred_check
        %p3169 = pneg %p194
      $region58: #{tpu_custom_call.1} parent=55 // pred_check_branch
        %3171 = sbr.rel (%p3169) target = $region60
      $region59: #{tpu_custom_call.1} parent=55 // pred_region
        %p3172 = scmp.lt.s32.totalorder %s19, 1
        %s3173 = scalar_select %p3172, %s19, 1
        %s3174 = smul.addr %s3173, 32
        %s3175 = smul.addr %s3174, 8
        %s3176 = scalar_lea.vmem %s7, %s3175
      $region60: #{tpu_custom_call.1} parent=55 // pred_fallthru
        _
    $region56: #{tpu_custom_call.1} parent=5 // pred_fallthru
      _
  $region6: #{tpu_custom_call.1} parent=0 // loop_footer
    %s17 = sadd.s32 1, %s13
  $region7: #{tpu_custom_call.1} parent=0 // loop_footer_branch
    %12 = sbr.rel target = $region3
  $region8: #{tpu_custom_call.1} parent=0 // loop_exit
    _

</llo_original>
